<compile_context>
chip_gen: v6e
topology: v6e:2x2x1
jax: 0.10.0
libtpu: 0.0.40
codegen_flags: <defaults>
</compile_context>

<pallas_src>
import functools

import jax
import jax.numpy as jnp
from jax.experimental import pallas as pl
from jax.experimental.pallas import tpu as pltpu

ACT_DTYPE = jnp.bfloat16     # inter-stage activation storage / MXU operand dtype
_MAX_ROWS = 4096             # max im2col rows per in-kernel matmul (bounds VMEM per chunk)


# -----------------------------------------------------------------------------
# Small math helpers (safe inside Pallas kernels: elementwise + exp only)
# -----------------------------------------------------------------------------
def _elu(x):
    # Clamp the inactive branch so exp() never overflows.
    return jnp.where(x > 0, x, jnp.exp(jnp.minimum(x, 0.0)) - 1.0)


def _sigmoid(x):
    return 1.0 / (1.0 + jnp.exp(-x))


# -----------------------------------------------------------------------------
# In-kernel 3x3 "same" convolution over a VMEM-resident flat image.
#
# Images are stored flat as ((H + 4) * W, C): pixel (y, x) lives at row (y + 2) * W + x and the
# first / last 2*W rows are zero (vertical halo).  Horizontal out-of-bounds taps wrap into the
# neighbouring image row, so they are masked to zero instead of padded -> no junk columns, dense
# stores, and the tap gather stays a set of contiguous row slices.
# -----------------------------------------------------------------------------
def _im2col(load, f0, n, width):
    col = (jax.lax.broadcasted_iota(jnp.int32, (n, 1), 0) + f0) % width
    keep_l = col != 0             # dx == 0 taps: x - 1 would wrap to the previous row
    keep_r = col != (width - 1)   # dx == 2 taps: x + 1 would wrap to the next row
    taps = []
    for dy in range(3):
        for dx in range(3):
            t = load(f0 + (dy + 1) * width + dx - 1, n)
            if dx == 0:
                t = jnp.where(keep_l, t, jnp.zeros_like(t))
            elif dx == 2:
                t = jnp.where(keep_r, t, jnp.zeros_like(t))
            taps.append(t)
    # Tap-major / channel-minor K: must stay coupled with w.reshape(9 * Cin, Cout) row order.
    return jnp.concatenate(taps, axis=-1)


def _conv_pass(load, store, hw, width, wmat, bias=None, act=None, epilogue=None):
    """One conv layer: a single MXU dot per chunk of output rows, fused bias/activation/epilogue."""
    for f0 in range(0, hw, _MAX_ROWS):
        n = min(_MAX_ROWS, hw - f0)
        a = _im2col(load, f0, n, width)
        acc = jnp.dot(a, wmat, preferred_element_type=jnp.float32)
        if bias is not None:
            acc = acc + bias
        if act == "elu":
            acc = _elu(acc)
        elif act == "sigmoid":
            acc = _sigmoid(acc)
        if epilogue is not None:
            epilogue(acc)
        store(f0, n, acc)


# -----------------------------------------------------------------------------
# Pallas kernels
# -----------------------------------------------------------------------------
def _linear_elu_kernel(x_ref, w_ref, b_ref, o_ref):
    acc = jnp.dot(x_ref[...], w_ref[...], preferred_element_type=jnp.float32)
    o_ref[...] = _elu(acc + b_ref[...]).astype(o_ref.dtype)


def _up1_kernel(x_ref, w_ref, b_ref, p_ref, s_ref, q_ref, *, width, hw):
    """UpResBloc(1, 32) + ELU (upsample folded into phase-packed weights), with the BatchNorm
    sum / sum-of-squares reduction fused into the epilogue (no separate stats pass over HBM)."""
    nout = w_ref.shape[1]
    load = lambda start, n: x_ref[0, pl.ds(start, n), :]

    stats = {"s": jnp.zeros((1, nout), jnp.float32),
             "q": jnp.zeros((1, nout), jnp.float32)}

    def epilogue(acc):
        stats["s"] = stats["s"] + jnp.sum(acc, axis=0, keepdims=True)
        stats["q"] = stats["q"] + jnp.sum(acc * acc, axis=0, keepdims=True)

    def store(f0, n, acc):
        p_ref[0, pl.ds(f0, n), :] = acc.astype(p_ref.dtype)

    _conv_pass(load, store, hw, width, w_ref[...], bias=b_ref[...], act="elu",
               epilogue=epilogue)
    s_ref[0] = stats["s"]
    q_ref[0] = stats["q"]


def _mid_kernel(x_ref, sc_ref, sh_ref, wcb_ref, wup_ref, bup_ref, p_ref, buf_a, buf_b,
                *, width, hw):
    """BatchNorm apply -> ConvBlock(32, bias=False) -> UpResBloc(32, 32) + ELU, all in VMEM."""
    c = buf_a.shape[1]
    halo = jnp.zeros((2 * width, c), buf_a.dtype)
    for buf in (buf_a, buf_b):
        buf[pl.ds(0, 2 * width), :] = halo
        buf[pl.ds(hw + 2 * width, 2 * width), :] = halo

    # BatchNorm scale/shift applied to the interior only, BEFORE the (zero) padding -> exact.
    scale = sc_ref[...].astype(jnp.float32)
    shift = sh_ref[...].astype(jnp.float32)
    for f0 in range(0, hw, _MAX_ROWS):
        n = min(_MAX_ROWS, hw - f0)
        v = x_ref[0, pl.ds(f0, n), :].astype(jnp.float32)
        buf_a[pl.ds(2 * width + f0, n), :] = (v * scale + shift).astype(buf_a.dtype)

    # ConvBlock(32, bias=False)
    load_a = lambda start, n: buf_a[pl.ds(start, n), :]

    def store_b(f0, n, acc):
        buf_b[pl.ds(2 * width + f0, n), :] = acc.astype(buf_b.dtype)

    _conv_pass(load_a, store_b, hw, width, wcb_ref[...])

    # UpResBloc(32, 32) + ELU, x2 upsample folded into the phase-packed weight matrix.
    load_b = lambda start, n: buf_b[pl.ds(start, n), :]

    def store_p(f0, n, acc):
        p_ref[0, pl.ds(f0, n), :] = acc.astype(p_ref.dtype)

    _conv_pass(load_b, store_p, hw, width, wup_ref[...], bias=bup_ref[...], act="elu")


def _tail_kernel(x_ref, w2_ref, w3_ref, wup_ref, bup_ref, p_ref, buf_a, buf_b, *, width, hw):
    """ConvBlock(32) -> ConvBlock(32) -> UpResBloc(32, 1) + Sigmoid, all in VMEM."""
    c = buf_a.shape[1]
    halo = jnp.zeros((2 * width, c), buf_a.dtype)
    for buf in (buf_a, buf_b):
        buf[pl.ds(0, 2 * width), :] = halo
        buf[pl.ds(hw + 2 * width, 2 * width), :] = halo

    load_x = lambda start, n: x_ref[0, pl.ds(start, n), :]

    def store_a(f0, n, acc):
        buf_a[pl.ds(2 * width + f0, n), :] = acc.astype(buf_a.dtype)

    _conv_pass(load_x, store_a, hw, width, w2_ref[...])            # ConvBlock(32)

    load_a = lambda start, n: buf_a[pl.ds(start, n), :]

    def store_b(f0, n, acc):
        buf_b[pl.ds(2 * width + f0, n), :] = acc.astype(buf_b.dtype)

    _conv_pass(load_a, store_b, hw, width, w3_ref[...])             # ConvBlock(32)

    load_b = lambda start, n: buf_b[pl.ds(start, n), :]

    def store_p(f0, n, acc):
        p_ref[0, pl.ds(f0, n), :] = acc.astype(p_ref.dtype)

    _conv_pass(load_b, store_p, hw, width, wup_ref[...], bias=bup_ref[...], act="sigmoid")


# -----------------------------------------------------------------------------
# pallas_call wrappers
# -----------------------------------------------------------------------------
def linear_elu(x, w, b):
    out_shape = jax.ShapeDtypeStruct((x.shape[0], w.shape[1]), jnp.float32)
    return pl.pallas_call(_linear_elu_kernel, out_shape=out_shape)(x, w, b.reshape(1, -1))


def _up1_call(x1, wcomb1, bias1, *, s):
    B = x1.shape[0]
    hw = s * s
    nup = wcomb1.shape[1]
    kernel = functools.partial(_up1_kernel, width=s, hw=hw)
    return pl.pallas_call(
        kernel,
        grid=(B,),
        in_specs=[
            pl.BlockSpec((1, (s + 4) * s, 1), lambda b: (b, 0, 0)),
            pl.BlockSpec(wcomb1.shape, lambda b: (0, 0)),
            pl.BlockSpec(bias1.shape, lambda b: (0, 0)),
        ],
        out_specs=[
            pl.BlockSpec((1, hw, nup), lambda b: (b, 0, 0)),
            pl.BlockSpec((1, 1, nup), lambda b: (b, 0, 0)),
            pl.BlockSpec((1, 1, nup), lambda b: (b, 0, 0)),
        ],
        out_shape=[
            jax.ShapeDtypeStruct((B, hw, nup), ACT_DTYPE),
            jax.ShapeDtypeStruct((B, 1, nup), jnp.float32),
            jax.ShapeDtypeStruct((B, 1, nup), jnp.float32),
        ],
        compiler_params=pltpu.CompilerParams(dimension_semantics=("parallel",)),
    )(x1, wcomb1, bias1)


def _mid_call(h1, scale, shift, wcb1, wcomb2, bias2, *, h):
    B = h1.shape[0]
    hw = h * h
    cin = h1.shape[-1]
    nup = wcomb2.shape[1]
    kernel = functools.partial(_mid_kernel, width=h, hw=hw)
    return pl.pallas_call(
        kernel,
        grid=(B,),
        in_specs=[
            pl.BlockSpec((1, hw, cin), lambda b: (b, 0, 0)),
            pl.BlockSpec(scale.shape, lambda b: (0, 0)),
            pl.BlockSpec(shift.shape, lambda b: (0, 0)),
            pl.BlockSpec(wcb1.shape, lambda b: (0, 0)),
            pl.BlockSpec(wcomb2.shape, lambda b: (0, 0)),
            pl.BlockSpec(bias2.shape, lambda b: (0, 0)),
        ],
        out_specs=pl.BlockSpec((1, hw, nup), lambda b: (b, 0, 0)),
        out_shape=jax.ShapeDtypeStruct((B, hw, nup), ACT_DTYPE),
        scratch_shapes=[pltpu.VMEM(((h + 4) * h, cin), ACT_DTYPE),
                        pltpu.VMEM(((h + 4) * h, cin), ACT_DTYPE)],
        compiler_params=pltpu.CompilerParams(dimension_semantics=("parallel",)),
    )(h1, scale, shift, wcb1, wcomb2, bias2)


def _tail_call(h2, wcb2, wcb3, wcomb3, bias3, *, h):
    B = h2.shape[0]
    hw = h * h
    c = wcb2.shape[1]
    nup = wcomb3.shape[1]
    kernel = functools.partial(_tail_kernel, width=h, hw=hw)
    return pl.pallas_call(
        kernel,
        grid=(B,),
        in_specs=[
            pl.BlockSpec((1, (h + 4) * h, c), lambda b: (b, 0, 0)),
            pl.BlockSpec(wcb2.shape, lambda b: (0, 0)),
            pl.BlockSpec(wcb3.shape, lambda b: (0, 0)),
            pl.BlockSpec(wcomb3.shape, lambda b: (0, 0)),
            pl.BlockSpec(bias3.shape, lambda b: (0, 0)),
        ],
        out_specs=pl.BlockSpec((1, hw, nup), lambda b: (b, 0, 0)),
        out_shape=jax.ShapeDtypeStruct((B, hw, nup), jnp.float32),
        scratch_shapes=[pltpu.VMEM(((h + 4) * h, c), ACT_DTYPE),
                        pltpu.VMEM(((h + 4) * h, c), ACT_DTYPE)],
        compiler_params=pltpu.CompilerParams(dimension_semantics=("parallel",)),
    )(h2, wcb2, wcb3, wcomb3, bias3)


# -----------------------------------------------------------------------------
# XLA-side glue (tiny): halo padding, phase-packed depth-to-space, weight folding
# -----------------------------------------------------------------------------
def _halo_flatten(x):
    """(B, H, W, C) -> (B, (H + 4) * W, C): flat image with 2 zero rows above and below."""
    B, H, W, C = x.shape
    return jnp.pad(x, ((0, 0), (2, 2), (0, 0), (0, 0))).reshape(B, (H + 4) * W, C)


def _depth_to_space(p, h, w, c):
    """(B, h*w, 4*c) phase-packed conv output -> (B, 2h, 2w, c).  Cheap XLA reshuffle of a small map."""
    B = p.shape[0]
    t = p.reshape(B, h, w, 2, 2, c).transpose(0, 1, 3, 2, 4, 5)
    return t.reshape(B, 2 * h, 2 * w, c)


def _fold_upres(p):
    """1x1 residual conv of UpResBloc == extra weight on the 3x3 center tap (exact)."""
    return p["w3"].at[1, 1].add(p["w1"][0, 0]), p["b3"] + p["b1"]


def _make_up_weights(p):
    """Fold (x2 nearest upsample -> 3x3 conv [+ 1x1 residual]) into one (9*Cin, 4*Cout) matrix.

    Output column group (ry, rx) produces upsampled pixel (2y+ry, 2x+rx) from the 3x3
    neighbourhood of small-image pixel (y, x); exact, including zero padding at the borders.
    """
    w, b = _fold_upres(p)
    cin, cout = w.shape[2], w.shape[3]
    # m[phase, src_offset + 1, dy] = 1 iff kernel row dy reads source row y + src_offset
    # when producing upsampled output row 2y + phase (same along columns).
    m = jnp.array([[[1., 0., 0.], [0., 1., 1.], [0., 0., 0.]],
                   [[0., 0., 0.], [1., 1., 0.], [0., 0., 1.]]], jnp.float32)
    weff = jnp.einsum("rad,sbe,deio->abirso", m, m, w)     # (3, 3, cin, 2, 2, cout)
    wcomb = weff.reshape(9 * cin, 4 * cout)
    bias = jnp.tile(b, 4).reshape(1, 4 * cout)
    return wcomb, bias


# -----------------------------------------------------------------------------
# Decoder forward
# -----------------------------------------------------------------------------
def decoder_forward(params, z, y, x_size):
    assert x_size % 8 == 0
    B = z.shape[0]
    s = x_size // 8

    # --- linear(cat(z, y)) + first ELU of the Sequential, reshaped to a (s, s) 1-channel image ---
    zc = jnp.concatenate([z, y], axis=-1)
    h0 = linear_elu(zc, params["lin_w"], params["lin_b"])                # (B, s*s) f32
    x1 = _halo_flatten(h0.reshape(B, s, s, 1))                           # (B, (s+4)*s, 1) f32

    # --- UpResBloc(1, 32) + ELU, with fused BatchNorm sum / sumsq reduction ---
    wcomb1, bias1 = _make_up_weights(params["up1"])                      # tiny; keep f32 MXU path
    p1, bn_s, bn_q = _up1_call(x1, wcomb1, bias1, s=s)                   # p1: (B, s*s, 128) bf16

    # --- BatchNorm2dEnum(32): training-mode batch statistics -> per-channel scale / shift ---
    cnt = B * (2 * s) * (2 * s)
    ssum = bn_s.sum(axis=(0, 1)).reshape(4, 32).sum(axis=0)
    ssq = bn_q.sum(axis=(0, 1)).reshape(4, 32).sum(axis=0)
    mean = ssum / cnt
    var = ssq / cnt - mean * mean                                        # biased, as in torch BN
    scale = params["bn_g"] * jax.lax.rsqrt(var + 1e-5)
    shift = params["bn_b"] - mean * scale

    # --- BN -> ConvBlock(32) -> UpResBloc(32, 32) + ELU, one fused kernel ---
    h1 = _depth_to_space(p1, s, s, 32).reshape(B, (2 * s) * (2 * s), 32)
    wcomb2, bias2 = _make_up_weights(params["up2"])
    p2 = _mid_call(h1, scale.reshape(1, 32), shift.reshape(1, 32),
                   params["cb1_w"].reshape(9 * 32, 32).astype(ACT_DTYPE),
                   wcomb2.astype(ACT_DTYPE), bias2, h=2 * s)             # (B, (2s)^2, 128) bf16

    # --- ConvBlock(32) x2 -> UpResBloc(32, 1) + Sigmoid, one fused kernel ---
    h2 = _halo_flatten(_depth_to_space(p2, 2 * s, 2 * s, 32))
    wcomb3, bias3 = _make_up_weights(params["up3"])
    p3 = _tail_call(h2,
                    params["cb2_w"].reshape(9 * 32, 32).astype(ACT_DTYPE),
                    params["cb3_w"].reshape(9 * 32, 32).astype(ACT_DTYPE),
                    wcomb3.astype(ACT_DTYPE), bias3, h=4 * s)            # (B, (4s)^2, 4) f32

    # --- final (tiny) depth-to-space and NCHW layout ---
    img = _depth_to_space(p3, 4 * s, 4 * s, 1)                           # (B, x, x, 1)
    return img.reshape(B, 1, x_size, x_size)


# -----------------------------------------------------------------------------
# Pure-XLA f32 reference (same assumed module semantics) used only to validate the kernels.
# -----------------------------------------------------------------------------
def decoder_forward_ref(params, z, y, x_size):
    B = z.shape[0]
    s = x_size // 8

    def conv3x3(x, w, b=None):
        o = jax.lax.conv_general_dilated(x, w, (1, 1), "SAME",
                                         dimension_numbers=("NHWC", "HWIO", "NHWC"))
        return o if b is None else o + b

    def upres(x, p):
        u = jnp.repeat(jnp.repeat(x, 2, axis=1), 2, axis=2)
        res = jnp.einsum("bhwc,co->bhwo", u, p["w1"][0, 0]) + p["b1"]
        return conv3x3(u, p["w3"], p["b3"]) + res

    zc = jnp.concatenate([z, y], axis=-1)
    h = _elu(zc @ params["lin_w"] + params["lin_b"]).reshape(B, s, s, 1)
    h = _elu(upres(h, params["up1"]))
    mean = h.mean(axis=(0, 1, 2))
    var = h.var(axis=(0, 1, 2))
    h = (h - mean) * jax.lax.rsqrt(var + 1e-5) * params["bn_g"] + params["bn_b"]
    h = conv3x3(h, params["cb1_w"])
    h = _elu(upres(h, params["up2"]))
    h = conv3x3(h, params["cb2_w"])
    h = conv3x3(h, params["cb3_w"])
    h = _sigmoid(upres(h, params["up3"]))
    return jnp.transpose(h, (0, 3, 1, 2))


# -----------------------------------------------------------------------------
# Deterministic parameter init (synthetic weights; shapes follow the module)
# -----------------------------------------------------------------------------
def init_params(key, z_size, y_size, x_size):
    s = x_size // 8
    ks = jax.random.split(key, 8)

    def nrm(k, shape, scale=0.1):
        return scale * jax.random.normal(k, shape, jnp.float32)

    def up_params(k, cin, cout):
        k1, k2, k3, k4 = jax.random.split(k, 4)
        return {"w3": nrm(k1, (3, 3, cin, cout)), "b3": nrm(k2, (cout,)),
                "w1": nrm(k3, (1, 1, cin, cout)), "b1": nrm(k4, (cout,))}

    return {
        "lin_w": nrm(ks[0], (z_size + y_size, s * s)),   # stored (in, out)
        "lin_b": nrm(ks[1], (s * s,)),
        "up1": up_params(ks[2], 1, 32),
        "bn_g": jnp.ones((32,), jnp.float32),
        "bn_b": jnp.zeros((32,), jnp.float32),
        "cb1_w": nrm(ks[3], (3, 3, 32, 32)),             # stored (kh, kw, Cin, Cout)
        "up2": up_params(ks[4], 32, 32),
        "cb2_w": nrm(ks[5], (3, 3, 32, 32)),
        "cb3_w": nrm(ks[6], (3, 3, 32, 32)),
        "up3": up_params(ks[7], 32, 1),
    }


if __name__ == "__main__":
    # Small, forward-consistent shapes: x_size must be divisible by 8.
    B, Z, Y, X = 2, 16, 3, 16

    key = jax.random.PRNGKey(0)
    kp, kz, ky = jax.random.split(key, 3)
    params = init_params(kp, Z, Y, X)
    z = jax.random.normal(kz, (B, Z), jnp.float32)
    y = jax.random.normal(ky, (B, Y), jnp.float32)

    fwd = jax.jit(functools.partial(decoder_forward, x_size=X))
    out = jax.block_until_ready(fwd(params, z, y))

    assert out.shape == (B, 1, X, X), out.shape
    assert bool(jnp.all(jnp.isfinite(out)))
    assert bool(jnp.all((out >= 0.0) & (out <= 1.0)))   # sigmoid output range

    # Validate against a pure-XLA f32 reference (tolerance covers bf16 activation storage).
    ref = decoder_forward_ref(params, z, y, X)
    err = float(jnp.max(jnp.abs(out - ref)))
    assert err < 5e-2, f"max abs err vs reference: {err}"
    print("KERNEL_OK")
</pallas_src>

<mosaic_0001>
module attributes {stable_mosaic.version = 11 : i64} {
  func.func @_linear_elu_kernel(%arg0: memref<2x19xf32, #tpu.memory_space<vmem>>, %arg1: memref<19x4xf32, #tpu.memory_space<vmem>>, %arg2: memref<1x4xf32, #tpu.memory_space<vmem>>, %arg3: memref<2x4xf32, #tpu.memory_space<vmem>>) attributes {dimension_semantics = [], scalar_prefetch = 0 : i64, scratch_operands = 0 : i64, tpu.core_type = #tpu.core_type<tc>} {
    %c0 = arith.constant 0 : index
    %c0_0 = arith.constant 0 : index
    %0 = vector.load %arg0[%c0, %c0_0] : memref<2x19xf32, #tpu.memory_space<vmem>>, vector<2x19xf32>
    %c0_1 = arith.constant 0 : index
    %c0_2 = arith.constant 0 : index
    %1 = vector.load %arg1[%c0_1, %c0_2] : memref<19x4xf32, #tpu.memory_space<vmem>>, vector<19x4xf32>
    %cst = arith.constant dense<0.000000e+00> : vector<2x4xf32>
    %2 = tpu.matmul %0, %1, %cst {dimension_numbers = #tpu.dot_dimension_numbers<[1], [0], [0], [1], [0, 0, 1, 1], [], []>} : vector<2x19xf32>, vector<19x4xf32>, vector<2x4xf32> -> vector<2x4xf32>
    %c0_3 = arith.constant 0 : index
    %c0_4 = arith.constant 0 : index
    %3 = vector.load %arg2[%c0_3, %c0_4] : memref<1x4xf32, #tpu.memory_space<vmem>>, vector<1x4xf32>
    %4 = vector.broadcast %3 : vector<1x4xf32> to vector<2x4xf32>
    %5 = arith.addf %2, %4 : vector<2x4xf32>
    %cst_5 = arith.constant 0.000000e+00 : f32
    %6 = vector.broadcast %cst_5 : f32 to vector<2x4xf32>
    %7 = arith.cmpf ogt, %5, %6 : vector<2x4xf32>
    %cst_6 = arith.constant 0.000000e+00 : f32
    %8 = vector.broadcast %cst_6 : f32 to vector<2x4xf32>
    %9 = arith.minimumf %5, %8 : vector<2x4xf32>
    %10 = math.exp %9 : vector<2x4xf32>
    %cst_7 = arith.constant 1.000000e+00 : f32
    %11 = vector.broadcast %cst_7 : f32 to vector<2x4xf32>
    %12 = arith.subf %10, %11 : vector<2x4xf32>
    %13 = arith.select %7, %5, %12 : vector<2x4xi1>, vector<2x4xf32>
    %c0_8 = arith.constant 0 : index
    %c0_9 = arith.constant 0 : index
    %14 = vector.load %arg3[%c0_8, %c0_9] : memref<2x4xf32, #tpu.memory_space<vmem>>, vector<2x4xf32>
    tpu.vector_store %arg3[%c0_8, %c0_9], %13 {strides = array<i32>} : memref<2x4xf32, #tpu.memory_space<vmem>>, vector<2x4xf32>,
    return
  }
}

module attributes {stable_mosaic.version = 11 : i64} {
  func.func @_up1_kernel(%arg0: i32, %arg1: memref<1x12x1xf32, #tpu.memory_space<vmem>>, %arg2: memref<9x128xf32, #tpu.memory_space<vmem>>, %arg3: memref<1x128xf32, #tpu.memory_space<vmem>>, %arg4: memref<1x4x128xbf16, #tpu.memory_space<vmem>>, %arg5: memref<1x1x128xf32, #tpu.memory_space<vmem>>, %arg6: memref<1x1x128xf32, #tpu.memory_space<vmem>>) attributes {dimension_semantics = [#tpu.dimension_semantics<parallel>], iteration_bounds = array<i64: 2>, scalar_prefetch = 0 : i64, scratch_operands = 0 : i64, tpu.core_type = #tpu.core_type<tc>, window_params = [{transform_indices = @transform_0, window_bounds = array<i64: 1, 12, 1>}, {pipeline_mode = #tpu.pipeline_mode<synchronous>, transform_indices = @transform_1, window_bounds = array<i64: 9, 128>}, {pipeline_mode = #tpu.pipeline_mode<synchronous>, transform_indices = @transform_2, window_bounds = array<i64: 1, 128>}, {transform_indices = @transform_3, window_bounds = array<i64: 1, 4, 128>}, {transform_indices = @transform_4, window_bounds = array<i64: 1, 1, 128>}, {transform_indices = @transform_5, window_bounds = array<i64: 1, 1, 128>}]} {
    %cst = arith.constant 0.000000e+00 : f32
    %0 = vector.broadcast %cst : f32 to vector<1x128xf32>
    %cst_0 = arith.constant 0.000000e+00 : f32
    %1 = vector.broadcast %cst_0 : f32 to vector<1x128xf32>
    %c0 = arith.constant 0 : index
    %c0_1 = arith.constant 0 : index
    %2 = vector.load %arg2[%c0, %c0_1] : memref<9x128xf32, #tpu.memory_space<vmem>>, vector<9x128xf32>
    %c0_2 = arith.constant 0 : index
    %c0_3 = arith.constant 0 : index
    %3 = vector.load %arg3[%c0_2, %c0_3] : memref<1x128xf32, #tpu.memory_space<vmem>>, vector<1x128xf32>
    %4 = tpu.iota {dimensions = array<i32: 0>} : vector<4x1xi32>
    %c0_i32 = arith.constant 0 : i32
    %5 = vector.broadcast %c0_i32 : i32 to vector<4x1xi32>
    %6 = arith.addi %4, %5 : vector<4x1xi32>
    %c2_i32 = arith.constant 2 : i32
    %c0_i32_4 = arith.constant 0 : i32
    %7 = arith.cmpi eq, %c2_i32, %c0_i32_4 : i32
    %c1_i32 = arith.constant 1 : i32
    %8 = arith.select %7, %c1_i32, %c2_i32 : i32
    %9 = vector.broadcast %8 : i32 to vector<4x1xi32>
    %10 = arith.remsi %6, %9 : vector<4x1xi32>
    %c0_i32_5 = arith.constant 0 : i32
    %11 = vector.broadcast %c0_i32_5 : i32 to vector<4x1xi32>
    %12 = arith.cmpi ne, %10, %11 : vector<4x1xi32>
    %c0_i32_6 = arith.constant 0 : i32
    %13 = vector.broadcast %c0_i32_6 : i32 to vector<4x1xi32>
    %14 = arith.cmpi slt, %10, %13 : vector<4x1xi32>
    %c0_i32_7 = arith.constant 0 : i32
    %15 = arith.cmpi slt, %8, %c0_i32_7 : i32
    %16 = vector.broadcast %15 : i1 to vector<4x1xi1>
    %17 = vector.broadcast %16 : vector<4x1xi1> to vector<4x1xi1>
    %18 = arith.xori %14, %17 : vector<4x1xi1>
    %19 = arith.andi %18, %12 : vector<4x1xi1>
    %20 = vector.broadcast %8 : i32 to vector<4x1xi32>
    %21 = arith.addi %10, %20 : vector<4x1xi32>
    %22 = arith.select %19, %21, %10 : vector<4x1xi1>, vector<4x1xi32>
    %c0_i32_8 = arith.constant 0 : i32
    %23 = vector.broadcast %c0_i32_8 : i32 to vector<4x1xi32>
    %24 = arith.cmpi ne, %22, %23 : vector<4x1xi32>
    %c1_i32_9 = arith.constant 1 : i32
    %25 = vector.broadcast %c1_i32_9 : i32 to vector<4x1xi32>
    %26 = arith.cmpi ne, %22, %25 : vector<4x1xi32>
    %c0_10 = arith.constant 0 : index
    %c1 = arith.constant 1 : index
    %c0_11 = arith.constant 0 : index
    %27 = vector.load %arg1[%c0_10, %c1, %c0_11] : memref<1x12x1xf32, #tpu.memory_space<vmem>>, vector<1x4x1xf32>
    %28 = vector.shape_cast %27 : vector<1x4x1xf32> to vector<4x1xf32>
    %cst_12 = arith.constant 0.000000e+00 : f32
    %29 = vector.broadcast %cst_12 : f32 to vector<4x1xf32>
    %30 = arith.select %24, %28, %29 : vector<4x1xi1>, vector<4x1xf32>
    %c0_13 = arith.constant 0 : index
    %c2 = arith.constant 2 : index
    %c0_14 = arith.constant 0 : index
    %31 = vector.load %arg1[%c0_13, %c2, %c0_14] : memref<1x12x1xf32, #tpu.memory_space<vmem>>, vector<1x4x1xf32>
    %32 = vector.shape_cast %31 : vector<1x4x1xf32> to vector<4x1xf32>
    %c0_15 = arith.constant 0 : index
    %c3 = arith.constant 3 : index
    %c0_16 = arith.constant 0 : index
    %33 = vector.load %arg1[%c0_15, %c3, %c0_16] : memref<1x12x1xf32, #tpu.memory_space<vmem>>, vector<1x4x1xf32>
    %34 = vector.shape_cast %33 : vector<1x4x1xf32> to vector<4x1xf32>
    %cst_17 = arith.constant 0.000000e+00 : f32
    %35 = vector.broadcast %cst_17 : f32 to vector<4x1xf32>
    %36 = arith.select %26, %34, %35 : vector<4x1xi1>, vector<4x1xf32>
    %c0_18 = arith.constant 0 : index
    %c3_19 = arith.constant 3 : index
    %c0_20 = arith.constant 0 : index
    %37 = vector.load %arg1[%c0_18, %c3_19, %c0_20] : memref<1x12x1xf32, #tpu.memory_space<vmem>>, vector<1x4x1xf32>
    %38 = vector.shape_cast %37 : vector<1x4x1xf32> to vector<4x1xf32>
    %cst_21 = arith.constant 0.000000e+00 : f32
    %39 = vector.broadcast %cst_21 : f32 to vector<4x1xf32>
    %40 = arith.select %24, %38, %39 : vector<4x1xi1>, vector<4x1xf32>
    %c0_22 = arith.constant 0 : index
    %c4 = arith.constant 4 : index
    %c0_23 = arith.constant 0 : index
    %41 = vector.load %arg1[%c0_22, %c4, %c0_23] : memref<1x12x1xf32, #tpu.memory_space<vmem>>, vector<1x4x1xf32>
    %42 = vector.shape_cast %41 : vector<1x4x1xf32> to vector<4x1xf32>
    %c0_24 = arith.constant 0 : index
    %c5 = arith.constant 5 : index
    %c0_25 = arith.constant 0 : index
    %43 = vector.load %arg1[%c0_24, %c5, %c0_25] : memref<1x12x1xf32, #tpu.memory_space<vmem>>, vector<1x4x1xf32>
    %44 = vector.shape_cast %43 : vector<1x4x1xf32> to vector<4x1xf32>
    %cst_26 = arith.constant 0.000000e+00 : f32
    %45 = vector.broadcast %cst_26 : f32 to vector<4x1xf32>
    %46 = arith.select %26, %44, %45 : vector<4x1xi1>, vector<4x1xf32>
    %c0_27 = arith.constant 0 : index
    %c5_28 = arith.constant 5 : index
    %c0_29 = arith.constant 0 : index
    %47 = vector.load %arg1[%c0_27, %c5_28, %c0_29] : memref<1x12x1xf32, #tpu.memory_space<vmem>>, vector<1x4x1xf32>
    %48 = vector.shape_cast %47 : vector<1x4x1xf32> to vector<4x1xf32>
    %cst_30 = arith.constant 0.000000e+00 : f32
    %49 = vector.broadcast %cst_30 : f32 to vector<4x1xf32>
    %50 = arith.select %24, %48, %49 : vector<4x1xi1>, vector<4x1xf32>
    %c0_31 = arith.constant 0 : index
    %c6 = arith.constant 6 : index
    %c0_32 = arith.constant 0 : index
    %51 = vector.load %arg1[%c0_31, %c6, %c0_32] : memref<1x12x1xf32, #tpu.memory_space<vmem>>, vector<1x4x1xf32>
    %52 = vector.shape_cast %51 : vector<1x4x1xf32> to vector<4x1xf32>
    %c0_33 = arith.constant 0 : index
    %c7 = arith.constant 7 : index
    %c0_34 = arith.constant 0 : index
    %53 = vector.load %arg1[%c0_33, %c7, %c0_34] : memref<1x12x1xf32, #tpu.memory_space<vmem>>, vector<1x4x1xf32>
    %54 = vector.shape_cast %53 : vector<1x4x1xf32> to vector<4x1xf32>
    %cst_35 = arith.constant 0.000000e+00 : f32
    %55 = vector.broadcast %cst_35 : f32 to vector<4x1xf32>
    %56 = arith.select %26, %54, %55 : vector<4x1xi1>, vector<4x1xf32>
    %57 = tpu.concatenate %30, %32, %36, %40, %42, %46, %50, %52, %56 in 1 : vector<4x1xf32>, vector<4x1xf32>, vector<4x1xf32>, vector<4x1xf32>, vector<4x1xf32>, vector<4x1xf32>, vector<4x1xf32>, vector<4x1xf32>, vector<4x1xf32> -> vector<4x9xf32>
    %cst_36 = arith.constant dense<0.000000e+00> : vector<4x128xf32>
    %58 = tpu.matmul %57, %2, %cst_36 {dimension_numbers = #tpu.dot_dimension_numbers<[1], [0], [0], [1], [0, 0, 1, 1], [], []>} : vector<4x9xf32>, vector<9x128xf32>, vector<4x128xf32> -> vector<4x128xf32>
    %59 = vector.broadcast %3 : vector<1x128xf32> to vector<4x128xf32>
    %60 = arith.addf %58, %59 : vector<4x128xf32>
    %cst_37 = arith.constant 0.000000e+00 : f32
    %61 = vector.broadcast %cst_37 : f32 to vector<4x128xf32>
    %62 = arith.cmpf ogt, %60, %61 : vector<4x128xf32>
    %cst_38 = arith.constant 0.000000e+00 : f32
    %63 = vector.broadcast %cst_38 : f32 to vector<4x128xf32>
    %64 = arith.minimumf %60, %63 : vector<4x128xf32>
    %65 = math.exp %64 : vector<4x128xf32>
    %cst_39 = arith.constant 1.000000e+00 : f32
    %66 = vector.broadcast %cst_39 : f32 to vector<4x128xf32>
    %67 = arith.subf %65, %66 : vector<4x128xf32>
    %68 = arith.select %62, %60, %67 : vector<4x128xi1>, vector<4x128xf32>
    %cst_40 = arith.constant dense<0.000000e+00> : vector<128xf32>
    %69 = vector.multi_reduction <add>, %68, %cst_40 [0] : vector<4x128xf32> to vector<128xf32>
    %70 = vector.shape_cast %69 : vector<128xf32> to vector<1x128xf32>
    %71 = arith.addf %0, %70 : vector<1x128xf32>
    %72 = arith.mulf %68, %68 : vector<4x128xf32>
    %cst_41 = arith.constant dense<0.000000e+00> : vector<128xf32>
    %73 = vector.multi_reduction <add>, %72, %cst_41 [0] : vector<4x128xf32> to vector<128xf32>
    %74 = vector.shape_cast %73 : vector<128xf32> to vector<1x128xf32>
    %75 = arith.addf %1, %74 : vector<1x128xf32>
    %76 = arith.truncf %68 : vector<4x128xf32> to vector<4x128xbf16>
    %c0_42 = arith.constant 0 : index
    %c0_43 = arith.constant 0 : index
    %c0_44 = arith.constant 0 : index
    %77 = vector.load %arg4[%c0_42, %c0_43, %c0_44] : memref<1x4x128xbf16, #tpu.memory_space<vmem>>, vector<1x4x128xbf16>
    %78 = vector.shape_cast %77 : vector<1x4x128xbf16> to vector<4x128xbf16>
    %79 = vector.shape_cast %76 : vector<4x128xbf16> to vector<1x4x128xbf16>
    tpu.vector_store %arg4[%c0_42, %c0_43, %c0_44], %79 {strides = array<i32>} : memref<1x4x128xbf16, #tpu.memory_space<vmem>>, vector<1x4x128xbf16>,
    %c0_45 = arith.constant 0 : index
    %c0_46 = arith.constant 0 : index
    %c0_47 = arith.constant 0 : index
    %80 = vector.load %arg5[%c0_45, %c0_46, %c0_47] : memref<1x1x128xf32, #tpu.memory_space<vmem>>, vector<1x1x128xf32>
    %81 = vector.shape_cast %80 : vector<1x1x128xf32> to vector<1x128xf32>
    %82 = vector.shape_cast %71 : vector<1x128xf32> to vector<1x1x128xf32>
    tpu.vector_store %arg5[%c0_45, %c0_46, %c0_47], %82 {strides = array<i32>} : memref<1x1x128xf32, #tpu.memory_space<vmem>>, vector<1x1x128xf32>,
    %c0_48 = arith.constant 0 : index
    %c0_49 = arith.constant 0 : index
    %c0_50 = arith.constant 0 : index
    %83 = vector.load %arg6[%c0_48, %c0_49, %c0_50] : memref<1x1x128xf32, #tpu.memory_space<vmem>>, vector<1x1x128xf32>
    %84 = vector.shape_cast %83 : vector<1x1x128xf32> to vector<1x128xf32>
    %85 = vector.shape_cast %75 : vector<1x128xf32> to vector<1x1x128xf32>
    tpu.vector_store %arg6[%c0_48, %c0_49, %c0_50], %85 {strides = array<i32>} : memref<1x1x128xf32, #tpu.memory_space<vmem>>, vector<1x1x128xf32>,
    return
  }
  func.func @transform_0(%arg0: i32) -> (i32, i32, i32) {
    %c0_i32 = arith.constant 0 : i32
    %c0_i32_0 = arith.constant 0 : i32
    %c0_i32_1 = arith.constant 0 : i32
    return %arg0, %c0_i32, %c0_i32_0 : i32, i32, i32
  }
  func.func @transform_1(%arg0: i32) -> (i32, i32) {
    %c0_i32 = arith.constant 0 : i32
    %c0_i32_0 = arith.constant 0 : i32
    %c0_i32_1 = arith.constant 0 : i32
    return %c0_i32, %c0_i32_0 : i32, i32
  }
  func.func @transform_2(%arg0: i32) -> (i32, i32) {
    %c0_i32 = arith.constant 0 : i32
    %c0_i32_0 = arith.constant 0 : i32
    %c0_i32_1 = arith.constant 0 : i32
    return %c0_i32, %c0_i32_0 : i32, i32
  }
  func.func @transform_3(%arg0: i32) -> (i32, i32, i32) {
    %c0_i32 = arith.constant 0 : i32
    %c0_i32_0 = arith.constant 0 : i32
    %c0_i32_1 = arith.constant 0 : i32
    return %arg0, %c0_i32, %c0_i32_0 : i32, i32, i32
  }
  func.func @transform_4(%arg0: i32) -> (i32, i32, i32) {
    %c0_i32 = arith.constant 0 : i32
    %c0_i32_0 = arith.constant 0 : i32
    %c0_i32_1 = arith.constant 0 : i32
    return %arg0, %c0_i32, %c0_i32_0 : i32, i32, i32
  }
  func.func @transform_5(%arg0: i32) -> (i32, i32, i32) {
    %c0_i32 = arith.constant 0 : i32
    %c0_i32_0 = arith.constant 0 : i32
    %c0_i32_1 = arith.constant 0 : i32
    return %arg0, %c0_i32, %c0_i32_0 : i32, i32, i32
  }
}

module attributes {stable_mosaic.version = 11 : i64} {
  func.func @_mid_kernel(%arg0: i32, %arg1: memref<1x16x32xbf16, #tpu.memory_space<vmem>>, %arg2: memref<1x32xf32, #tpu.memory_space<vmem>>, %arg3: memref<1x32xf32, #tpu.memory_space<vmem>>, %arg4: memref<288x32xbf16, #tpu.memory_space<vmem>>, %arg5: memref<288x128xbf16, #tpu.memory_space<vmem>>, %arg6: memref<1x128xf32, #tpu.memory_space<vmem>>, %arg7: memref<1x16x128xbf16, #tpu.memory_space<vmem>>, %arg8: memref<32x32xbf16, #tpu.memory_space<vmem>>, %arg9: memref<32x32xbf16, #tpu.memory_space<vmem>>) attributes {dimension_semantics = [#tpu.dimension_semantics<parallel>], iteration_bounds = array<i64: 2>, scalar_prefetch = 0 : i64, scratch_operands = 2 : i64, tpu.core_type = #tpu.core_type<tc>, window_params = [{transform_indices = @transform_0, window_bounds = array<i64: 1, 16, 32>}, {pipeline_mode = #tpu.pipeline_mode<synchronous>, transform_indices = @transform_1, window_bounds = array<i64: 1, 32>}, {pipeline_mode = #tpu.pipeline_mode<synchronous>, transform_indices = @transform_2, window_bounds = array<i64: 1, 32>}, {pipeline_mode = #tpu.pipeline_mode<synchronous>, transform_indices = @transform_3, window_bounds = array<i64: 288, 32>}, {pipeline_mode = #tpu.pipeline_mode<synchronous>, transform_indices = @transform_4, window_bounds = array<i64: 288, 128>}, {pipeline_mode = #tpu.pipeline_mode<synchronous>, transform_indices = @transform_5, window_bounds = array<i64: 1, 128>}, {transform_indices = @transform_6, window_bounds = array<i64: 1, 16, 128>}]} {
    %cst = arith.constant 0.000000e+00 : bf16
    %0 = vector.broadcast %cst : bf16 to vector<8x32xbf16>
    %c0 = arith.constant 0 : index
    %c0_0 = arith.constant 0 : index
    %1 = vector.load %arg8[%c0, %c0_0] : memref<32x32xbf16, #tpu.memory_space<vmem>>, vector<8x32xbf16>
    tpu.vector_store %arg8[%c0, %c0_0], %0 {strides = array<i32>} : memref<32x32xbf16, #tpu.memory_space<vmem>>, vector<8x32xbf16>,
    %c24 = arith.constant 24 : index
    %c0_1 = arith.constant 0 : index
    %2 = vector.load %arg8[%c24, %c0_1] : memref<32x32xbf16, #tpu.memory_space<vmem>>, vector<8x32xbf16>
    tpu.vector_store %arg8[%c24, %c0_1], %0 {strides = array<i32>} : memref<32x32xbf16, #tpu.memory_space<vmem>>, vector<8x32xbf16>,
    %c0_2 = arith.constant 0 : index
    %c0_3 = arith.constant 0 : index
    %3 = vector.load %arg9[%c0_2, %c0_3] : memref<32x32xbf16, #tpu.memory_space<vmem>>, vector<8x32xbf16>
    tpu.vector_store %arg9[%c0_2, %c0_3], %0 {strides = array<i32>} : memref<32x32xbf16, #tpu.memory_space<vmem>>, vector<8x32xbf16>,
    %c24_4 = arith.constant 24 : index
    %c0_5 = arith.constant 0 : index
    %4 = vector.load %arg9[%c24_4, %c0_5] : memref<32x32xbf16, #tpu.memory_space<vmem>>, vector<8x32xbf16>
    tpu.vector_store %arg9[%c24_4, %c0_5], %0 {strides = array<i32>} : memref<32x32xbf16, #tpu.memory_space<vmem>>, vector<8x32xbf16>,
    %c0_6 = arith.constant 0 : index
    %c0_7 = arith.constant 0 : index
    %5 = vector.load %arg2[%c0_6, %c0_7] : memref<1x32xf32, #tpu.memory_space<vmem>>, vector<1x32xf32>
    %c0_8 = arith.constant 0 : index
    %c0_9 = arith.constant 0 : index
    %6 = vector.load %arg3[%c0_8, %c0_9] : memref<1x32xf32, #tpu.memory_space<vmem>>, vector<1x32xf32>
    %c0_10 = arith.constant 0 : index
    %c0_11 = arith.constant 0 : index
    %c0_12 = arith.constant 0 : index
    %7 = vector.load %arg1[%c0_10, %c0_11, %c0_12] : memref<1x16x32xbf16, #tpu.memory_space<vmem>>, vector<1x16x32xbf16>
    %8 = vector.shape_cast %7 : vector<1x16x32xbf16> to vector<16x32xbf16>
    %9 = arith.extf %8 : vector<16x32xbf16> to vector<16x32xf32>
    %10 = vector.broadcast %5 : vector<1x32xf32> to vector<16x32xf32>
    %11 = arith.mulf %9, %10 : vector<16x32xf32>
    %12 = vector.broadcast %6 : vector<1x32xf32> to vector<16x32xf32>
    %13 = arith.addf %11, %12 : vector<16x32xf32>
    %14 = arith.truncf %13 : vector<16x32xf32> to vector<16x32xbf16>
    %c8 = arith.constant 8 : index
    %c0_13 = arith.constant 0 : index
    %15 = vector.load %arg8[%c8, %c0_13] : memref<32x32xbf16, #tpu.memory_space<vmem>>, vector<16x32xbf16>
    tpu.vector_store %arg8[%c8, %c0_13], %14 {strides = array<i32>} : memref<32x32xbf16, #tpu.memory_space<vmem>>, vector<16x32xbf16>,
    %c0_14 = arith.constant 0 : index
    %c0_15 = arith.constant 0 : index
    %16 = vector.load %arg4[%c0_14, %c0_15] : memref<288x32xbf16, #tpu.memory_space<vmem>>, vector<288x32xbf16>
    %17 = tpu.iota {dimensions = array<i32: 0>} : vector<16x1xi32>
    %c0_i32 = arith.constant 0 : i32
    %18 = vector.broadcast %c0_i32 : i32 to vector<16x1xi32>
    %19 = arith.addi %17, %18 : vector<16x1xi32>
    %c4_i32 = arith.constant 4 : i32
    %c0_i32_16 = arith.constant 0 : i32
    %20 = arith.cmpi eq, %c4_i32, %c0_i32_16 : i32
    %c1_i32 = arith.constant 1 : i32
    %21 = arith.select %20, %c1_i32, %c4_i32 : i32
    %22 = vector.broadcast %21 : i32 to vector<16x1xi32>
    %23 = arith.remsi %19, %22 : vector<16x1xi32>
    %c0_i32_17 = arith.constant 0 : i32
    %24 = vector.broadcast %c0_i32_17 : i32 to vector<16x1xi32>
    %25 = arith.cmpi ne, %23, %24 : vector<16x1xi32>
    %c0_i32_18 = arith.constant 0 : i32
    %26 = vector.broadcast %c0_i32_18 : i32 to vector<16x1xi32>
    %27 = arith.cmpi slt, %23, %26 : vector<16x1xi32>
    %c0_i32_19 = arith.constant 0 : i32
    %28 = arith.cmpi slt, %21, %c0_i32_19 : i32
    %29 = vector.broadcast %28 : i1 to vector<16x1xi1>
    %30 = vector.broadcast %29 : vector<16x1xi1> to vector<16x1xi1>
    %31 = arith.xori %27, %30 : vector<16x1xi1>
    %32 = arith.andi %31, %25 : vector<16x1xi1>
    %33 = vector.broadcast %21 : i32 to vector<16x1xi32>
    %34 = arith.addi %23, %33 : vector<16x1xi32>
    %35 = arith.select %32, %34, %23 : vector<16x1xi1>, vector<16x1xi32>
    %c0_i32_20 = arith.constant 0 : i32
    %36 = vector.broadcast %c0_i32_20 : i32 to vector<16x1xi32>
    %37 = arith.cmpi ne, %35, %36 : vector<16x1xi32>
    %c3_i32 = arith.constant 3 : i32
    %38 = vector.broadcast %c3_i32 : i32 to vector<16x1xi32>
    %39 = arith.cmpi ne, %35, %38 : vector<16x1xi32>
    %c3 = arith.constant 3 : index
    %c0_21 = arith.constant 0 : index
    %40 = vector.load %arg8[%c3, %c0_21] : memref<32x32xbf16, #tpu.memory_space<vmem>>, vector<16x32xbf16>
    %cst_22 = arith.constant 0.000000e+00 : bf16
    %41 = vector.broadcast %cst_22 : bf16 to vector<16x32xbf16>
    %42 = vector.shape_cast %37 : vector<16x1xi1> to vector<16x1xi1>
    %43 = vector.broadcast %42 : vector<16x1xi1> to vector<16x32xi1>
    %44 = arith.select %43, %40, %41 : vector<16x32xi1>, vector<16x32xbf16>
    %c4 = arith.constant 4 : index
    %c0_23 = arith.constant 0 : index
    %45 = vector.load %arg8[%c4, %c0_23] : memref<32x32xbf16, #tpu.memory_space<vmem>>, vector<16x32xbf16>
    %c5 = arith.constant 5 : index
    %c0_24 = arith.constant 0 : index
    %46 = vector.load %arg8[%c5, %c0_24] : memref<32x32xbf16, #tpu.memory_space<vmem>>, vector<16x32xbf16>
    %cst_25 = arith.constant 0.000000e+00 : bf16
    %47 = vector.broadcast %cst_25 : bf16 to vector<16x32xbf16>
    %48 = vector.shape_cast %39 : vector<16x1xi1> to vector<16x1xi1>
    %49 = vector.broadcast %48 : vector<16x1xi1> to vector<16x32xi1>
    %50 = arith.select %49, %46, %47 : vector<16x32xi1>, vector<16x32xbf16>
    %c7 = arith.constant 7 : index
    %c0_26 = arith.constant 0 : index
    %51 = vector.load %arg8[%c7, %c0_26] : memref<32x32xbf16, #tpu.memory_space<vmem>>, vector<16x32xbf16>
    %cst_27 = arith.constant 0.000000e+00 : bf16
    %52 = vector.broadcast %cst_27 : bf16 to vector<16x32xbf16>
    %53 = vector.shape_cast %37 : vector<16x1xi1> to vector<16x1xi1>
    %54 = vector.broadcast %53 : vector<16x1xi1> to vector<16x32xi1>
    %55 = arith.select %54, %51, %52 : vector<16x32xi1>, vector<16x32xbf16>
    %c8_28 = arith.constant 8 : index
    %c0_29 = arith.constant 0 : index
    %56 = vector.load %arg8[%c8_28, %c0_29] : memref<32x32xbf16, #tpu.memory_space<vmem>>, vector<16x32xbf16>
    %c9 = arith.constant 9 : index
    %c0_30 = arith.constant 0 : index
    %57 = vector.load %arg8[%c9, %c0_30] : memref<32x32xbf16, #tpu.memory_space<vmem>>, vector<16x32xbf16>
    %cst_31 = arith.constant 0.000000e+00 : bf16
    %58 = vector.broadcast %cst_31 : bf16 to vector<16x32xbf16>
    %59 = vector.shape_cast %39 : vector<16x1xi1> to vector<16x1xi1>
    %60 = vector.broadcast %59 : vector<16x1xi1> to vector<16x32xi1>
    %61 = arith.select %60, %57, %58 : vector<16x32xi1>, vector<16x32xbf16>
    %c11 = arith.constant 11 : index
    %c0_32 = arith.constant 0 : index
    %62 = vector.load %arg8[%c11, %c0_32] : memref<32x32xbf16, #tpu.memory_space<vmem>>, vector<16x32xbf16>
    %cst_33 = arith.constant 0.000000e+00 : bf16
    %63 = vector.broadcast %cst_33 : bf16 to vector<16x32xbf16>
    %64 = vector.shape_cast %37 : vector<16x1xi1> to vector<16x1xi1>
    %65 = vector.broadcast %64 : vector<16x1xi1> to vector<16x32xi1>
    %66 = arith.select %65, %62, %63 : vector<16x32xi1>, vector<16x32xbf16>
    %c12 = arith.constant 12 : index
    %c0_34 = arith.constant 0 : index
    %67 = vector.load %arg8[%c12, %c0_34] : memref<32x32xbf16, #tpu.memory_space<vmem>>, vector<16x32xbf16>
    %c13 = arith.constant 13 : index
    %c0_35 = arith.constant 0 : index
    %68 = vector.load %arg8[%c13, %c0_35] : memref<32x32xbf16, #tpu.memory_space<vmem>>, vector<16x32xbf16>
    %cst_36 = arith.constant 0.000000e+00 : bf16
    %69 = vector.broadcast %cst_36 : bf16 to vector<16x32xbf16>
    %70 = vector.shape_cast %39 : vector<16x1xi1> to vector<16x1xi1>
    %71 = vector.broadcast %70 : vector<16x1xi1> to vector<16x32xi1>
    %72 = arith.select %71, %68, %69 : vector<16x32xi1>, vector<16x32xbf16>
    %73 = tpu.concatenate %44, %45, %50, %55, %56, %61, %66, %67, %72 in 1 : vector<16x32xbf16>, vector<16x32xbf16>, vector<16x32xbf16>, vector<16x32xbf16>, vector<16x32xbf16>, vector<16x32xbf16>, vector<16x32xbf16>, vector<16x32xbf16>, vector<16x32xbf16> -> vector<16x288xbf16>
    %cst_37 = arith.constant dense<0.000000e+00> : vector<16x32xf32>
    %74 = tpu.matmul %73, %16, %cst_37 {dimension_numbers = #tpu.dot_dimension_numbers<[1], [0], [0], [1], [0, 0, 1, 1], [], []>} : vector<16x288xbf16>, vector<288x32xbf16>, vector<16x32xf32> -> vector<16x32xf32>
    %75 = arith.truncf %74 : vector<16x32xf32> to vector<16x32xbf16>
    %c8_38 = arith.constant 8 : index
    %c0_39 = arith.constant 0 : index
    %76 = vector.load %arg9[%c8_38, %c0_39] : memref<32x32xbf16, #tpu.memory_space<vmem>>, vector<16x32xbf16>
    tpu.vector_store %arg9[%c8_38, %c0_39], %75 {strides = array<i32>} : memref<32x32xbf16, #tpu.memory_space<vmem>>, vector<16x32xbf16>,
    %c0_40 = arith.constant 0 : index
    %c0_41 = arith.constant 0 : index
    %77 = vector.load %arg5[%c0_40, %c0_41] : memref<288x128xbf16, #tpu.memory_space<vmem>>, vector<288x128xbf16>
    %c0_42 = arith.constant 0 : index
    %c0_43 = arith.constant 0 : index
    %78 = vector.load %arg6[%c0_42, %c0_43] : memref<1x128xf32, #tpu.memory_space<vmem>>, vector<1x128xf32>
    %79 = tpu.iota {dimensions = array<i32: 0>} : vector<16x1xi32>
    %c0_i32_44 = arith.constant 0 : i32
    %80 = vector.broadcast %c0_i32_44 : i32 to vector<16x1xi32>
    %81 = arith.addi %79, %80 : vector<16x1xi32>
    %c4_i32_45 = arith.constant 4 : i32
    %c0_i32_46 = arith.constant 0 : i32
    %82 = arith.cmpi eq, %c4_i32_45, %c0_i32_46 : i32
    %c1_i32_47 = arith.constant 1 : i32
    %83 = arith.select %82, %c1_i32_47, %c4_i32_45 : i32
    %84 = vector.broadcast %83 : i32 to vector<16x1xi32>
    %85 = arith.remsi %81, %84 : vector<16x1xi32>
    %c0_i32_48 = arith.constant 0 : i32
    %86 = vector.broadcast %c0_i32_48 : i32 to vector<16x1xi32>
    %87 = arith.cmpi ne, %85, %86 : vector<16x1xi32>
    %c0_i32_49 = arith.constant 0 : i32
    %88 = vector.broadcast %c0_i32_49 : i32 to vector<16x1xi32>
    %89 = arith.cmpi slt, %85, %88 : vector<16x1xi32>
    %c0_i32_50 = arith.constant 0 : i32
    %90 = arith.cmpi slt, %83, %c0_i32_50 : i32
    %91 = vector.broadcast %90 : i1 to vector<16x1xi1>
    %92 = vector.broadcast %91 : vector<16x1xi1> to vector<16x1xi1>
    %93 = arith.xori %89, %92 : vector<16x1xi1>
    %94 = arith.andi %93, %87 : vector<16x1xi1>
    %95 = vector.broadcast %83 : i32 to vector<16x1xi32>
    %96 = arith.addi %85, %95 : vector<16x1xi32>
    %97 = arith.select %94, %96, %85 : vector<16x1xi1>, vector<16x1xi32>
    %c0_i32_51 = arith.constant 0 : i32
    %98 = vector.broadcast %c0_i32_51 : i32 to vector<16x1xi32>
    %99 = arith.cmpi ne, %97, %98 : vector<16x1xi32>
    %c3_i32_52 = arith.constant 3 : i32
    %100 = vector.broadcast %c3_i32_52 : i32 to vector<16x1xi32>
    %101 = arith.cmpi ne, %97, %100 : vector<16x1xi32>
    %c3_53 = arith.constant 3 : index
    %c0_54 = arith.constant 0 : index
    %102 = vector.load %arg9[%c3_53, %c0_54] : memref<32x32xbf16, #tpu.memory_space<vmem>>, vector<16x32xbf16>
    %cst_55 = arith.constant 0.000000e+00 : bf16
    %103 = vector.broadcast %cst_55 : bf16 to vector<16x32xbf16>
    %104 = vector.shape_cast %99 : vector<16x1xi1> to vector<16x1xi1>
    %105 = vector.broadcast %104 : vector<16x1xi1> to vector<16x32xi1>
    %106 = arith.select %105, %102, %103 : vector<16x32xi1>, vector<16x32xbf16>
    %c4_56 = arith.constant 4 : index
    %c0_57 = arith.constant 0 : index
    %107 = vector.load %arg9[%c4_56, %c0_57] : memref<32x32xbf16, #tpu.memory_space<vmem>>, vector<16x32xbf16>
    %c5_58 = arith.constant 5 : index
    %c0_59 = arith.constant 0 : index
    %108 = vector.load %arg9[%c5_58, %c0_59] : memref<32x32xbf16, #tpu.memory_space<vmem>>, vector<16x32xbf16>
    %cst_60 = arith.constant 0.000000e+00 : bf16
    %109 = vector.broadcast %cst_60 : bf16 to vector<16x32xbf16>
    %110 = vector.shape_cast %101 : vector<16x1xi1> to vector<16x1xi1>
    %111 = vector.broadcast %110 : vector<16x1xi1> to vector<16x32xi1>
    %112 = arith.select %111, %108, %109 : vector<16x32xi1>, vector<16x32xbf16>
    %c7_61 = arith.constant 7 : index
    %c0_62 = arith.constant 0 : index
    %113 = vector.load %arg9[%c7_61, %c0_62] : memref<32x32xbf16, #tpu.memory_space<vmem>>, vector<16x32xbf16>
    %cst_63 = arith.constant 0.000000e+00 : bf16
    %114 = vector.broadcast %cst_63 : bf16 to vector<16x32xbf16>
    %115 = vector.shape_cast %99 : vector<16x1xi1> to vector<16x1xi1>
    %116 = vector.broadcast %115 : vector<16x1xi1> to vector<16x32xi1>
    %117 = arith.select %116, %113, %114 : vector<16x32xi1>, vector<16x32xbf16>
    %c8_64 = arith.constant 8 : index
    %c0_65 = arith.constant 0 : index
    %118 = vector.load %arg9[%c8_64, %c0_65] : memref<32x32xbf16, #tpu.memory_space<vmem>>, vector<16x32xbf16>
    %c9_66 = arith.constant 9 : index
    %c0_67 = arith.constant 0 : index
    %119 = vector.load %arg9[%c9_66, %c0_67] : memref<32x32xbf16, #tpu.memory_space<vmem>>, vector<16x32xbf16>
    %cst_68 = arith.constant 0.000000e+00 : bf16
    %120 = vector.broadcast %cst_68 : bf16 to vector<16x32xbf16>
    %121 = vector.shape_cast %101 : vector<16x1xi1> to vector<16x1xi1>
    %122 = vector.broadcast %121 : vector<16x1xi1> to vector<16x32xi1>
    %123 = arith.select %122, %119, %120 : vector<16x32xi1>, vector<16x32xbf16>
    %c11_69 = arith.constant 11 : index
    %c0_70 = arith.constant 0 : index
    %124 = vector.load %arg9[%c11_69, %c0_70] : memref<32x32xbf16, #tpu.memory_space<vmem>>, vector<16x32xbf16>
    %cst_71 = arith.constant 0.000000e+00 : bf16
    %125 = vector.broadcast %cst_71 : bf16 to vector<16x32xbf16>
    %126 = vector.shape_cast %99 : vector<16x1xi1> to vector<16x1xi1>
    %127 = vector.broadcast %126 : vector<16x1xi1> to vector<16x32xi1>
    %128 = arith.select %127, %124, %125 : vector<16x32xi1>, vector<16x32xbf16>
    %c12_72 = arith.constant 12 : index
    %c0_73 = arith.constant 0 : index
    %129 = vector.load %arg9[%c12_72, %c0_73] : memref<32x32xbf16, #tpu.memory_space<vmem>>, vector<16x32xbf16>
    %c13_74 = arith.constant 13 : index
    %c0_75 = arith.constant 0 : index
    %130 = vector.load %arg9[%c13_74, %c0_75] : memref<32x32xbf16, #tpu.memory_space<vmem>>, vector<16x32xbf16>
    %cst_76 = arith.constant 0.000000e+00 : bf16
    %131 = vector.broadcast %cst_76 : bf16 to vector<16x32xbf16>
    %132 = vector.shape_cast %101 : vector<16x1xi1> to vector<16x1xi1>
    %133 = vector.broadcast %132 : vector<16x1xi1> to vector<16x32xi1>
    %134 = arith.select %133, %130, %131 : vector<16x32xi1>, vector<16x32xbf16>
    %135 = tpu.concatenate %106, %107, %112, %117, %118, %123, %128, %129, %134 in 1 : vector<16x32xbf16>, vector<16x32xbf16>, vector<16x32xbf16>, vector<16x32xbf16>, vector<16x32xbf16>, vector<16x32xbf16>, vector<16x32xbf16>, vector<16x32xbf16>, vector<16x32xbf16> -> vector<16x288xbf16>
    %cst_77 = arith.constant dense<0.000000e+00> : vector<16x128xf32>
    %136 = tpu.matmul %135, %77, %cst_77 {dimension_numbers = #tpu.dot_dimension_numbers<[1], [0], [0], [1], [0, 0, 1, 1], [], []>} : vector<16x288xbf16>, vector<288x128xbf16>, vector<16x128xf32> -> vector<16x128xf32>
    %137 = vector.broadcast %78 : vector<1x128xf32> to vector<16x128xf32>
    %138 = arith.addf %136, %137 : vector<16x128xf32>
    %cst_78 = arith.constant 0.000000e+00 : f32
    %139 = vector.broadcast %cst_78 : f32 to vector<16x128xf32>
    %140 = arith.cmpf ogt, %138, %139 : vector<16x128xf32>
    %cst_79 = arith.constant 0.000000e+00 : f32
    %141 = vector.broadcast %cst_79 : f32 to vector<16x128xf32>
    %142 = arith.minimumf %138, %141 : vector<16x128xf32>
    %143 = math.exp %142 : vector<16x128xf32>
    %cst_80 = arith.constant 1.000000e+00 : f32
    %144 = vector.broadcast %cst_80 : f32 to vector<16x128xf32>
    %145 = arith.subf %143, %144 : vector<16x128xf32>
    %146 = arith.select %140, %138, %145 : vector<16x128xi1>, vector<16x128xf32>
    %147 = arith.truncf %146 : vector<16x128xf32> to vector<16x128xbf16>
    %c0_81 = arith.constant 0 : index
    %c0_82 = arith.constant 0 : index
    %c0_83 = arith.constant 0 : index
    %148 = vector.load %arg7[%c0_81, %c0_82, %c0_83] : memref<1x16x128xbf16, #tpu.memory_space<vmem>>, vector<1x16x128xbf16>
    %149 = vector.shape_cast %148 : vector<1x16x128xbf16> to vector<16x128xbf16>
    %150 = vector.shape_cast %147 : vector<16x128xbf16> to vector<1x16x128xbf16>
    tpu.vector_store %arg7[%c0_81, %c0_82, %c0_83], %150 {strides = array<i32>} : memref<1x16x128xbf16, #tpu.memory_space<vmem>>, vector<1x16x128xbf16>,
    return
  }
  func.func @transform_0(%arg0: i32) -> (i32, i32, i32) {
    %c0_i32 = arith.constant 0 : i32
    %c0_i32_0 = arith.constant 0 : i32
    %c0_i32_1 = arith.constant 0 : i32
    return %arg0, %c0_i32, %c0_i32_0 : i32, i32, i32
  }
  func.func @transform_1(%arg0: i32) -> (i32, i32) {
    %c0_i32 = arith.constant 0 : i32
    %c0_i32_0 = arith.constant 0 : i32
    %c0_i32_1 = arith.constant 0 : i32
    return %c0_i32, %c0_i32_0 : i32, i32
  }
  func.func @transform_2(%arg0: i32) -> (i32, i32) {
    %c0_i32 = arith.constant 0 : i32
    %c0_i32_0 = arith.constant 0 : i32
    %c0_i32_1 = arith.constant 0 : i32
    return %c0_i32, %c0_i32_0 : i32, i32
  }
  func.func @transform_3(%arg0: i32) -> (i32, i32) {
    %c0_i32 = arith.constant 0 : i32
    %c0_i32_0 = arith.constant 0 : i32
    %c0_i32_1 = arith.constant 0 : i32
    return %c0_i32, %c0_i32_0 : i32, i32
  }
  func.func @transform_4(%arg0: i32) -> (i32, i32) {
    %c0_i32 = arith.constant 0 : i32
    %c0_i32_0 = arith.constant 0 : i32
    %c0_i32_1 = arith.constant 0 : i32
    return %c0_i32, %c0_i32_0 : i32, i32
  }
  func.func @transform_5(%arg0: i32) -> (i32, i32) {
    %c0_i32 = arith.constant 0 : i32
    %c0_i32_0 = arith.constant 0 : i32
    %c0_i32_1 = arith.constant 0 : i32
    return %c0_i32, %c0_i32_0 : i32, i32
  }
  func.func @transform_6(%arg0: i32) -> (i32, i32, i32) {
    %c0_i32 = arith.constant 0 : i32
    %c0_i32_0 = arith.constant 0 : i32
    %c0_i32_1 = arith.constant 0 : i32
    return %arg0, %c0_i32, %c0_i32_0 : i32, i32, i32
  }
}

module attributes {stable_mosaic.version = 11 : i64} {
  func.func @_tail_kernel(%arg0: i32, %arg1: memref<1x96x32xbf16, #tpu.memory_space<vmem>>, %arg2: memref<288x32xbf16, #tpu.memory_space<vmem>>, %arg3: memref<288x32xbf16, #tpu.memory_space<vmem>>, %arg4: memref<288x4xbf16, #tpu.memory_space<vmem>>, %arg5: memref<1x4xf32, #tpu.memory_space<vmem>>, %arg6: memref<1x64x4xf32, #tpu.memory_space<vmem>>, %arg7: memref<96x32xbf16, #tpu.memory_space<vmem>>, %arg8: memref<96x32xbf16, #tpu.memory_space<vmem>>) attributes {dimension_semantics = [#tpu.dimension_semantics<parallel>], iteration_bounds = array<i64: 2>, scalar_prefetch = 0 : i64, scratch_operands = 2 : i64, tpu.core_type = #tpu.core_type<tc>, window_params = [{transform_indices = @transform_0, window_bounds = array<i64: 1, 96, 32>}, {pipeline_mode = #tpu.pipeline_mode<synchronous>, transform_indices = @transform_1, window_bounds = array<i64: 288, 32>}, {pipeline_mode = #tpu.pipeline_mode<synchronous>, transform_indices = @transform_2, window_bounds = array<i64: 288, 32>}, {pipeline_mode = #tpu.pipeline_mode<synchronous>, transform_indices = @transform_3, window_bounds = array<i64: 288, 4>}, {pipeline_mode = #tpu.pipeline_mode<synchronous>, transform_indices = @transform_4, window_bounds = array<i64: 1, 4>}, {transform_indices = @transform_5, window_bounds = array<i64: 1, 64, 4>}]} {
    %cst = arith.constant 0.000000e+00 : bf16
    %0 = vector.broadcast %cst : bf16 to vector<16x32xbf16>
    %c0 = arith.constant 0 : index
    %c0_0 = arith.constant 0 : index
    %1 = vector.load %arg7[%c0, %c0_0] : memref<96x32xbf16, #tpu.memory_space<vmem>>, vector<16x32xbf16>
    tpu.vector_store %arg7[%c0, %c0_0], %0 {strides = array<i32>} : memref<96x32xbf16, #tpu.memory_space<vmem>>, vector<16x32xbf16>,
    %c80 = arith.constant 80 : index
    %c0_1 = arith.constant 0 : index
    %2 = vector.load %arg7[%c80, %c0_1] : memref<96x32xbf16, #tpu.memory_space<vmem>>, vector<16x32xbf16>
    tpu.vector_store %arg7[%c80, %c0_1], %0 {strides = array<i32>} : memref<96x32xbf16, #tpu.memory_space<vmem>>, vector<16x32xbf16>,
    %c0_2 = arith.constant 0 : index
    %c0_3 = arith.constant 0 : index
    %3 = vector.load %arg8[%c0_2, %c0_3] : memref<96x32xbf16, #tpu.memory_space<vmem>>, vector<16x32xbf16>
    tpu.vector_store %arg8[%c0_2, %c0_3], %0 {strides = array<i32>} : memref<96x32xbf16, #tpu.memory_space<vmem>>, vector<16x32xbf16>,
    %c80_4 = arith.constant 80 : index
    %c0_5 = arith.constant 0 : index
    %4 = vector.load %arg8[%c80_4, %c0_5] : memref<96x32xbf16, #tpu.memory_space<vmem>>, vector<16x32xbf16>
    tpu.vector_store %arg8[%c80_4, %c0_5], %0 {strides = array<i32>} : memref<96x32xbf16, #tpu.memory_space<vmem>>, vector<16x32xbf16>,
    %c0_6 = arith.constant 0 : index
    %c0_7 = arith.constant 0 : index
    %5 = vector.load %arg2[%c0_6, %c0_7] : memref<288x32xbf16, #tpu.memory_space<vmem>>, vector<288x32xbf16>
    %6 = tpu.iota {dimensions = array<i32: 0>} : vector<64x1xi32>
    %c0_i32 = arith.constant 0 : i32
    %7 = vector.broadcast %c0_i32 : i32 to vector<64x1xi32>
    %8 = arith.addi %6, %7 : vector<64x1xi32>
    %c8_i32 = arith.constant 8 : i32
    %c0_i32_8 = arith.constant 0 : i32
    %9 = arith.cmpi eq, %c8_i32, %c0_i32_8 : i32
    %c1_i32 = arith.constant 1 : i32
    %10 = arith.select %9, %c1_i32, %c8_i32 : i32
    %11 = vector.broadcast %10 : i32 to vector<64x1xi32>
    %12 = arith.remsi %8, %11 : vector<64x1xi32>
    %c0_i32_9 = arith.constant 0 : i32
    %13 = vector.broadcast %c0_i32_9 : i32 to vector<64x1xi32>
    %14 = arith.cmpi ne, %12, %13 : vector<64x1xi32>
    %c0_i32_10 = arith.constant 0 : i32
    %15 = vector.broadcast %c0_i32_10 : i32 to vector<64x1xi32>
    %16 = arith.cmpi slt, %12, %15 : vector<64x1xi32>
    %c0_i32_11 = arith.constant 0 : i32
    %17 = arith.cmpi slt, %10, %c0_i32_11 : i32
    %18 = vector.broadcast %17 : i1 to vector<64x1xi1>
    %19 = vector.broadcast %18 : vector<64x1xi1> to vector<64x1xi1>
    %20 = arith.xori %16, %19 : vector<64x1xi1>
    %21 = arith.andi %20, %14 : vector<64x1xi1>
    %22 = vector.broadcast %10 : i32 to vector<64x1xi32>
    %23 = arith.addi %12, %22 : vector<64x1xi32>
    %24 = arith.select %21, %23, %12 : vector<64x1xi1>, vector<64x1xi32>
    %c0_i32_12 = arith.constant 0 : i32
    %25 = vector.broadcast %c0_i32_12 : i32 to vector<64x1xi32>
    %26 = arith.cmpi ne, %24, %25 : vector<64x1xi32>
    %c7_i32 = arith.constant 7 : i32
    %27 = vector.broadcast %c7_i32 : i32 to vector<64x1xi32>
    %28 = arith.cmpi ne, %24, %27 : vector<64x1xi32>
    %c0_13 = arith.constant 0 : index
    %c7 = arith.constant 7 : index
    %c0_14 = arith.constant 0 : index
    %29 = vector.load %arg1[%c0_13, %c7, %c0_14] : memref<1x96x32xbf16, #tpu.memory_space<vmem>>, vector<1x64x32xbf16>
    %30 = vector.shape_cast %29 : vector<1x64x32xbf16> to vector<64x32xbf16>
    %cst_15 = arith.constant 0.000000e+00 : bf16
    %31 = vector.broadcast %cst_15 : bf16 to vector<64x32xbf16>
    %32 = vector.shape_cast %26 : vector<64x1xi1> to vector<64x1xi1>
    %33 = vector.broadcast %32 : vector<64x1xi1> to vector<64x32xi1>
    %34 = arith.select %33, %30, %31 : vector<64x32xi1>, vector<64x32xbf16>
    %c0_16 = arith.constant 0 : index
    %c8 = arith.constant 8 : index
    %c0_17 = arith.constant 0 : index
    %35 = vector.load %arg1[%c0_16, %c8, %c0_17] : memref<1x96x32xbf16, #tpu.memory_space<vmem>>, vector<1x64x32xbf16>
    %36 = vector.shape_cast %35 : vector<1x64x32xbf16> to vector<64x32xbf16>
    %c0_18 = arith.constant 0 : index
    %c9 = arith.constant 9 : index
    %c0_19 = arith.constant 0 : index
    %37 = vector.load %arg1[%c0_18, %c9, %c0_19] : memref<1x96x32xbf16, #tpu.memory_space<vmem>>, vector<1x64x32xbf16>
    %38 = vector.shape_cast %37 : vector<1x64x32xbf16> to vector<64x32xbf16>
    %cst_20 = arith.constant 0.000000e+00 : bf16
    %39 = vector.broadcast %cst_20 : bf16 to vector<64x32xbf16>
    %40 = vector.shape_cast %28 : vector<64x1xi1> to vector<64x1xi1>
    %41 = vector.broadcast %40 : vector<64x1xi1> to vector<64x32xi1>
    %42 = arith.select %41, %38, %39 : vector<64x32xi1>, vector<64x32xbf16>
    %c0_21 = arith.constant 0 : index
    %c15 = arith.constant 15 : index
    %c0_22 = arith.constant 0 : index
    %43 = vector.load %arg1[%c0_21, %c15, %c0_22] : memref<1x96x32xbf16, #tpu.memory_space<vmem>>, vector<1x64x32xbf16>
    %44 = vector.shape_cast %43 : vector<1x64x32xbf16> to vector<64x32xbf16>
    %cst_23 = arith.constant 0.000000e+00 : bf16
    %45 = vector.broadcast %cst_23 : bf16 to vector<64x32xbf16>
    %46 = vector.shape_cast %26 : vector<64x1xi1> to vector<64x1xi1>
    %47 = vector.broadcast %46 : vector<64x1xi1> to vector<64x32xi1>
    %48 = arith.select %47, %44, %45 : vector<64x32xi1>, vector<64x32xbf16>
    %c0_24 = arith.constant 0 : index
    %c16 = arith.constant 16 : index
    %c0_25 = arith.constant 0 : index
    %49 = vector.load %arg1[%c0_24, %c16, %c0_25] : memref<1x96x32xbf16, #tpu.memory_space<vmem>>, vector<1x64x32xbf16>
    %50 = vector.shape_cast %49 : vector<1x64x32xbf16> to vector<64x32xbf16>
    %c0_26 = arith.constant 0 : index
    %c17 = arith.constant 17 : index
    %c0_27 = arith.constant 0 : index
    %51 = vector.load %arg1[%c0_26, %c17, %c0_27] : memref<1x96x32xbf16, #tpu.memory_space<vmem>>, vector<1x64x32xbf16>
    %52 = vector.shape_cast %51 : vector<1x64x32xbf16> to vector<64x32xbf16>
    %cst_28 = arith.constant 0.000000e+00 : bf16
    %53 = vector.broadcast %cst_28 : bf16 to vector<64x32xbf16>
    %54 = vector.shape_cast %28 : vector<64x1xi1> to vector<64x1xi1>
    %55 = vector.broadcast %54 : vector<64x1xi1> to vector<64x32xi1>
    %56 = arith.select %55, %52, %53 : vector<64x32xi1>, vector<64x32xbf16>
    %c0_29 = arith.constant 0 : index
    %c23 = arith.constant 23 : index
    %c0_30 = arith.constant 0 : index
    %57 = vector.load %arg1[%c0_29, %c23, %c0_30] : memref<1x96x32xbf16, #tpu.memory_space<vmem>>, vector<1x64x32xbf16>
    %58 = vector.shape_cast %57 : vector<1x64x32xbf16> to vector<64x32xbf16>
    %cst_31 = arith.constant 0.000000e+00 : bf16
    %59 = vector.broadcast %cst_31 : bf16 to vector<64x32xbf16>
    %60 = vector.shape_cast %26 : vector<64x1xi1> to vector<64x1xi1>
    %61 = vector.broadcast %60 : vector<64x1xi1> to vector<64x32xi1>
    %62 = arith.select %61, %58, %59 : vector<64x32xi1>, vector<64x32xbf16>
    %c0_32 = arith.constant 0 : index
    %c24 = arith.constant 24 : index
    %c0_33 = arith.constant 0 : index
    %63 = vector.load %arg1[%c0_32, %c24, %c0_33] : memref<1x96x32xbf16, #tpu.memory_space<vmem>>, vector<1x64x32xbf16>
    %64 = vector.shape_cast %63 : vector<1x64x32xbf16> to vector<64x32xbf16>
    %c0_34 = arith.constant 0 : index
    %c25 = arith.constant 25 : index
    %c0_35 = arith.constant 0 : index
    %65 = vector.load %arg1[%c0_34, %c25, %c0_35] : memref<1x96x32xbf16, #tpu.memory_space<vmem>>, vector<1x64x32xbf16>
    %66 = vector.shape_cast %65 : vector<1x64x32xbf16> to vector<64x32xbf16>
    %cst_36 = arith.constant 0.000000e+00 : bf16
    %67 = vector.broadcast %cst_36 : bf16 to vector<64x32xbf16>
    %68 = vector.shape_cast %28 : vector<64x1xi1> to vector<64x1xi1>
    %69 = vector.broadcast %68 : vector<64x1xi1> to vector<64x32xi1>
    %70 = arith.select %69, %66, %67 : vector<64x32xi1>, vector<64x32xbf16>
    %71 = tpu.concatenate %34, %36, %42, %48, %50, %56, %62, %64, %70 in 1 : vector<64x32xbf16>, vector<64x32xbf16>, vector<64x32xbf16>, vector<64x32xbf16>, vector<64x32xbf16>, vector<64x32xbf16>, vector<64x32xbf16>, vector<64x32xbf16>, vector<64x32xbf16> -> vector<64x288xbf16>
    %cst_37 = arith.constant dense<0.000000e+00> : vector<64x32xf32>
    %72 = tpu.matmul %71, %5, %cst_37 {dimension_numbers = #tpu.dot_dimension_numbers<[1], [0], [0], [1], [0, 0, 1, 1], [], []>} : vector<64x288xbf16>, vector<288x32xbf16>, vector<64x32xf32> -> vector<64x32xf32>
    %73 = arith.truncf %72 : vector<64x32xf32> to vector<64x32xbf16>
    %c16_38 = arith.constant 16 : index
    %c0_39 = arith.constant 0 : index
    %74 = vector.load %arg7[%c16_38, %c0_39] : memref<96x32xbf16, #tpu.memory_space<vmem>>, vector<64x32xbf16>
    tpu.vector_store %arg7[%c16_38, %c0_39], %73 {strides = array<i32>} : memref<96x32xbf16, #tpu.memory_space<vmem>>, vector<64x32xbf16>,
    %c0_40 = arith.constant 0 : index
    %c0_41 = arith.constant 0 : index
    %75 = vector.load %arg3[%c0_40, %c0_41] : memref<288x32xbf16, #tpu.memory_space<vmem>>, vector<288x32xbf16>
    %76 = tpu.iota {dimensions = array<i32: 0>} : vector<64x1xi32>
    %c0_i32_42 = arith.constant 0 : i32
    %77 = vector.broadcast %c0_i32_42 : i32 to vector<64x1xi32>
    %78 = arith.addi %76, %77 : vector<64x1xi32>
    %c8_i32_43 = arith.constant 8 : i32
    %c0_i32_44 = arith.constant 0 : i32
    %79 = arith.cmpi eq, %c8_i32_43, %c0_i32_44 : i32
    %c1_i32_45 = arith.constant 1 : i32
    %80 = arith.select %79, %c1_i32_45, %c8_i32_43 : i32
    %81 = vector.broadcast %80 : i32 to vector<64x1xi32>
    %82 = arith.remsi %78, %81 : vector<64x1xi32>
    %c0_i32_46 = arith.constant 0 : i32
    %83 = vector.broadcast %c0_i32_46 : i32 to vector<64x1xi32>
    %84 = arith.cmpi ne, %82, %83 : vector<64x1xi32>
    %c0_i32_47 = arith.constant 0 : i32
    %85 = vector.broadcast %c0_i32_47 : i32 to vector<64x1xi32>
    %86 = arith.cmpi slt, %82, %85 : vector<64x1xi32>
    %c0_i32_48 = arith.constant 0 : i32
    %87 = arith.cmpi slt, %80, %c0_i32_48 : i32
    %88 = vector.broadcast %87 : i1 to vector<64x1xi1>
    %89 = vector.broadcast %88 : vector<64x1xi1> to vector<64x1xi1>
    %90 = arith.xori %86, %89 : vector<64x1xi1>
    %91 = arith.andi %90, %84 : vector<64x1xi1>
    %92 = vector.broadcast %80 : i32 to vector<64x1xi32>
    %93 = arith.addi %82, %92 : vector<64x1xi32>
    %94 = arith.select %91, %93, %82 : vector<64x1xi1>, vector<64x1xi32>
    %c0_i32_49 = arith.constant 0 : i32
    %95 = vector.broadcast %c0_i32_49 : i32 to vector<64x1xi32>
    %96 = arith.cmpi ne, %94, %95 : vector<64x1xi32>
    %c7_i32_50 = arith.constant 7 : i32
    %97 = vector.broadcast %c7_i32_50 : i32 to vector<64x1xi32>
    %98 = arith.cmpi ne, %94, %97 : vector<64x1xi32>
    %c7_51 = arith.constant 7 : index
    %c0_52 = arith.constant 0 : index
    %99 = vector.load %arg7[%c7_51, %c0_52] : memref<96x32xbf16, #tpu.memory_space<vmem>>, vector<64x32xbf16>
    %cst_53 = arith.constant 0.000000e+00 : bf16
    %100 = vector.broadcast %cst_53 : bf16 to vector<64x32xbf16>
    %101 = vector.shape_cast %96 : vector<64x1xi1> to vector<64x1xi1>
    %102 = vector.broadcast %101 : vector<64x1xi1> to vector<64x32xi1>
    %103 = arith.select %102, %99, %100 : vector<64x32xi1>, vector<64x32xbf16>
    %c8_54 = arith.constant 8 : index
    %c0_55 = arith.constant 0 : index
    %104 = vector.load %arg7[%c8_54, %c0_55] : memref<96x32xbf16, #tpu.memory_space<vmem>>, vector<64x32xbf16>
    %c9_56 = arith.constant 9 : index
    %c0_57 = arith.constant 0 : index
    %105 = vector.load %arg7[%c9_56, %c0_57] : memref<96x32xbf16, #tpu.memory_space<vmem>>, vector<64x32xbf16>
    %cst_58 = arith.constant 0.000000e+00 : bf16
    %106 = vector.broadcast %cst_58 : bf16 to vector<64x32xbf16>
    %107 = vector.shape_cast %98 : vector<64x1xi1> to vector<64x1xi1>
    %108 = vector.broadcast %107 : vector<64x1xi1> to vector<64x32xi1>
    %109 = arith.select %108, %105, %106 : vector<64x32xi1>, vector<64x32xbf16>
    %c15_59 = arith.constant 15 : index
    %c0_60 = arith.constant 0 : index
    %110 = vector.load %arg7[%c15_59, %c0_60] : memref<96x32xbf16, #tpu.memory_space<vmem>>, vector<64x32xbf16>
    %cst_61 = arith.constant 0.000000e+00 : bf16
    %111 = vector.broadcast %cst_61 : bf16 to vector<64x32xbf16>
    %112 = vector.shape_cast %96 : vector<64x1xi1> to vector<64x1xi1>
    %113 = vector.broadcast %112 : vector<64x1xi1> to vector<64x32xi1>
    %114 = arith.select %113, %110, %111 : vector<64x32xi1>, vector<64x32xbf16>
    %c16_62 = arith.constant 16 : index
    %c0_63 = arith.constant 0 : index
    %115 = vector.load %arg7[%c16_62, %c0_63] : memref<96x32xbf16, #tpu.memory_space<vmem>>, vector<64x32xbf16>
    %c17_64 = arith.constant 17 : index
    %c0_65 = arith.constant 0 : index
    %116 = vector.load %arg7[%c17_64, %c0_65] : memref<96x32xbf16, #tpu.memory_space<vmem>>, vector<64x32xbf16>
    %cst_66 = arith.constant 0.000000e+00 : bf16
    %117 = vector.broadcast %cst_66 : bf16 to vector<64x32xbf16>
    %118 = vector.shape_cast %98 : vector<64x1xi1> to vector<64x1xi1>
    %119 = vector.broadcast %118 : vector<64x1xi1> to vector<64x32xi1>
    %120 = arith.select %119, %116, %117 : vector<64x32xi1>, vector<64x32xbf16>
    %c23_67 = arith.constant 23 : index
    %c0_68 = arith.constant 0 : index
    %121 = vector.load %arg7[%c23_67, %c0_68] : memref<96x32xbf16, #tpu.memory_space<vmem>>, vector<64x32xbf16>
    %cst_69 = arith.constant 0.000000e+00 : bf16
    %122 = vector.broadcast %cst_69 : bf16 to vector<64x32xbf16>
    %123 = vector.shape_cast %96 : vector<64x1xi1> to vector<64x1xi1>
    %124 = vector.broadcast %123 : vector<64x1xi1> to vector<64x32xi1>
    %125 = arith.select %124, %121, %122 : vector<64x32xi1>, vector<64x32xbf16>
    %c24_70 = arith.constant 24 : index
    %c0_71 = arith.constant 0 : index
    %126 = vector.load %arg7[%c24_70, %c0_71] : memref<96x32xbf16, #tpu.memory_space<vmem>>, vector<64x32xbf16>
    %c25_72 = arith.constant 25 : index
    %c0_73 = arith.constant 0 : index
    %127 = vector.load %arg7[%c25_72, %c0_73] : memref<96x32xbf16, #tpu.memory_space<vmem>>, vector<64x32xbf16>
    %cst_74 = arith.constant 0.000000e+00 : bf16
    %128 = vector.broadcast %cst_74 : bf16 to vector<64x32xbf16>
    %129 = vector.shape_cast %98 : vector<64x1xi1> to vector<64x1xi1>
    %130 = vector.broadcast %129 : vector<64x1xi1> to vector<64x32xi1>
    %131 = arith.select %130, %127, %128 : vector<64x32xi1>, vector<64x32xbf16>
    %132 = tpu.concatenate %103, %104, %109, %114, %115, %120, %125, %126, %131 in 1 : vector<64x32xbf16>, vector<64x32xbf16>, vector<64x32xbf16>, vector<64x32xbf16>, vector<64x32xbf16>, vector<64x32xbf16>, vector<64x32xbf16>, vector<64x32xbf16>, vector<64x32xbf16> -> vector<64x288xbf16>
    %cst_75 = arith.constant dense<0.000000e+00> : vector<64x32xf32>
    %133 = tpu.matmul %132, %75, %cst_75 {dimension_numbers = #tpu.dot_dimension_numbers<[1], [0], [0], [1], [0, 0, 1, 1], [], []>} : vector<64x288xbf16>, vector<288x32xbf16>, vector<64x32xf32> -> vector<64x32xf32>
    %134 = arith.truncf %133 : vector<64x32xf32> to vector<64x32xbf16>
    %c16_76 = arith.constant 16 : index
    %c0_77 = arith.constant 0 : index
    %135 = vector.load %arg8[%c16_76, %c0_77] : memref<96x32xbf16, #tpu.memory_space<vmem>>, vector<64x32xbf16>
    tpu.vector_store %arg8[%c16_76, %c0_77], %134 {strides = array<i32>} : memref<96x32xbf16, #tpu.memory_space<vmem>>, vector<64x32xbf16>,
    %c0_78 = arith.constant 0 : index
    %c0_79 = arith.constant 0 : index
    %136 = vector.load %arg4[%c0_78, %c0_79] : memref<288x4xbf16, #tpu.memory_space<vmem>>, vector<288x4xbf16>
    %c0_80 = arith.constant 0 : index
    %c0_81 = arith.constant 0 : index
    %137 = vector.load %arg5[%c0_80, %c0_81] : memref<1x4xf32, #tpu.memory_space<vmem>>, vector<1x4xf32>
    %138 = tpu.iota {dimensions = array<i32: 0>} : vector<64x1xi32>
    %c0_i32_82 = arith.constant 0 : i32
    %139 = vector.broadcast %c0_i32_82 : i32 to vector<64x1xi32>
    %140 = arith.addi %138, %139 : vector<64x1xi32>
    %c8_i32_83 = arith.constant 8 : i32
    %c0_i32_84 = arith.constant 0 : i32
    %141 = arith.cmpi eq, %c8_i32_83, %c0_i32_84 : i32
    %c1_i32_85 = arith.constant 1 : i32
    %142 = arith.select %141, %c1_i32_85, %c8_i32_83 : i32
    %143 = vector.broadcast %142 : i32 to vector<64x1xi32>
    %144 = arith.remsi %140, %143 : vector<64x1xi32>
    %c0_i32_86 = arith.constant 0 : i32
    %145 = vector.broadcast %c0_i32_86 : i32 to vector<64x1xi32>
    %146 = arith.cmpi ne, %144, %145 : vector<64x1xi32>
    %c0_i32_87 = arith.constant 0 : i32
    %147 = vector.broadcast %c0_i32_87 : i32 to vector<64x1xi32>
    %148 = arith.cmpi slt, %144, %147 : vector<64x1xi32>
    %c0_i32_88 = arith.constant 0 : i32
    %149 = arith.cmpi slt, %142, %c0_i32_88 : i32
    %150 = vector.broadcast %149 : i1 to vector<64x1xi1>
    %151 = vector.broadcast %150 : vector<64x1xi1> to vector<64x1xi1>
    %152 = arith.xori %148, %151 : vector<64x1xi1>
    %153 = arith.andi %152, %146 : vector<64x1xi1>
    %154 = vector.broadcast %142 : i32 to vector<64x1xi32>
    %155 = arith.addi %144, %154 : vector<64x1xi32>
    %156 = arith.select %153, %155, %144 : vector<64x1xi1>, vector<64x1xi32>
    %c0_i32_89 = arith.constant 0 : i32
    %157 = vector.broadcast %c0_i32_89 : i32 to vector<64x1xi32>
    %158 = arith.cmpi ne, %156, %157 : vector<64x1xi32>
    %c7_i32_90 = arith.constant 7 : i32
    %159 = vector.broadcast %c7_i32_90 : i32 to vector<64x1xi32>
    %160 = arith.cmpi ne, %156, %159 : vector<64x1xi32>
    %c7_91 = arith.constant 7 : index
    %c0_92 = arith.constant 0 : index
    %161 = vector.load %arg8[%c7_91, %c0_92] : memref<96x32xbf16, #tpu.memory_space<vmem>>, vector<64x32xbf16>
    %cst_93 = arith.constant 0.000000e+00 : bf16
    %162 = vector.broadcast %cst_93 : bf16 to vector<64x32xbf16>
    %163 = vector.shape_cast %158 : vector<64x1xi1> to vector<64x1xi1>
    %164 = vector.broadcast %163 : vector<64x1xi1> to vector<64x32xi1>
    %165 = arith.select %164, %161, %162 : vector<64x32xi1>, vector<64x32xbf16>
    %c8_94 = arith.constant 8 : index
    %c0_95 = arith.constant 0 : index
    %166 = vector.load %arg8[%c8_94, %c0_95] : memref<96x32xbf16, #tpu.memory_space<vmem>>, vector<64x32xbf16>
    %c9_96 = arith.constant 9 : index
    %c0_97 = arith.constant 0 : index
    %167 = vector.load %arg8[%c9_96, %c0_97] : memref<96x32xbf16, #tpu.memory_space<vmem>>, vector<64x32xbf16>
    %cst_98 = arith.constant 0.000000e+00 : bf16
    %168 = vector.broadcast %cst_98 : bf16 to vector<64x32xbf16>
    %169 = vector.shape_cast %160 : vector<64x1xi1> to vector<64x1xi1>
    %170 = vector.broadcast %169 : vector<64x1xi1> to vector<64x32xi1>
    %171 = arith.select %170, %167, %168 : vector<64x32xi1>, vector<64x32xbf16>
    %c15_99 = arith.constant 15 : index
    %c0_100 = arith.constant 0 : index
    %172 = vector.load %arg8[%c15_99, %c0_100] : memref<96x32xbf16, #tpu.memory_space<vmem>>, vector<64x32xbf16>
    %cst_101 = arith.constant 0.000000e+00 : bf16
    %173 = vector.broadcast %cst_101 : bf16 to vector<64x32xbf16>
    %174 = vector.shape_cast %158 : vector<64x1xi1> to vector<64x1xi1>
    %175 = vector.broadcast %174 : vector<64x1xi1> to vector<64x32xi1>
    %176 = arith.select %175, %172, %173 : vector<64x32xi1>, vector<64x32xbf16>
    %c16_102 = arith.constant 16 : index
    %c0_103 = arith.constant 0 : index
    %177 = vector.load %arg8[%c16_102, %c0_103] : memref<96x32xbf16, #tpu.memory_space<vmem>>, vector<64x32xbf16>
    %c17_104 = arith.constant 17 : index
    %c0_105 = arith.constant 0 : index
    %178 = vector.load %arg8[%c17_104, %c0_105] : memref<96x32xbf16, #tpu.memory_space<vmem>>, vector<64x32xbf16>
    %cst_106 = arith.constant 0.000000e+00 : bf16
    %179 = vector.broadcast %cst_106 : bf16 to vector<64x32xbf16>
    %180 = vector.shape_cast %160 : vector<64x1xi1> to vector<64x1xi1>
    %181 = vector.broadcast %180 : vector<64x1xi1> to vector<64x32xi1>
    %182 = arith.select %181, %178, %179 : vector<64x32xi1>, vector<64x32xbf16>
    %c23_107 = arith.constant 23 : index
    %c0_108 = arith.constant 0 : index
    %183 = vector.load %arg8[%c23_107, %c0_108] : memref<96x32xbf16, #tpu.memory_space<vmem>>, vector<64x32xbf16>
    %cst_109 = arith.constant 0.000000e+00 : bf16
    %184 = vector.broadcast %cst_109 : bf16 to vector<64x32xbf16>
    %185 = vector.shape_cast %158 : vector<64x1xi1> to vector<64x1xi1>
    %186 = vector.broadcast %185 : vector<64x1xi1> to vector<64x32xi1>
    %187 = arith.select %186, %183, %184 : vector<64x32xi1>, vector<64x32xbf16>
    %c24_110 = arith.constant 24 : index
    %c0_111 = arith.constant 0 : index
    %188 = vector.load %arg8[%c24_110, %c0_111] : memref<96x32xbf16, #tpu.memory_space<vmem>>, vector<64x32xbf16>
    %c25_112 = arith.constant 25 : index
    %c0_113 = arith.constant 0 : index
    %189 = vector.load %arg8[%c25_112, %c0_113] : memref<96x32xbf16, #tpu.memory_space<vmem>>, vector<64x32xbf16>
    %cst_114 = arith.constant 0.000000e+00 : bf16
    %190 = vector.broadcast %cst_114 : bf16 to vector<64x32xbf16>
    %191 = vector.shape_cast %160 : vector<64x1xi1> to vector<64x1xi1>
    %192 = vector.broadcast %191 : vector<64x1xi1> to vector<64x32xi1>
    %193 = arith.select %192, %189, %190 : vector<64x32xi1>, vector<64x32xbf16>
    %194 = tpu.concatenate %165, %166, %171, %176, %177, %182, %187, %188, %193 in 1 : vector<64x32xbf16>, vector<64x32xbf16>, vector<64x32xbf16>, vector<64x32xbf16>, vector<64x32xbf16>, vector<64x32xbf16>, vector<64x32xbf16>, vector<64x32xbf16>, vector<64x32xbf16> -> vector<64x288xbf16>
    %cst_115 = arith.constant dense<0.000000e+00> : vector<64x4xf32>
    %195 = tpu.matmul %194, %136, %cst_115 {dimension_numbers = #tpu.dot_dimension_numbers<[1], [0], [0], [1], [0, 0, 1, 1], [], []>} : vector<64x288xbf16>, vector<288x4xbf16>, vector<64x4xf32> -> vector<64x4xf32>
    %196 = vector.broadcast %137 : vector<1x4xf32> to vector<64x4xf32>
    %197 = arith.addf %195, %196 : vector<64x4xf32>
    %cst_116 = arith.constant 0.000000e+00 : f32
    %198 = vector.broadcast %cst_116 : f32 to vector<64x4xf32>
    %199 = arith.subf %198, %197 : vector<64x4xf32>
    %200 = math.exp %199 : vector<64x4xf32>
    %cst_117 = arith.constant 1.000000e+00 : f32
    %201 = vector.broadcast %cst_117 : f32 to vector<64x4xf32>
    %202 = arith.addf %201, %200 : vector<64x4xf32>
    %cst_118 = arith.constant 1.000000e+00 : f32
    %203 = vector.broadcast %cst_118 : f32 to vector<64x4xf32>
    %204 = arith.divf %203, %202 : vector<64x4xf32>
    %c0_119 = arith.constant 0 : index
    %c0_120 = arith.constant 0 : index
    %c0_121 = arith.constant 0 : index
    %205 = vector.load %arg6[%c0_119, %c0_120, %c0_121] : memref<1x64x4xf32, #tpu.memory_space<vmem>>, vector<1x64x4xf32>
    %206 = vector.shape_cast %205 : vector<1x64x4xf32> to vector<64x4xf32>
    %207 = vector.shape_cast %204 : vector<64x4xf32> to vector<1x64x4xf32>
    tpu.vector_store %arg6[%c0_119, %c0_120, %c0_121], %207 {strides = array<i32>} : memref<1x64x4xf32, #tpu.memory_space<vmem>>, vector<1x64x4xf32>,
    return
  }
  func.func @transform_0(%arg0: i32) -> (i32, i32, i32) {
    %c0_i32 = arith.constant 0 : i32
    %c0_i32_0 = arith.constant 0 : i32
    %c0_i32_1 = arith.constant 0 : i32
    return %arg0, %c0_i32, %c0_i32_0 : i32, i32, i32
  }
  func.func @transform_1(%arg0: i32) -> (i32, i32) {
    %c0_i32 = arith.constant 0 : i32
    %c0_i32_0 = arith.constant 0 : i32
    %c0_i32_1 = arith.constant 0 : i32
    return %c0_i32, %c0_i32_0 : i32, i32
  }
  func.func @transform_2(%arg0: i32) -> (i32, i32) {
    %c0_i32 = arith.constant 0 : i32
    %c0_i32_0 = arith.constant 0 : i32
    %c0_i32_1 = arith.constant 0 : i32
    return %c0_i32, %c0_i32_0 : i32, i32
  }
  func.func @transform_3(%arg0: i32) -> (i32, i32) {
    %c0_i32 = arith.constant 0 : i32
    %c0_i32_0 = arith.constant 0 : i32
    %c0_i32_1 = arith.constant 0 : i32
    return %c0_i32, %c0_i32_0 : i32, i32
  }
  func.func @transform_4(%arg0: i32) -> (i32, i32) {
    %c0_i32 = arith.constant 0 : i32
    %c0_i32_0 = arith.constant 0 : i32
    %c0_i32_1 = arith.constant 0 : i32
    return %c0_i32, %c0_i32_0 : i32, i32
  }
  func.func @transform_5(%arg0: i32) -> (i32, i32, i32) {
    %c0_i32 = arith.constant 0 : i32
    %c0_i32_0 = arith.constant 0 : i32
    %c0_i32_1 = arith.constant 0 : i32
    return %arg0, %c0_i32, %c0_i32_0 : i32, i32, i32
  }
}

</mosaic_0001>

<llo_original>
// kernel: tile.18
$region0: #{tile.18}
  #allocation0 [shape = 's32[1]{0}', space=sflag, size = 0x4, scoped, tag = 'scoped memory for tile.18']
  %s0 = inlined_call_operand.vmem [shape: f32[32], index: 0, kind: input, shape index: {}]
  %s1 = inlined_call_operand.vmem [shape: f32[4,32], index: 1, kind: output, shape index: {}]
  // Predicated region
  $region2: #{tile.18} parent=0 // pred_check
    _
  $region3: #{tile.18} parent=0 // pred_check_branch
    %3 = sbr.rel (0) target = $region5
  $region4: #{tile.18} parent=0 // pred_region
    _
  $region5: #{tile.18} parent=0 // pred_fallthru
    _
  %v4 = vld [vmem:[%s0] ss:$0 sm:$0xff]
  %5 = vst [vmem:[%s1] sm:$0xf] %v4

// kernel: tile.19
$region0: #{tile.19}
  %s0 = inlined_call_operand.vmem [shape: f32[4,32], index: 0, kind: input, shape index: {}]
  %s1 = inlined_call_operand.vmem [shape: f32[1,128], index: 1, kind: output, shape index: {}]
  $region1: #{tile.19} parent=0
    #allocation0 [shape = 'u8[4096]{0}', space=vmem, size = 0x1000, scoped, tag = 'scoped mem for output reshape']
    #allocation1 [shape = 'u8[4096]{0}', space=vmem, size = 0x1000, scoped, tag = 'scoped mem for input reshape']
    %s3 = sshll.u32 1, 4
    %s4 = ssub.s32 %s3, 1
    %v5 = vld [vmem:[%s0] sm:%s4]
    %6 = vst [vmem:[#allocation1] sm:%s4] %v5
    %v7 = vld [vmem:[#allocation1] sm:$0x1]
    %vm8 = vcmask 261120
    %9 = vst.msk [vmem:[#allocation0] sm:$0x1] %vm8, %v7
    %s10 = scalar_lea.vmem [#allocation1], 3
    %v11 = vld [vmem:[%s10] sm:$0x1]
    %12 = vrot.lane.b32.xlu0 %v11, 96
    %v13 = vpop.permute.xlu0 %12
    %vm14 = vcmask 1048320
    %15 = vst.msk [vmem:[#allocation0] sm:$0x1] %vm14, %v13
    %s16 = scalar_lea.vmem [#allocation1], 2
    %v17 = vld [vmem:[%s16] sm:$0x1]
    %18 = vrot.lane.b32.xlu0 %v17, 64
    %v19 = vpop.permute.xlu0 %18
    %vm20 = vcmask 785920
    %21 = vst.msk [vmem:[#allocation0] sm:$0x1] %vm20, %v19
    %s22 = scalar_lea.vmem [#allocation1], 1
    %v23 = vld [vmem:[%s22] sm:$0x1]
    %24 = vrot.lane.b32.xlu0 %v23, 32
    %v25 = vpop.permute.xlu0 %24
    %vm26 = vcmask 523520
    %27 = vst.msk [vmem:[#allocation0] sm:$0x1] %vm26, %v25
    %s29 = sshll.u32 1, 1
    %s30 = ssub.s32 %s29, 1
    %v32 = vld [vmem:[#allocation0] sm:%s30]
    %s33 = sshll.u32 1, 1
    %s34 = ssub.s32 %s33, 1
    %35 = vst [vmem:[%s1] sm:%s34] %v32

// kernel: decoder_forward.4
$region0: #{decoder_forward.4}
  #allocation0 [shape = 'u32[]', space=smem, size = 0x4, offset = 0x4, fixed_abs, tag = 'smem constant byte address 0x4 - core index']
  #allocation1 [shape = 'u32[144,128]{1,0:T(1,128)}', space=vmem, size = 0x12000, scoped, tag = 'internal scratch']
  %s0 = inlined_call_operand.vmem [shape: f32[2,19], index: 0, kind: input, shape index: {}]
  %s1 = inlined_call_operand.vmem [shape: f32[19,4], index: 1, kind: input, shape index: {}]
  %s2 = inlined_call_operand.vmem [shape: f32[1,4], index: 2, kind: input, shape index: {}]
  %s3 = inlined_call_operand.vmem [shape: f32[2,4], index: 3, kind: output, shape index: {}]
  %s4 = sld [smem:[#allocation0]]
  $region22: #{decoder_forward.4} parent=0
    _
  %s6 = ssub.s32 1, %s4
  %s7 = scalar_select 0, %s6, %s4
  // Predicated region
  $region2: #{decoder_forward.4} parent=0 // pred_check
    _
  $region3: #{decoder_forward.4} parent=0 // pred_check_branch
    %9 = sbr.rel (0) target = $region5
  $region4: #{decoder_forward.4} parent=0 // pred_region
    _
  $region5: #{decoder_forward.4} parent=0 // pred_fallthru
    _
  // Predicated region
  $region6: #{decoder_forward.4} parent=0 // pred_check
    _
  $region7: #{decoder_forward.4} parent=0 // pred_check_branch
    %11 = sbr.rel (0) target = $region9
  $region8: #{decoder_forward.4} parent=0 // pred_region
    _
  $region9: #{decoder_forward.4} parent=0 // pred_fallthru
    _
  // Predicated region
  $region10: #{decoder_forward.4} parent=0 // pred_check
    _
  $region11: #{decoder_forward.4} parent=0 // pred_check_branch
    %13 = sbr.rel (0) target = $region13
  $region12: #{decoder_forward.4} parent=0 // pred_region
    _
  $region13: #{decoder_forward.4} parent=0 // pred_fallthru
    _
  %v14 = vld [vmem:[%s0] sm:$0x3]
  %v15 = vld [vmem:[%s1] sm:$0xff]
  %v16 = vld [vmem:[%s1 + $0x8] sm:$0xff]
  %v17 = vld [vmem:[%s1 + $0x10] sm:$0x7]
  %v18 = vld [vmem:[%s2] sm:$0x1]
  %v20 = vlaneseq
  %v21 = vshrl.u32 %v20, 7
  %v22 = vsub.s32 0, %v21
  %v23 = vrot.slane %v18, %v22
  %vm25 = vcmask 154624
  %v27 = vsel %vm25, %v14, 0
  %vm29 = vcmask 1042432
  %v31 = vsel %vm29, %v17, 0
  %33 = vmatprep.subr.mxu0 0.0
  %34 = vmatpush1.msra.mxu0 0.0
  %35 = vmatprep.subr.mxu0 0.0
  %36 = vmatpush1.msra.mxu0 0.0
  %37 = vmatprep.subr.mxu0 0.0
  %38 = vmatpush1.msra.mxu0 0.0
  %39 = vmatprep.subr.mxu0 0.0
  %40 = vmatpush1.msra.mxu0 0.0
  %41 = vmatprep.subr.mxu0 0.0
  %42 = vmatpush1.msra.mxu0 0.0
  %43 = vmatprep.subr.mxu0 0.0
  %44 = vmatpush1.msra.mxu0 0.0
  %45 = vmatprep.subr.mxu0 0.0
  %46 = vmatpush1.msra.mxu0 0.0
  %47 = vmatprep.subr.mxu0 0.0
  %48 = vmatpush1.msra.mxu0 0.0
  %49 = vmatprep.subr.mxu0 0.0
  %50 = vmatpush1.msra.mxu0 0.0
  %51 = vmatprep.subr.mxu0 0.0
  %52 = vmatpush1.msra.mxu0 0.0
  %53 = vmatprep.subr.mxu0 0.0
  %54 = vmatpush1.msra.mxu0 0.0
  %55 = vmatprep.subr.mxu0 0.0
  %56 = vmatpush1.msra.mxu0 0.0
  %57 = vmatprep.subr.mxu0 0.0
  %58 = vmatpush1.msra.mxu0 0.0
  %59 = vmatprep.subr.mxu0 0.0
  %60 = vmatpush1.msra.mxu0 %v31
  %61 = vmatprep.subr.mxu0 0.0
  %62 = vmatpush1.msra.mxu0 %v16
  %63 = vmatprep.subr.mxu0 0.0
  %64 = vmatpush1.msra.mxu0 %v15
  %65 = vmatprep.subr.mxu0 0.0
  %66 = vmatpush2.msra.mxu0 0.0
  %67 = vmatprep.subr.mxu0 0.0
  %68 = vmatpush2.msra.mxu0 0.0
  %69 = vmatprep.subr.mxu0 0.0
  %70 = vmatpush2.msra.mxu0 0.0
  %71 = vmatprep.subr.mxu0 0.0
  %72 = vmatpush2.msra.mxu0 0.0
  %73 = vmatprep.subr.mxu0 0.0
  %74 = vmatpush2.msra.mxu0 0.0
  %75 = vmatprep.subr.mxu0 0.0
  %76 = vmatpush2.msra.mxu0 0.0
  %77 = vmatprep.subr.mxu0 0.0
  %78 = vmatpush2.msra.mxu0 0.0
  %79 = vmatprep.subr.mxu0 0.0
  %80 = vmatpush2.msra.mxu0 0.0
  %81 = vmatprep.subr.mxu0 0.0
  %82 = vmatpush2.msra.mxu0 0.0
  %83 = vmatprep.subr.mxu0 0.0
  %84 = vmatpush2.msra.mxu0 0.0
  %85 = vmatprep.subr.mxu0 0.0
  %86 = vmatpush2.msra.mxu0 0.0
  %87 = vmatprep.subr.mxu0 0.0
  %88 = vmatpush2.msra.mxu0 0.0
  %89 = vmatprep.subr.mxu0 0.0
  %90 = vmatpush2.msra.mxu0 0.0
  %91 = vmatprep.subr.mxu0 0.0
  %92 = vmatpush2.msra.mxu0 0.0
  %93 = vmatprep.subr.mxu0 0.0
  %94 = vmatpush2.msra.mxu0 0.0
  %95 = vmatprep.subr.mxu0 0.0
  %96 = vmatpush2.msra.mxu0 0.0
  %97 = vmatprep.mubr.f32.mxu0 0.0
  %98 = vmatmul.mubr.f32.gmra.mxu0 %v27
  %v99 = vpop.f32.mrf.mxu0
  %v100 = vadd.f32 %v23, %v99
  %v101 = vpop.f32.mrf.mxu0
  %102 = vdwg.mxu0
  %vm103 = vcmp.gt.f32.partialorder %v100, 0.0
  %v104 = vmin.f32 %v100, 0.0
  %v105 = vmul.f32 %v104, 1.442695
  %v106 = vpow.pop %v105
  %v107 = vsub.f32 %v106, 1.0
  %v108 = vsel %vm103, %v100, %v107
  %vm109 = vcmask 25600
  %110 = vst.msk [vmem:[%s3] sm:$0x3] %vm109, %v108
  // Predicated region
  $region14: #{decoder_forward.4} parent=0 // pred_check
    _
  $region15: #{decoder_forward.4} parent=0 // pred_check_branch
    %112 = sbr.rel (0) target = $region17
  $region16: #{decoder_forward.4} parent=0 // pred_region
    _
  $region17: #{decoder_forward.4} parent=0 // pred_fallthru
    _
  // Predicated region
  $region18: #{decoder_forward.4} parent=0 // pred_check
    _
  $region19: #{decoder_forward.4} parent=0 // pred_check_branch
    %114 = sbr.rel (0) target = $region21
  $region20: #{decoder_forward.4} parent=0 // pred_region
    _
  $region21: #{decoder_forward.4} parent=0 // pred_fallthru
    _

// kernel: decoder_forward.5
$region0: #{decoder_forward.5}
  #allocation0 [shape = 'u32[]', space=smem, size = 0x4, offset = 0x4, fixed_abs, tag = 'smem constant byte address 0x4 - core index']
  #allocation1 [shape = 'u32[144,128]{1,0:T(1,128)}', space=vmem, size = 0x12000, scoped, tag = 'internal scratch']
  %s0 = inlined_call_operand.vmem [shape: f32[2,12,1], index: 0, kind: input, shape index: {}]
  %s1 = inlined_call_operand.vmem [shape: f32[9,128], index: 1, kind: input, shape index: {}]
  %s2 = inlined_call_operand.vmem [shape: f32[1,128], index: 2, kind: input, shape index: {}]
  %s3 = inlined_call_operand.vmem [shape: bf16[2,4,128], index: 3, kind: output, shape index: {0}]
  %s4 = inlined_call_operand.vmem [shape: f32[2,1,128], index: 4, kind: output, shape index: {1}]
  %s5 = inlined_call_operand.vmem [shape: f32[2,1,128], index: 5, kind: output, shape index: {2}]
  %6 = xla_tuple %s3, %s4, %s5
  %s7 = sld [smem:[#allocation0]]
  $region61: #{decoder_forward.5} parent=0
    _
  %s9 = ssub.s32 1, %s7
  %s10 = scalar_select 0, %s9, %s7
  loop: start=0, step=1, limit=4
  $region2: #{decoder_forward.5} parent=0 // loop_pre_header
    _
  $region3: #{decoder_forward.5} parent=0 // loop_header
    %s12 = sphi 0, %s16
    %p13 = scmp.ge.s32.totalorder %s12, 4
    %s22 = sphi 0, %s24
    %s25 = sphi 0, %s22
    %s26 = sphi 0, %s25
    %s42 = sphi 0, %s26
    %s46 = sphi 0, %s46
    %s48 = sphi 0, %s46
    %s49 = sphi 0, %s48
    %s63 = sphi 0, %s49
    %s67 = sphi 0, %s67
    %s69 = sphi 0, %s67
    %s70 = sphi 0, %s69
    %s84 = sphi 0, %s70
    %s90 = sphi 0, %s92
    %s93 = sphi 0, %s90
    %s94 = sphi 0, %s93
    %s110 = sphi 0, %s94
    %s116 = sphi 0, %s118
    %s119 = sphi 0, %s116
    %s120 = sphi 0, %s119
    %s136 = sphi 0, %s120
    %s142 = sphi 0, %s144
    %s145 = sphi 0, %s142
    %s146 = sphi 0, %s145
    %s162 = sphi 0, %s146
  $region4: #{decoder_forward.5} parent=0 // loop_header_branch
    %15 = sbr.rel (%p13) target = $region8
  $region5: #{decoder_forward.5} parent=0 // loop_body
    %s17 = ssub.s32 %s12, 1
    %s18 = ssub.s32 %s12, 2
    %s19 = sadd.s32 %s12, 1
    %s20 = ssub.s32 %s12, %s19
    %p21 = scmp.eq.s32.totalorder %s20, 0
    %s23 = sadd.s32 %s22, 1
    %s24 = scalar_select %p21, %s22, %s23
    %p27 = pneg %p21
    %p28 = scmp.eq.s32.totalorder %s12, 1
    %p29 = por %p27, %p28
    %p30 = scmp.ne.s32.totalorder %s22, %s25
    %p31 = scmp.eq.s32.totalorder %s12, 0
    %p32 = por %p30, %p31
    %p33 = scmp.ne.s32.totalorder %s22, %s25
    %p34 = scmp.eq.s32.totalorder %s17, 1
    %p35 = por %p33, %p34
    %p36 = scmp.ne.s32.totalorder %s25, %s26
    %p37 = scmp.eq.s32.totalorder %s17, 0
    %p38 = por %p36, %p37
    %p39 = scmp.ne.s32.totalorder %s25, %s26
    %p40 = scmp.eq.s32.totalorder %s18, 1
    %p41 = por %p39, %p40
    %p43 = scmp.ne.s32.totalorder %s26, %s42
    %p44 = scmp.eq.s32.totalorder %s18, 0
    %p45 = por %p43, %p44
    %s47 = sadd.s32 %s46, 1
    %p50 = scmp.eq.s32.totalorder %s12, 1
    %p51 = scmp.ne.s32.totalorder %s46, %s48
    %p52 = scmp.eq.s32.totalorder %s12, 0
    %p53 = por %p51, %p52
    %p54 = scmp.ne.s32.totalorder %s46, %s48
    %p55 = scmp.eq.s32.totalorder %s17, 1
    %p56 = por %p54, %p55
    %p57 = scmp.ne.s32.totalorder %s48, %s49
    %p58 = scmp.eq.s32.totalorder %s17, 0
    %p59 = por %p57, %p58
    %p60 = scmp.ne.s32.totalorder %s48, %s49
    %p61 = scmp.eq.s32.totalorder %s18, 1
    %p62 = por %p60, %p61
    %p64 = scmp.ne.s32.totalorder %s49, %s63
    %p65 = scmp.eq.s32.totalorder %s18, 0
    %p66 = por %p64, %p65
    %s68 = sadd.s32 %s67, 1
    %p71 = scmp.eq.s32.totalorder %s12, 1
    %p72 = scmp.ne.s32.totalorder %s67, %s69
    %p73 = scmp.eq.s32.totalorder %s12, 0
    %p74 = por %p72, %p73
    %p75 = scmp.ne.s32.totalorder %s67, %s69
    %p76 = scmp.eq.s32.totalorder %s17, 1
    %p77 = por %p75, %p76
    %p78 = scmp.ne.s32.totalorder %s69, %s70
    %p79 = scmp.eq.s32.totalorder %s17, 0
    %p80 = por %p78, %p79
    %p81 = scmp.ne.s32.totalorder %s69, %s70
    %p82 = scmp.eq.s32.totalorder %s18, 1
    %p83 = por %p81, %p82
    %p85 = scmp.ne.s32.totalorder %s70, %s84
    %p86 = scmp.eq.s32.totalorder %s18, 0
    %p87 = por %p85, %p86
    %s88 = ssub.s32 %s12, %s19
    %p89 = scmp.eq.s32.totalorder %s88, 0
    %s91 = sadd.s32 %s90, 1
    %s92 = scalar_select %p89, %s90, %s91
    %p95 = pneg %p89
    %p96 = scmp.eq.s32.totalorder %s12, 1
    %p97 = por %p95, %p96
    %p98 = scmp.ne.s32.totalorder %s90, %s93
    %p99 = scmp.eq.s32.totalorder %s12, 0
    %p100 = por %p98, %p99
    %p101 = scmp.ne.s32.totalorder %s90, %s93
    %p102 = scmp.eq.s32.totalorder %s17, 1
    %p103 = por %p101, %p102
    %p104 = scmp.ne.s32.totalorder %s93, %s94
    %p105 = scmp.eq.s32.totalorder %s17, 0
    %p106 = por %p104, %p105
    %p107 = scmp.ne.s32.totalorder %s93, %s94
    %p108 = scmp.eq.s32.totalorder %s18, 1
    %p109 = por %p107, %p108
    %p111 = scmp.ne.s32.totalorder %s94, %s110
    %p112 = scmp.eq.s32.totalorder %s18, 0
    %p113 = por %p111, %p112
    %s114 = ssub.s32 %s12, %s19
    %p115 = scmp.eq.s32.totalorder %s114, 0
    %s117 = sadd.s32 %s116, 1
    %s118 = scalar_select %p115, %s116, %s117
    %p121 = pneg %p115
    %p122 = scmp.eq.s32.totalorder %s12, 1
    %p123 = por %p121, %p122
    %p124 = scmp.ne.s32.totalorder %s116, %s119
    %p125 = scmp.eq.s32.totalorder %s12, 0
    %p126 = por %p124, %p125
    %p127 = scmp.ne.s32.totalorder %s116, %s119
    %p128 = scmp.eq.s32.totalorder %s17, 1
    %p129 = por %p127, %p128
    %p130 = scmp.ne.s32.totalorder %s119, %s120
    %p131 = scmp.eq.s32.totalorder %s17, 0
    %p132 = por %p130, %p131
    %p133 = scmp.ne.s32.totalorder %s119, %s120
    %p134 = scmp.eq.s32.totalorder %s18, 1
    %p135 = por %p133, %p134
    %p137 = scmp.ne.s32.totalorder %s120, %s136
    %p138 = scmp.eq.s32.totalorder %s18, 0
    %p139 = por %p137, %p138
    %s140 = ssub.s32 %s12, %s19
    %p141 = scmp.eq.s32.totalorder %s140, 0
    %s143 = sadd.s32 %s142, 1
    %s144 = scalar_select %p141, %s142, %s143
    %p147 = pneg %p141
    %p148 = scmp.eq.s32.totalorder %s12, 1
    %p149 = por %p147, %p148
    %p150 = scmp.ne.s32.totalorder %s142, %s145
    %p151 = scmp.eq.s32.totalorder %s12, 0
    %p152 = por %p150, %p151
    %p153 = scmp.ne.s32.totalorder %s142, %s145
    %p154 = scmp.eq.s32.totalorder %s17, 1
    %p155 = por %p153, %p154
    %p156 = scmp.ne.s32.totalorder %s145, %s146
    %p157 = scmp.eq.s32.totalorder %s17, 0
    %p158 = por %p156, %p157
    %p159 = scmp.ne.s32.totalorder %s145, %s146
    %p160 = scmp.eq.s32.totalorder %s18, 1
    %p161 = por %p159, %p160
    %p163 = scmp.ne.s32.totalorder %s146, %s162
    %p164 = scmp.eq.s32.totalorder %s18, 0
    %p165 = por %p163, %p164
    %p166 = scmp.le.s32.totalorder 1, %s12
    %p167 = scmp.lt.s32.totalorder %s12, 3
    %p168 = pnand %p166, %p167
    %p169 = pneg %p168
    // Predicated region
    $region9: #{decoder_forward.5} parent=5 // pred_check
      _
    $region10: #{decoder_forward.5} parent=5 // pred_check_branch
      %171 = sbr.rel (%p168) target = $region12
    $region11: #{decoder_forward.5} parent=5 // pred_region
      %s172 = ssub.s32 %s12, 1
      // Predicated region
      $region13: #{decoder_forward.5} parent=11 // pred_check
        %p173 = pneg %p59
      $region14: #{decoder_forward.5} parent=11 // pred_check_branch
        %175 = sbr.rel (%p173) target = $region16
      $region15: #{decoder_forward.5} parent=11 // pred_region
        _
      $region16: #{decoder_forward.5} parent=11 // pred_fallthru
        _
      // Predicated region
      $region17: #{decoder_forward.5} parent=11 // pred_check
        %p176 = pneg %p80
      $region18: #{decoder_forward.5} parent=11 // pred_check_branch
        %178 = sbr.rel (%p176) target = $region20
      $region19: #{decoder_forward.5} parent=11 // pred_region
        _
      $region20: #{decoder_forward.5} parent=11 // pred_fallthru
        _
    $region12: #{decoder_forward.5} parent=5 // pred_fallthru
      _
    %p179 = scmp.lt.s32.totalorder %s12, 2
    // Predicated region
    $region21: #{decoder_forward.5} parent=5 // pred_check
      %p180 = pneg %p179
    $region22: #{decoder_forward.5} parent=5 // pred_check_branch
      %182 = sbr.rel (%p180) target = $region24
    $region23: #{decoder_forward.5} parent=5 // pred_region
      // Predicated region
      $region25: #{decoder_forward.5} parent=23 // pred_check
        %p183 = pneg %p32
      $region26: #{decoder_forward.5} parent=23 // pred_check_branch
        %185 = sbr.rel (%p183) target = $region28
      $region27: #{decoder_forward.5} parent=23 // pred_region
        %p186 = scmp.lt.s32.totalorder %s12, 1
        %s187 = scalar_select %p186, %s12, 1
        %s188 = smul.addr %s187, 2
        %s189 = smul.addr %s188, 8
        %s190 = scalar_lea.vmem %s0, %s189
      $region28: #{decoder_forward.5} parent=23 // pred_fallthru
        _
    $region24: #{decoder_forward.5} parent=5 // pred_fallthru
      _
    %p191 = scmp.le.s32.totalorder 1, %s12
    %p192 = scmp.lt.s32.totalorder %s12, 3
    %p193 = pnand %p191, %p192
    %p194 = pneg %p193
    // Predicated region
    $region29: #{decoder_forward.5} parent=5 // pred_check
      _
    $region30: #{decoder_forward.5} parent=5 // pred_check_branch
      %196 = sbr.rel (%p193) target = $region32
    $region31: #{decoder_forward.5} parent=5 // pred_region
      %s197 = ssub.s32 %s12, 1
      %p198 = scmp.lt.s32.totalorder %s17, 1
      %s199 = scalar_select %p198, %s17, 1
      %s200 = smul.addr %s199, 2
      %s201 = smul.addr %s200, 8
      %s202 = scalar_lea.vmem %s0, %s201
      %p203 = pneg %p38
      %p204 = pneg %p35
      %p205 = pneg %p59
      %p206 = pneg %p56
      %p207 = pneg %p80
      %p208 = pneg %p77
      %p209 = pneg %p106
      %p210 = pneg %p103
      %p211 = scmp.lt.s32.totalorder %s17, 1
      %s212 = scalar_select %p211, %s17, 1
      %s213 = smul.addr %s212, 2
      %s214 = scalar_lea.vmem %s3, %s213
      %p215 = pneg %p132
      %p216 = pneg %p129
      %p217 = scmp.lt.s32.totalorder %s17, 1
      %s218 = scalar_select %p217, %s17, 1
      %s219 = scalar_lea.vmem %s4, %s218
      %p220 = pneg %p158
      %p221 = pneg %p155
      %p222 = scmp.lt.s32.totalorder %s17, 1
      %s223 = scalar_select %p222, %s17, 1
      %s224 = scalar_lea.vmem %s5, %s223
      %p225 = scmp.lt.s32.totalorder %s17, 1
      %s226 = scalar_select %p225, %s17, 1
      %s227 = smul.addr %s226, 2
      %s228 = smul.addr %s227, 8
      %s229 = scalar_lea.vmem %s0, %s228
      %p230 = scmp.lt.s32.totalorder %s17, 1
      %s231 = scalar_select %p230, %s17, 1
      %s232 = smul.addr %s231, 2
      %s233 = scalar_lea.vmem %s3, %s232
      %p234 = scmp.lt.s32.totalorder %s17, 1
      %s235 = scalar_select %p234, %s17, 1
      %s236 = scalar_lea.vmem %s4, %s235
      %p237 = scmp.lt.s32.totalorder %s17, 1
      %s238 = scalar_select %p237, %s17, 1
      %s239 = scalar_lea.vmem %s5, %s238
      %v240 = vld [vmem:[%s1] sm:$0xff]
      %v241 = vld [vmem:[%s1 + $0x8] sm:$0x1]
      %v242 = vld [vmem:[%s2] sm:$0x1]
      %v243 = vlaneseq
      %v244 = vshrl.u32 %v243, 7
      %vm245 = vcmp.lt.s32.totalorder %v244, 0
      %v246 = vsub.s32 0, %v244
      %v247 = vsel %vm245, %v246, %v244
      %v248 = vshrl.u32 %v247, 1
      %v249 = vand.u32 %v247, 1
      %v250 = vsub.s32 0, %v249
      %v251 = vsel %vm245, %v250, %v249
      %vm252 = vcmp.ne.s32.totalorder %v251, 0
      %vm253 = vcmp.lt.s32.totalorder %v251, 0
      %vm254 = vmand %vm253, %vm252
      %v255 = vadd.s32 %v251, 2
      %v256 = vsel %vm254, %v255, %v251
      %vm257 = vcmp.ne.s32.totalorder %v256, 0
      %vm258 = vcmp.ne.s32.totalorder %v256, 1
      %v259 = vld [vmem:[%s229 + $0x1] sm:$0xf]
      %v260 = vsel %vm257, %v259, 0.0
      %v261 = vld [vmem:[%s229 + $0x2] sm:$0xf]
      %v262 = vld [vmem:[%s229 + $0x3] sm:$0xf]
      %v263 = vsel %vm258, %v262, 0.0
      %v264 = vsel %vm257, %v262, 0.0
      %v265 = vld [vmem:[%s229 + $0x4] sm:$0xf]
      %v266 = vld [vmem:[%s229 + $0x5] sm:$0xf]
      %v267 = vsel %vm258, %v266, 0.0
      %v268 = vsel %vm257, %v266, 0.0
      %v269 = vld [vmem:[%s229 + $0x6] sm:$0xf]
      %v270 = vld [vmem:[%s229 + $0x7] sm:$0xf]
      %v271 = vsel %vm258, %v270, 0.0
      %273 = vrot.lane.b32.xlu0 %v261, 1
      %v274 = vpop.permute.xlu0 %273
      %277 = vrot.lane.b32.xlu0 %v263, 2
      %v278 = vpop.permute.xlu0 %277
      %281 = vrot.lane.b32.xlu0 %v264, 3
      %v282 = vpop.permute.xlu0 %281
      %285 = vrot.lane.b32.xlu0 %v265, 4
      %v286 = vpop.permute.xlu0 %285
      %289 = vrot.lane.b32.xlu0 %v267, 5
      %v290 = vpop.permute.xlu0 %289
      %293 = vrot.lane.b32.xlu0 %v268, 6
      %v294 = vpop.permute.xlu0 %293
      %297 = vrot.lane.b32.xlu0 %v269, 7
      %v298 = vpop.permute.xlu0 %297
      %301 = vrot.lane.b32.xlu0 %v271, 8
      %v302 = vpop.permute.xlu0 %301
      %vm304 = vcmask 7168
      %v305 = vsel %vm304, %v260, %v274
      %vm306 = vcmask 15360
      %v307 = vsel %vm306, %v305, %v278
      %vm308 = vcmask 23552
      %v309 = vsel %vm308, %v307, %v282
      %vm310 = vcmask 31744
      %v311 = vsel %vm310, %v309, %v286
      %vm312 = vcmask 39936
      %v313 = vsel %vm312, %v311, %v290
      %vm314 = vcmask 48128
      %v315 = vsel %vm314, %v313, %v294
      %vm316 = vcmask 56320
      %v317 = vsel %vm316, %v315, %v298
      %vm318 = vcmask 64512
      %v319 = vsel %vm318, %v317, %v302
      %v321 = vlaneseq
      %v322 = vshrl.u32 %v321, 7
      %v323 = vsub.s32 0, %v322
      %v324 = vrot.slane %v242, %v323
      %vm326 = vcmask 72704
      %v328 = vsel %vm326, %v319, 0
      %vm330 = vcmask 1040384
      %v332 = vsel %vm330, %v241, 0
      %334 = vmatprep.subr.mxu0 0.0
      %335 = vmatpush1.msra.mxu0 0.0
      %336 = vmatprep.subr.mxu0 0.0
      %337 = vmatpush1.msra.mxu0 0.0
      %338 = vmatprep.subr.mxu0 0.0
      %339 = vmatpush1.msra.mxu0 0.0
      %340 = vmatprep.subr.mxu0 0.0
      %341 = vmatpush1.msra.mxu0 0.0
      %342 = vmatprep.subr.mxu0 0.0
      %343 = vmatpush1.msra.mxu0 0.0
      %344 = vmatprep.subr.mxu0 0.0
      %345 = vmatpush1.msra.mxu0 0.0
      %346 = vmatprep.subr.mxu0 0.0
      %347 = vmatpush1.msra.mxu0 0.0
      %348 = vmatprep.subr.mxu0 0.0
      %349 = vmatpush1.msra.mxu0 0.0
      %350 = vmatprep.subr.mxu0 0.0
      %351 = vmatpush1.msra.mxu0 0.0
      %352 = vmatprep.subr.mxu0 0.0
      %353 = vmatpush1.msra.mxu0 0.0
      %354 = vmatprep.subr.mxu0 0.0
      %355 = vmatpush1.msra.mxu0 0.0
      %356 = vmatprep.subr.mxu0 0.0
      %357 = vmatpush1.msra.mxu0 0.0
      %358 = vmatprep.subr.mxu0 0.0
      %359 = vmatpush1.msra.mxu0 0.0
      %360 = vmatprep.subr.mxu0 0.0
      %361 = vmatpush1.msra.mxu0 0.0
      %362 = vmatprep.subr.mxu0 0.0
      %363 = vmatpush1.msra.mxu0 %v332
      %364 = vmatprep.subr.mxu0 0.0
      %365 = vmatpush1.msra.mxu0 %v240
      %366 = vmatprep.subr.mxu0 0.0
      %367 = vmatpush2.msra.mxu0 0.0
      %368 = vmatprep.subr.mxu0 0.0
      %369 = vmatpush2.msra.mxu0 0.0
      %370 = vmatprep.subr.mxu0 0.0
      %371 = vmatpush2.msra.mxu0 0.0
      %372 = vmatprep.subr.mxu0 0.0
      %373 = vmatpush2.msra.mxu0 0.0
      %374 = vmatprep.subr.mxu0 0.0
      %375 = vmatpush2.msra.mxu0 0.0
      %376 = vmatprep.subr.mxu0 0.0
      %377 = vmatpush2.msra.mxu0 0.0
      %378 = vmatprep.subr.mxu0 0.0
      %379 = vmatpush2.msra.mxu0 0.0
      %380 = vmatprep.subr.mxu0 0.0
      %381 = vmatpush2.msra.mxu0 0.0
      %382 = vmatprep.subr.mxu0 0.0
      %383 = vmatpush2.msra.mxu0 0.0
      %384 = vmatprep.subr.mxu0 0.0
      %385 = vmatpush2.msra.mxu0 0.0
      %386 = vmatprep.subr.mxu0 0.0
      %387 = vmatpush2.msra.mxu0 0.0
      %388 = vmatprep.subr.mxu0 0.0
      %389 = vmatpush2.msra.mxu0 0.0
      %390 = vmatprep.subr.mxu0 0.0
      %391 = vmatpush2.msra.mxu0 0.0
      %392 = vmatprep.subr.mxu0 0.0
      %393 = vmatpush2.msra.mxu0 0.0
      %394 = vmatprep.subr.mxu0 0.0
      %395 = vmatpush2.msra.mxu0 0.0
      %396 = vmatprep.subr.mxu0 0.0
      %397 = vmatpush2.msra.mxu0 0.0
      %398 = vmatprep.mubr.f32.mxu0 0.0
      %399 = vmatmul.mubr.f32.gmra.mxu0 %v328
      %v400 = vpop.f32.mrf.mxu0
      %v401 = vadd.f32 %v324, %v400
      %v402 = vpop.f32.mrf.mxu0
      %403 = vdwg.mxu0
      %vm404 = vcmp.gt.f32.partialorder %v401, 0.0
      %v405 = vmin.f32 %v401, 0.0
      %v406 = vmul.f32 %v405, 1.442695
      %v407 = vpow.pop %v406
      %v408 = vsub.f32 %v407, 1.0
      %v409 = vsel %vm404, %v401, %v408
      %vm410 = vcmask 1043456
      %v411 = vsel %vm410, %v409, 0.0
      %v412 = vrot.slane %v411, 4
      %v413 = vadd.f32 %v411, %v412
      %v414 = vrot.slane %v413, 2
      %v415 = vadd.f32 %v413, %v414
      %v416 = vrot.slane %v415, 1
      %v417 = vadd.f32 %v415, %v416
      %v418 = vadd.f32 %v417, 0.0
      %v419 = vmul.f32 %v409, %v409
      %v420 = vsel %vm410, %v419, 0.0
      %v421 = vrot.slane %v420, 4
      %v422 = vadd.f32 %v420, %v421
      %v423 = vrot.slane %v422, 2
      %v424 = vadd.f32 %v422, %v423
      %v425 = vrot.slane %v424, 1
      %v426 = vadd.f32 %v424, %v425
      %v427 = vadd.f32 %v426, 0.0
      %v428 = vpack.c.bf16 %v409, %v409
      %429 = vst [vmem:[%s233] sm:$0x3] %v428
      %430 = vst [vmem:[%s236] sm:$0x1] %v418
      %431 = vst [vmem:[%s239] sm:$0x1] %v427
      %p432 = scmp.lt.s32.totalorder %s17, 1
      %s433 = scalar_select %p432, %s17, 1
      %s434 = smul.addr %s433, 2
      %s435 = scalar_lea.vmem %s3, %s434
      %p436 = scmp.lt.s32.totalorder %s17, 1
      %s437 = scalar_select %p436, %s17, 1
      %s438 = scalar_lea.vmem %s4, %s437
      %p439 = scmp.lt.s32.totalorder %s17, 1
      %s440 = scalar_select %p439, %s17, 1
      %s441 = scalar_lea.vmem %s5, %s440
      // Predicated region
      $region33: #{decoder_forward.5} parent=31 // pred_check
        %p442 = pneg %p103
      $region34: #{decoder_forward.5} parent=31 // pred_check_branch
        %444 = sbr.rel (%p442) target = $region36
      $region35: #{decoder_forward.5} parent=31 // pred_region
        _
      $region36: #{decoder_forward.5} parent=31 // pred_fallthru
        _
      // Predicated region
      $region37: #{decoder_forward.5} parent=31 // pred_check
        %p445 = pneg %p129
      $region38: #{decoder_forward.5} parent=31 // pred_check_branch
        %447 = sbr.rel (%p445) target = $region40
      $region39: #{decoder_forward.5} parent=31 // pred_region
        _
      $region40: #{decoder_forward.5} parent=31 // pred_fallthru
        _
      // Predicated region
      $region41: #{decoder_forward.5} parent=31 // pred_check
        %p448 = pneg %p155
      $region42: #{decoder_forward.5} parent=31 // pred_check_branch
        %450 = sbr.rel (%p448) target = $region44
      $region43: #{decoder_forward.5} parent=31 // pred_region
        _
      $region44: #{decoder_forward.5} parent=31 // pred_fallthru
        _
    $region32: #{decoder_forward.5} parent=5 // pred_fallthru
      _
    %p451 = scmp.le.s32.totalorder 2, %s12
    // Predicated region
    $region45: #{decoder_forward.5} parent=5 // pred_check
      %p452 = pneg %p451
    $region46: #{decoder_forward.5} parent=5 // pred_check_branch
      %454 = sbr.rel (%p452) target = $region48
    $region47: #{decoder_forward.5} parent=5 // pred_region
      %s455 = ssub.s32 %s12, 2
      // Predicated region
      $region49: #{decoder_forward.5} parent=47 // pred_check
        %p456 = pneg %p109
      $region50: #{decoder_forward.5} parent=47 // pred_check_branch
        %458 = sbr.rel (%p456) target = $region52
      $region51: #{decoder_forward.5} parent=47 // pred_region
        %p459 = scmp.lt.s32.totalorder %s18, 1
        %s460 = scalar_select %p459, %s18, 1
        %s461 = smul.addr %s460, 2
        %s462 = scalar_lea.vmem %s3, %s461
      $region52: #{decoder_forward.5} parent=47 // pred_fallthru
        _
      // Predicated region
      $region53: #{decoder_forward.5} parent=47 // pred_check
        %p463 = pneg %p135
      $region54: #{decoder_forward.5} parent=47 // pred_check_branch
        %465 = sbr.rel (%p463) target = $region56
      $region55: #{decoder_forward.5} parent=47 // pred_region
        %p466 = scmp.lt.s32.totalorder %s18, 1
        %s467 = scalar_select %p466, %s18, 1
        %s468 = scalar_lea.vmem %s4, %s467
      $region56: #{decoder_forward.5} parent=47 // pred_fallthru
        _
      // Predicated region
      $region57: #{decoder_forward.5} parent=47 // pred_check
        %p469 = pneg %p161
      $region58: #{decoder_forward.5} parent=47 // pred_check_branch
        %471 = sbr.rel (%p469) target = $region60
      $region59: #{decoder_forward.5} parent=47 // pred_region
        %p472 = scmp.lt.s32.totalorder %s18, 1
        %s473 = scalar_select %p472, %s18, 1
        %s474 = scalar_lea.vmem %s5, %s473
      $region60: #{decoder_forward.5} parent=47 // pred_fallthru
        _
    $region48: #{decoder_forward.5} parent=5 // pred_fallthru
      _
  $region6: #{decoder_forward.5} parent=0 // loop_footer
    %s16 = sadd.s32 1, %s12
  $region7: #{decoder_forward.5} parent=0 // loop_footer_branch
    %11 = sbr.rel target = $region3
  $region8: #{decoder_forward.5} parent=0 // loop_exit
    _

// kernel: decoder_forward.6
$region0: #{decoder_forward.6}
  #allocation0 [shape = 'u32[]', space=smem, size = 0x4, offset = 0x4, fixed_abs, tag = 'smem constant byte address 0x4 - core index']
  #allocation1 [shape = 'u32[144,128]{1,0:T(1,128)}', space=vmem, size = 0x12000, scoped, tag = 'internal scratch']
  #allocation2 [shape = 'bf16[32,32]{1,0:T(8,128)(2,1)}', space=vmem, size = 0x2000, scoped, tag = 'scratch operand']
  #allocation3 [shape = 'bf16[32,32]{1,0:T(8,128)(2,1)}', space=vmem, size = 0x2000, scoped, tag = 'scratch operand']
  %s0 = inlined_call_operand.vmem [shape: bf16[2,16,32], index: 0, kind: input, shape index: {}]
  %s1 = inlined_call_operand.vmem [shape: f32[1,32], index: 1, kind: input, shape index: {}]
  %s2 = inlined_call_operand.vmem [shape: f32[1,32], index: 2, kind: input, shape index: {}]
  %s3 = inlined_call_operand.vmem [shape: bf16[288,32], index: 3, kind: input, shape index: {}]
  %s4 = inlined_call_operand.vmem [shape: bf16[288,128], index: 4, kind: input, shape index: {}]
  %s5 = inlined_call_operand.vmem [shape: f32[1,128], index: 5, kind: input, shape index: {}]
  %s6 = inlined_call_operand.vmem [shape: bf16[2,16,128], index: 6, kind: output, shape index: {}]
  %s7 = sld [smem:[#allocation0]]
  $region57: #{decoder_forward.6} parent=0
    _
  %s9 = ssub.s32 1, %s7
  %s10 = scalar_select 0, %s9, %s7
  loop: start=0, step=1, limit=4
  $region2: #{decoder_forward.6} parent=0 // loop_pre_header
    _
  $region3: #{decoder_forward.6} parent=0 // loop_header
    %s12 = sphi 0, %s16
    %p13 = scmp.ge.s32.totalorder %s12, 4
    %s22 = sphi 0, %s24
    %s25 = sphi 0, %s22
    %s26 = sphi 0, %s25
    %s42 = sphi 0, %s26
    %s46 = sphi 0, %s46
    %s48 = sphi 0, %s46
    %s49 = sphi 0, %s48
    %s63 = sphi 0, %s49
    %s67 = sphi 0, %s67
    %s69 = sphi 0, %s67
    %s70 = sphi 0, %s69
    %s84 = sphi 0, %s70
    %s88 = sphi 0, %s88
    %s90 = sphi 0, %s88
    %s91 = sphi 0, %s90
    %s105 = sphi 0, %s91
    %s109 = sphi 0, %s109
    %s111 = sphi 0, %s109
    %s112 = sphi 0, %s111
    %s126 = sphi 0, %s112
    %s130 = sphi 0, %s130
    %s132 = sphi 0, %s130
    %s133 = sphi 0, %s132
    %s147 = sphi 0, %s133
    %s153 = sphi 0, %s155
    %s156 = sphi 0, %s153
    %s157 = sphi 0, %s156
    %s173 = sphi 0, %s157
  $region4: #{decoder_forward.6} parent=0 // loop_header_branch
    %15 = sbr.rel (%p13) target = $region8
  $region5: #{decoder_forward.6} parent=0 // loop_body
    %s17 = ssub.s32 %s12, 1
    %s18 = ssub.s32 %s12, 2
    %s19 = sadd.s32 %s12, 1
    %s20 = ssub.s32 %s12, %s19
    %p21 = scmp.eq.s32.totalorder %s20, 0
    %s23 = sadd.s32 %s22, 1
    %s24 = scalar_select %p21, %s22, %s23
    %p27 = pneg %p21
    %p28 = scmp.eq.s32.totalorder %s12, 1
    %p29 = por %p27, %p28
    %p30 = scmp.ne.s32.totalorder %s22, %s25
    %p31 = scmp.eq.s32.totalorder %s12, 0
    %p32 = por %p30, %p31
    %p33 = scmp.ne.s32.totalorder %s22, %s25
    %p34 = scmp.eq.s32.totalorder %s17, 1
    %p35 = por %p33, %p34
    %p36 = scmp.ne.s32.totalorder %s25, %s26
    %p37 = scmp.eq.s32.totalorder %s17, 0
    %p38 = por %p36, %p37
    %p39 = scmp.ne.s32.totalorder %s25, %s26
    %p40 = scmp.eq.s32.totalorder %s18, 1
    %p41 = por %p39, %p40
    %p43 = scmp.ne.s32.totalorder %s26, %s42
    %p44 = scmp.eq.s32.totalorder %s18, 0
    %p45 = por %p43, %p44
    %s47 = sadd.s32 %s46, 1
    %p50 = scmp.eq.s32.totalorder %s12, 1
    %p51 = scmp.ne.s32.totalorder %s46, %s48
    %p52 = scmp.eq.s32.totalorder %s12, 0
    %p53 = por %p51, %p52
    %p54 = scmp.ne.s32.totalorder %s46, %s48
    %p55 = scmp.eq.s32.totalorder %s17, 1
    %p56 = por %p54, %p55
    %p57 = scmp.ne.s32.totalorder %s48, %s49
    %p58 = scmp.eq.s32.totalorder %s17, 0
    %p59 = por %p57, %p58
    %p60 = scmp.ne.s32.totalorder %s48, %s49
    %p61 = scmp.eq.s32.totalorder %s18, 1
    %p62 = por %p60, %p61
    %p64 = scmp.ne.s32.totalorder %s49, %s63
    %p65 = scmp.eq.s32.totalorder %s18, 0
    %p66 = por %p64, %p65
    %s68 = sadd.s32 %s67, 1
    %p71 = scmp.eq.s32.totalorder %s12, 1
    %p72 = scmp.ne.s32.totalorder %s67, %s69
    %p73 = scmp.eq.s32.totalorder %s12, 0
    %p74 = por %p72, %p73
    %p75 = scmp.ne.s32.totalorder %s67, %s69
    %p76 = scmp.eq.s32.totalorder %s17, 1
    %p77 = por %p75, %p76
    %p78 = scmp.ne.s32.totalorder %s69, %s70
    %p79 = scmp.eq.s32.totalorder %s17, 0
    %p80 = por %p78, %p79
    %p81 = scmp.ne.s32.totalorder %s69, %s70
    %p82 = scmp.eq.s32.totalorder %s18, 1
    %p83 = por %p81, %p82
    %p85 = scmp.ne.s32.totalorder %s70, %s84
    %p86 = scmp.eq.s32.totalorder %s18, 0
    %p87 = por %p85, %p86
    %s89 = sadd.s32 %s88, 1
    %p92 = scmp.eq.s32.totalorder %s12, 1
    %p93 = scmp.ne.s32.totalorder %s88, %s90
    %p94 = scmp.eq.s32.totalorder %s12, 0
    %p95 = por %p93, %p94
    %p96 = scmp.ne.s32.totalorder %s88, %s90
    %p97 = scmp.eq.s32.totalorder %s17, 1
    %p98 = por %p96, %p97
    %p99 = scmp.ne.s32.totalorder %s90, %s91
    %p100 = scmp.eq.s32.totalorder %s17, 0
    %p101 = por %p99, %p100
    %p102 = scmp.ne.s32.totalorder %s90, %s91
    %p103 = scmp.eq.s32.totalorder %s18, 1
    %p104 = por %p102, %p103
    %p106 = scmp.ne.s32.totalorder %s91, %s105
    %p107 = scmp.eq.s32.totalorder %s18, 0
    %p108 = por %p106, %p107
    %s110 = sadd.s32 %s109, 1
    %p113 = scmp.eq.s32.totalorder %s12, 1
    %p114 = scmp.ne.s32.totalorder %s109, %s111
    %p115 = scmp.eq.s32.totalorder %s12, 0
    %p116 = por %p114, %p115
    %p117 = scmp.ne.s32.totalorder %s109, %s111
    %p118 = scmp.eq.s32.totalorder %s17, 1
    %p119 = por %p117, %p118
    %p120 = scmp.ne.s32.totalorder %s111, %s112
    %p121 = scmp.eq.s32.totalorder %s17, 0
    %p122 = por %p120, %p121
    %p123 = scmp.ne.s32.totalorder %s111, %s112
    %p124 = scmp.eq.s32.totalorder %s18, 1
    %p125 = por %p123, %p124
    %p127 = scmp.ne.s32.totalorder %s112, %s126
    %p128 = scmp.eq.s32.totalorder %s18, 0
    %p129 = por %p127, %p128
    %s131 = sadd.s32 %s130, 1
    %p134 = scmp.eq.s32.totalorder %s12, 1
    %p135 = scmp.ne.s32.totalorder %s130, %s132
    %p136 = scmp.eq.s32.totalorder %s12, 0
    %p137 = por %p135, %p136
    %p138 = scmp.ne.s32.totalorder %s130, %s132
    %p139 = scmp.eq.s32.totalorder %s17, 1
    %p140 = por %p138, %p139
    %p141 = scmp.ne.s32.totalorder %s132, %s133
    %p142 = scmp.eq.s32.totalorder %s17, 0
    %p143 = por %p141, %p142
    %p144 = scmp.ne.s32.totalorder %s132, %s133
    %p145 = scmp.eq.s32.totalorder %s18, 1
    %p146 = por %p144, %p145
    %p148 = scmp.ne.s32.totalorder %s133, %s147
    %p149 = scmp.eq.s32.totalorder %s18, 0
    %p150 = por %p148, %p149
    %s151 = ssub.s32 %s12, %s19
    %p152 = scmp.eq.s32.totalorder %s151, 0
    %s154 = sadd.s32 %s153, 1
    %s155 = scalar_select %p152, %s153, %s154
    %p158 = pneg %p152
    %p159 = scmp.eq.s32.totalorder %s12, 1
    %p160 = por %p158, %p159
    %p161 = scmp.ne.s32.totalorder %s153, %s156
    %p162 = scmp.eq.s32.totalorder %s12, 0
    %p163 = por %p161, %p162
    %p164 = scmp.ne.s32.totalorder %s153, %s156
    %p165 = scmp.eq.s32.totalorder %s17, 1
    %p166 = por %p164, %p165
    %p167 = scmp.ne.s32.totalorder %s156, %s157
    %p168 = scmp.eq.s32.totalorder %s17, 0
    %p169 = por %p167, %p168
    %p170 = scmp.ne.s32.totalorder %s156, %s157
    %p171 = scmp.eq.s32.totalorder %s18, 1
    %p172 = por %p170, %p171
    %p174 = scmp.ne.s32.totalorder %s157, %s173
    %p175 = scmp.eq.s32.totalorder %s18, 0
    %p176 = por %p174, %p175
    %p177 = scmp.le.s32.totalorder 1, %s12
    %p178 = scmp.lt.s32.totalorder %s12, 3
    %p179 = pnand %p177, %p178
    %p180 = pneg %p179
    // Predicated region
    $region9: #{decoder_forward.6} parent=5 // pred_check
      _
    $region10: #{decoder_forward.6} parent=5 // pred_check_branch
      %182 = sbr.rel (%p179) target = $region12
    $region11: #{decoder_forward.6} parent=5 // pred_region
      %s183 = ssub.s32 %s12, 1
      // Predicated region
      $region13: #{decoder_forward.6} parent=11 // pred_check
        %p184 = pneg %p59
      $region14: #{decoder_forward.6} parent=11 // pred_check_branch
        %186 = sbr.rel (%p184) target = $region16
      $region15: #{decoder_forward.6} parent=11 // pred_region
        _
      $region16: #{decoder_forward.6} parent=11 // pred_fallthru
        _
      // Predicated region
      $region17: #{decoder_forward.6} parent=11 // pred_check
        %p187 = pneg %p80
      $region18: #{decoder_forward.6} parent=11 // pred_check_branch
        %189 = sbr.rel (%p187) target = $region20
      $region19: #{decoder_forward.6} parent=11 // pred_region
        _
      $region20: #{decoder_forward.6} parent=11 // pred_fallthru
        _
      // Predicated region
      $region21: #{decoder_forward.6} parent=11 // pred_check
        %p190 = pneg %p101
      $region22: #{decoder_forward.6} parent=11 // pred_check_branch
        %192 = sbr.rel (%p190) target = $region24
      $region23: #{decoder_forward.6} parent=11 // pred_region
        _
      $region24: #{decoder_forward.6} parent=11 // pred_fallthru
        _
      // Predicated region
      $region25: #{decoder_forward.6} parent=11 // pred_check
        %p193 = pneg %p122
      $region26: #{decoder_forward.6} parent=11 // pred_check_branch
        %195 = sbr.rel (%p193) target = $region28
      $region27: #{decoder_forward.6} parent=11 // pred_region
        _
      $region28: #{decoder_forward.6} parent=11 // pred_fallthru
        _
      // Predicated region
      $region29: #{decoder_forward.6} parent=11 // pred_check
        %p196 = pneg %p143
      $region30: #{decoder_forward.6} parent=11 // pred_check_branch
        %198 = sbr.rel (%p196) target = $region32
      $region31: #{decoder_forward.6} parent=11 // pred_region
        _
      $region32: #{decoder_forward.6} parent=11 // pred_fallthru
        _
    $region12: #{decoder_forward.6} parent=5 // pred_fallthru
      _
    %p199 = scmp.lt.s32.totalorder %s12, 2
    // Predicated region
    $region33: #{decoder_forward.6} parent=5 // pred_check
      %p200 = pneg %p199
    $region34: #{decoder_forward.6} parent=5 // pred_check_branch
      %202 = sbr.rel (%p200) target = $region36
    $region35: #{decoder_forward.6} parent=5 // pred_region
      // Predicated region
      $region37: #{decoder_forward.6} parent=35 // pred_check
        %p203 = pneg %p32
      $region38: #{decoder_forward.6} parent=35 // pred_check_branch
        %205 = sbr.rel (%p203) target = $region40
      $region39: #{decoder_forward.6} parent=35 // pred_region
        %p206 = scmp.lt.s32.totalorder %s12, 1
        %s207 = scalar_select %p206, %s12, 1
        %s208 = smul.addr %s207, 2
        %s209 = smul.addr %s208, 4
        %s210 = scalar_lea.vmem %s0, %s209
      $region40: #{decoder_forward.6} parent=35 // pred_fallthru
        _
    $region36: #{decoder_forward.6} parent=5 // pred_fallthru
      _
    %p211 = scmp.le.s32.totalorder 1, %s12
    %p212 = scmp.lt.s32.totalorder %s12, 3
    %p213 = pnand %p211, %p212
    %p214 = pneg %p213
    // Predicated region
    $region41: #{decoder_forward.6} parent=5 // pred_check
      _
    $region42: #{decoder_forward.6} parent=5 // pred_check_branch
      %216 = sbr.rel (%p213) target = $region44
    $region43: #{decoder_forward.6} parent=5 // pred_region
      %s217 = ssub.s32 %s12, 1
      %p218 = scmp.lt.s32.totalorder %s17, 1
      %s219 = scalar_select %p218, %s17, 1
      %s220 = smul.addr %s219, 2
      %s221 = smul.addr %s220, 4
      %s222 = scalar_lea.vmem %s0, %s221
      %p223 = pneg %p38
      %p224 = pneg %p35
      %p225 = pneg %p59
      %p226 = pneg %p56
      %p227 = pneg %p80
      %p228 = pneg %p77
      %p229 = pneg %p101
      %p230 = pneg %p98
      %p231 = pneg %p122
      %p232 = pneg %p119
      %p233 = pneg %p143
      %p234 = pneg %p140
      %p235 = pneg %p169
      %p236 = pneg %p166
      %p237 = scmp.lt.s32.totalorder %s17, 1
      %s238 = scalar_select %p237, %s17, 1
      %s239 = smul.addr %s238, 2
      %s240 = smul.addr %s239, 4
      %s241 = scalar_lea.vmem %s6, %s240
      %p242 = scmp.lt.s32.totalorder %s17, 1
      %s243 = scalar_select %p242, %s17, 1
      %s244 = smul.addr %s243, 2
      %s245 = smul.addr %s244, 4
      %s246 = scalar_lea.vmem %s0, %s245
      %p247 = scmp.lt.s32.totalorder %s17, 1
      %s248 = scalar_select %p247, %s17, 1
      %s249 = smul.addr %s248, 2
      %s250 = smul.addr %s249, 4
      %s251 = scalar_lea.vmem %s6, %s250
      %vm255 = vcmask 257024
      %256 = vst.msk [vmem:[#allocation2] sm:$0xf] %vm255, 0
      %257 = vst.msk [vmem:[#allocation2 + $0xc] sm:$0xf] %vm255, 0
      %258 = vst.msk [vmem:[#allocation3] sm:$0xf] %vm255, 0
      %259 = vst.msk [vmem:[#allocation3 + $0xc] sm:$0xf] %vm255, 0
      %v260 = vld [vmem:[%s1] sm:$0x1]
      %v261 = vld [vmem:[%s2] sm:$0x1]
      %v262 = vld [vmem:[%s246] sm:$0xf]
      %v263 = vld [vmem:[%s246 + $0x4] sm:$0xf]
      %v264 = vunpack.c.l.bf16 %v262
      %v265 = vunpack.c.l.bf16 %v263
      %v267 = vlaneseq
      %v268 = vshrl.u32 %v267, 7
      %v269 = vsub.s32 0, %v268
      %v270 = vrot.slane %v260, %v269
      %v272 = vmul.f32 %v264, %v270
      %v273 = vmul.f32 %v265, %v270
      %v275 = vlaneseq
      %v276 = vshrl.u32 %v275, 7
      %v277 = vsub.s32 0, %v276
      %v278 = vrot.slane %v261, %v277
      %v280 = vadd.f32 %v272, %v278
      %v281 = vadd.f32 %v273, %v278
      %v282 = vpack.c.bf16 %v281, %v280
      %v284 = vunpack.c.l.b16 %v282
      %v285 = vunpack.c.h.b16 %v282
      %v286 = vpack.c.b16 %v284, %v284
      %v287 = vpack.c.b16 %v285, %v285
      %290 = vst.msk [vmem:[#allocation2 + $0x4] sm:$0xf] %vm255, %v286
      %291 = vst.msk [vmem:[#allocation2 + $0x8] sm:$0xf] %vm255, %v287
      %v292 = vld [vmem:[%s3] sm:$0xf]
      %v293 = vld [vmem:[%s3 + $0x4] sm:$0xf]
      %v294 = vld [vmem:[%s3 + $0x8] sm:$0xf]
      %v295 = vld [vmem:[%s3 + $0xc] sm:$0xf]
      %v296 = vld [vmem:[%s3 + $0x10] sm:$0xf]
      %v297 = vld [vmem:[%s3 + $0x14] sm:$0xf]
      %v298 = vld [vmem:[%s3 + $0x18] sm:$0xf]
      %v299 = vld [vmem:[%s3 + $0x1c] sm:$0xf]
      %v300 = vld [vmem:[%s3 + $0x20] sm:$0xf]
      %v301 = vld [vmem:[%s3 + $0x24] sm:$0xf]
      %v302 = vld [vmem:[%s3 + $0x28] sm:$0xf]
      %v303 = vld [vmem:[%s3 + $0x2c] sm:$0xf]
      %v304 = vld [vmem:[%s3 + $0x30] sm:$0xf]
      %v305 = vld [vmem:[%s3 + $0x34] sm:$0xf]
      %v306 = vld [vmem:[%s3 + $0x38] sm:$0xf]
      %v307 = vld [vmem:[%s3 + $0x3c] sm:$0xf]
      %v308 = vld [vmem:[%s3 + $0x40] sm:$0xf]
      %v309 = vld [vmem:[%s3 + $0x44] sm:$0xf]
      %v310 = vld [vmem:[%s3 + $0x48] sm:$0xf]
      %v311 = vld [vmem:[%s3 + $0x4c] sm:$0xf]
      %v312 = vld [vmem:[%s3 + $0x50] sm:$0xf]
      %v313 = vld [vmem:[%s3 + $0x54] sm:$0xf]
      %v314 = vld [vmem:[%s3 + $0x58] sm:$0xf]
      %v315 = vld [vmem:[%s3 + $0x5c] sm:$0xf]
      %v316 = vld [vmem:[%s3 + $0x60] sm:$0xf]
      %v317 = vld [vmem:[%s3 + $0x64] sm:$0xf]
      %v318 = vld [vmem:[%s3 + $0x68] sm:$0xf]
      %v319 = vld [vmem:[%s3 + $0x6c] sm:$0xf]
      %v320 = vld [vmem:[%s3 + $0x70] sm:$0xf]
      %v321 = vld [vmem:[%s3 + $0x74] sm:$0xf]
      %v322 = vld [vmem:[%s3 + $0x78] sm:$0xf]
      %v323 = vld [vmem:[%s3 + $0x7c] sm:$0xf]
      %v324 = vld [vmem:[%s3 + $0x80] sm:$0xf]
      %v325 = vld [vmem:[%s3 + $0x84] sm:$0xf]
      %v326 = vld [vmem:[%s3 + $0x88] sm:$0xf]
      %v327 = vld [vmem:[%s3 + $0x8c] sm:$0xf]
      %v328 = vlaneseq
      %v329 = vshrl.u32 %v328, 7
      %v330 = vadd.s32 %v329, 8
      %vm331 = vcmp.lt.s32.totalorder %v329, 0
      %v332 = vsub.s32 0, %v329
      %v333 = vsel %vm331, %v332, %v329
      %v334 = vshrl.u32 %v333, 2
      %v335 = vand.u32 %v333, 3
      %v336 = vsub.s32 0, %v335
      %v337 = vsel %vm331, %v336, %v335
      %vm338 = vcmp.lt.s32.totalorder %v330, 0
      %v339 = vsub.s32 0, %v330
      %v340 = vsel %vm338, %v339, %v330
      %v341 = vshrl.u32 %v340, 2
      %v342 = vand.u32 %v340, 3
      %v343 = vsub.s32 0, %v342
      %v344 = vsel %vm338, %v343, %v342
      %vm345 = vcmp.ne.s32.totalorder %v337, 0
      %vm346 = vcmp.ne.s32.totalorder %v344, 0
      %vm347 = vcmp.lt.s32.totalorder %v337, 0
      %vm348 = vcmp.lt.s32.totalorder %v344, 0
      %vm349 = vmand %vm347, %vm345
      %vm350 = vmand %vm348, %vm346
      %v351 = vadd.s32 %v337, 4
      %v352 = vadd.s32 %v344, 4
      %v353 = vsel %vm349, %v351, %v337
      %v354 = vsel %vm350, %v352, %v344
      %vm355 = vcmp.ne.s32.totalorder %v353, 0
      %vm356 = vcmp.ne.s32.totalorder %v354, 0
      %vm357 = vcmp.ne.s32.totalorder %v353, 3
      %vm358 = vcmp.ne.s32.totalorder %v354, 3
      %v359 = vld [vmem:[#allocation2] sm:$0xe]
      %v360 = vld [vmem:[#allocation2 + $0x4] sm:$0xf]
      %v361 = vld [vmem:[#allocation2 + $0x8] sm:$0x3]
      %v362 = vsel %vm355, 1, 0
      %v363 = vsel %vm356, 1, 0
      %vm364 = vcmp.eq.s32.totalorder %v362, 1
      %vm365 = vcmp.eq.s32.totalorder %v363, 1
      %vm366 = vmpackc.low %vm364, %vm364
      %vm367 = vmpackc.low %vm365, %vm365
      %v368 = vsel %vm366, 65537, 0
      %v369 = vsel %vm367, 65537, 0
      %vm370 = vsmask.f32 1280
      %vm371 = vsmask.f32 5392
      %vm372 = vmor %vm370, %vm371
      %v374 = vshrl.u32 %v368, 16
      %v376 = vrot.slane %v374, 6
      %v377 = vshll.u32 %v368, 16
      %v379 = vrot.slane %v377, 7
      %v380 = vor.u32 %v376, %v379
      %v381 = vrot.slane %v380, 4
      %v383 = vshrl.u32 %v369, 16
      %v385 = vrot.slane %v383, 6
      %v386 = vshll.u32 %v369, 16
      %v388 = vrot.slane %v386, 7
      %v389 = vor.u32 %v385, %v388
      %v390 = vsel %vm372, %v381, %v389
      %v391 = vrot.slane %v389, 4
      %vm392 = vcmp.ne.s16.totalorder %v380, 0
      %vm393 = vcmp.ne.s16.totalorder %v390, 0
      %vm394 = vcmp.ne.s16.totalorder %v391, 0
      %v395 = vsel %vm392, %v359, 0
      %v396 = vsel %vm393, %v360, 0
      %v397 = vsel %vm394, %v361, 0
      %v398 = vld [vmem:[#allocation2] sm:$0xc]
      %v399 = vld [vmem:[#allocation2 + $0x8] sm:$0x7]
      %v400 = vsel %vm357, 1, 0
      %v401 = vsel %vm358, 1, 0
      %vm402 = vcmp.eq.s32.totalorder %v400, 1
      %vm403 = vcmp.eq.s32.totalorder %v401, 1
      %vm404 = vmpackc.low %vm402, %vm402
      %vm405 = vmpackc.low %vm403, %vm403
      %v406 = vsel %vm404, 65537, 0
      %v407 = vsel %vm405, 65537, 0
      %vm408 = vsmask.f32 2304
      %vm409 = vsmask.f32 6416
      %vm410 = vmor %vm408, %vm409
      %v412 = vshrl.u32 %v406, 16
      %v414 = vrot.slane %v412, 5
      %v415 = vshll.u32 %v406, 16
      %v417 = vrot.slane %v415, 6
      %v418 = vor.u32 %v414, %v417
      %v419 = vrot.slane %v418, 4
      %v421 = vshrl.u32 %v407, 16
      %v423 = vrot.slane %v421, 5
      %v424 = vshll.u32 %v407, 16
      %v426 = vrot.slane %v424, 6
      %v427 = vor.u32 %v423, %v426
      %v428 = vsel %vm410, %v419, %v427
      %v429 = vrot.slane %v427, 4
      %vm430 = vcmp.ne.s16.totalorder %v418, 0
      %vm431 = vcmp.ne.s16.totalorder %v428, 0
      %vm432 = vcmp.ne.s16.totalorder %v429, 0
      %v433 = vsel %vm430, %v398, 0
      %v434 = vsel %vm431, %v360, 0
      %v435 = vsel %vm432, %v399, 0
      %v436 = vld [vmem:[#allocation2] sm:$0x8]
      %v437 = vld [vmem:[#allocation2 + $0x8] sm:$0xf]
      %vm438 = vsmask.f32 3328
      %vm439 = vsmask.f32 7440
      %vm440 = vmor %vm438, %vm439
      %v441 = vrot.slane %v377, 5
      %v442 = vrot.slane %v374, 4
      %v443 = vor.u32 %v442, %v441
      %v444 = vrot.slane %v443, 4
      %v445 = vrot.slane %v386, 5
      %v446 = vsel %vm440, %v444, %v445
      %v447 = vrot.slane %v383, 4
      %v448 = vor.u32 %v447, %v445
      %v449 = vrot.slane %v448, 4
      %vm450 = vcmp.ne.s16.totalorder %v441, 0
      %vm451 = vcmp.ne.s16.totalorder %v446, 0
      %vm452 = vcmp.ne.s16.totalorder %v449, 0
      %v453 = vsel %vm450, %v436, 0
      %v454 = vsel %vm451, %v360, 0
      %v455 = vsel %vm452, %v437, 0
      %v456 = vld [vmem:[#allocation2 + $0xc] sm:$0x1]
      %vm457 = vsmask.f32 256
      %vm458 = vsmask.f32 4368
      %vm459 = vmor %vm457, %vm458
      %v460 = vrot.slane %v412, 7
      %v461 = vor.u32 %v460, %v415
      %v462 = vrot.slane %v460, 4
      %v463 = vrot.slane %v421, 7
      %v464 = vor.u32 %v463, %v424
      %v465 = vsel %vm459, %v462, %v464
      %v466 = vrot.slane %v463, 4
      %vm467 = vcmp.ne.s16.totalorder %v461, 0
      %vm468 = vcmp.ne.s16.totalorder %v465, 0
      %vm469 = vcmp.ne.s16.totalorder %v466, 0
      %v470 = vsel %vm467, %v360, 0
      %v471 = vsel %vm468, %v437, 0
      %v472 = vsel %vm469, %v456, 0
      %v473 = vld [vmem:[#allocation2 + $0x4] sm:$0xe]
      %v474 = vld [vmem:[#allocation2 + $0xc] sm:$0x3]
      %v475 = vsel %vm392, %v473, 0
      %v476 = vsel %vm393, %v437, 0
      %v477 = vsel %vm394, %v474, 0
      %v478 = vld [vmem:[#allocation2 + $0x4] sm:$0xc]
      %v479 = vld [vmem:[#allocation2 + $0xc] sm:$0x7]
      %v480 = vsel %vm430, %v478, 0
      %v481 = vsel %vm431, %v437, 0
      %v482 = vsel %vm432, %v479, 0
      %v486 = vunpack.c.l.b16 %v395
      %v487 = vunpack.c.l.b16 %v396
      %v488 = vunpack.c.l.b16 %v397
      %v489 = vpack.c.b16 %v487, %v486
      %v490 = vpack.c.b16 %v488, %v488
      %v494 = vunpack.c.l.b16 %v398
      %v495 = vunpack.c.l.b16 %v360
      %v496 = vunpack.c.l.b16 %v361
      %v497 = vpack.c.b16 %v495, %v494
      %v498 = vpack.c.b16 %v496, %v496
      %vm499 = vsmask.f32 7424
      %v501 = vshrl.u32 %v497, 16
      %v503 = vshll.u32 %v497, 16
      %v505 = vrot.slane %v503, 1
      %v506 = vor.u32 %v501, %v505
      %v508 = vshll.u32 %v498, 16
      %v510 = vrot.slane %v508, 1
      %v511 = vsel %vm499, %v506, %v510
      %v512 = vshrl.u32 %v498, 16
      %v514 = vor.u32 %v512, %v510
      %515 = vrot.lane.b32.xlu0 %v511, 32
      %v516 = vpop.permute.xlu0 %515
      %517 = vrot.lane.b32.xlu0 %v514, 32
      %v518 = vpop.permute.xlu0 %517
      %v522 = vunpack.c.l.b16 %v433
      %v523 = vunpack.c.l.b16 %v434
      %v524 = vunpack.c.l.b16 %v435
      %v525 = vpack.c.b16 %v523, %v522
      %v526 = vpack.c.b16 %v524, %v524
      %vm527 = vcmask 1046528
      %v528 = vrot.slane %v525, 1
      %v529 = vrot.slane %v526, 1
      %v530 = vsel %vm527, %v528, %v529
      %531 = vrot.lane.b32.xlu0 %v530, 64
      %v532 = vpop.permute.xlu0 %531
      %533 = vrot.lane.b32.xlu0 %v529, 64
      %v534 = vpop.permute.xlu0 %533
      %v538 = vunpack.c.l.b16 %v453
      %v539 = vunpack.c.l.b16 %v454
      %v540 = vunpack.c.l.b16 %v455
      %v541 = vpack.c.b16 %v539, %v538
      %v542 = vpack.c.b16 %v540, %v540
      %vm543 = vcmask 1045504
      %v544 = vrot.slane %v541, 2
      %v545 = vrot.slane %v542, 2
      %v546 = vsel %vm543, %v544, %v545
      %547 = vrot.lane.b32.xlu0 %v546, 96
      %v548 = vpop.permute.xlu0 %547
      %549 = vrot.lane.b32.xlu0 %v545, 96
      %v550 = vpop.permute.xlu0 %549
      %v552 = vunpack.c.l.b16 %v437
      %v553 = vpack.c.b16 %v552, %v495
      %v555 = vshrl.u32 %v553, 16
      %v557 = vrot.slane %v555, 6
      %v558 = vshll.u32 %v553, 16
      %v560 = vrot.slane %v558, 7
      %v561 = vor.u32 %v557, %v560
      %v565 = vunpack.c.l.b16 %v470
      %v566 = vunpack.c.l.b16 %v471
      %v567 = vunpack.c.l.b16 %v472
      %v568 = vpack.c.b16 %v566, %v565
      %v569 = vpack.c.b16 %v567, %v567
      %vm570 = vcmask 1040384
      %v571 = vrot.slane %v568, 7
      %v572 = vrot.slane %v569, 7
      %v573 = vsel %vm570, %v571, %v572
      %574 = vrot.lane.b32.xlu0 %v571, 32
      %v575 = vpop.permute.xlu0 %574
      %576 = vrot.lane.b32.xlu0 %v573, 32
      %v577 = vpop.permute.xlu0 %576
      %v581 = vunpack.c.l.b16 %v475
      %v582 = vunpack.c.l.b16 %v476
      %v583 = vunpack.c.l.b16 %v477
      %v584 = vpack.c.b16 %v582, %v581
      %v585 = vpack.c.b16 %v583, %v583
      %586 = vrot.lane.b32.xlu0 %v584, 64
      %v587 = vpop.permute.xlu0 %586
      %588 = vrot.lane.b32.xlu0 %v585, 64
      %v589 = vpop.permute.xlu0 %588
      %v592 = vunpack.c.l.b16 %v478
      %v593 = vunpack.c.l.b16 %v474
      %v594 = vpack.c.b16 %v552, %v592
      %v595 = vpack.c.b16 %v593, %v593
      %v597 = vshrl.u32 %v594, 16
      %v599 = vshll.u32 %v594, 16
      %v601 = vrot.slane %v599, 1
      %v602 = vor.u32 %v597, %v601
      %v604 = vshll.u32 %v595, 16
      %v606 = vrot.slane %v604, 1
      %v607 = vsel %vm499, %v602, %v606
      %v608 = vshrl.u32 %v595, 16
      %v610 = vor.u32 %v608, %v606
      %611 = vrot.lane.b32.xlu0 %v607, 96
      %v612 = vpop.permute.xlu0 %611
      %613 = vrot.lane.b32.xlu0 %v610, 96
      %v614 = vpop.permute.xlu0 %613
      %v618 = vunpack.c.l.b16 %v480
      %v619 = vunpack.c.l.b16 %v481
      %v620 = vunpack.c.l.b16 %v482
      %v621 = vpack.c.b16 %v619, %v618
      %v622 = vpack.c.b16 %v620, %v620
      %v623 = vrot.slane %v621, 1
      %v624 = vrot.slane %v622, 1
      %v625 = vsel %vm527, %v623, %v624
      %vm626 = vcmask 261120
      %v629 = vsel %vm626, %v489, %v516
      %v632 = vsel %vm626, %v490, %v518
      %vm633 = vcmask 523264
      %v635 = vsel %vm633, %v629, %v532
      %v637 = vsel %vm633, %v632, %v534
      %vm638 = vcmask 785408
      %v640 = vsel %vm638, %v635, %v548
      %v642 = vsel %vm638, %v637, %v550
      %v645 = vsel %vm626, %v561, %v575
      %v647 = vsel %vm626, %v561, %v577
      %v649 = vsel %vm633, %v645, %v587
      %v651 = vsel %vm633, %v647, %v589
      %v653 = vsel %vm638, %v649, %v612
      %v655 = vsel %vm638, %v651, %v614
      %vm656 = vsmask.f32 6400
      %v657 = vshrl.u32 %v640, 16
      %v659 = vrot.slane %v657, 1
      %v660 = vshll.u32 %v640, 16
      %v662 = vrot.slane %v660, 2
      %v663 = vor.u32 %v659, %v662
      %v664 = vshrl.u32 %v642, 16
      %v666 = vrot.slane %v664, 1
      %v667 = vshll.u32 %v642, 16
      %v669 = vrot.slane %v667, 2
      %v670 = vor.u32 %v666, %v669
      %v671 = vsel %vm656, %v663, %v670
      %v672 = vshrl.u32 %v653, 16
      %v674 = vrot.slane %v672, 1
      %v675 = vshll.u32 %v653, 16
      %v677 = vrot.slane %v675, 2
      %v678 = vor.u32 %v674, %v677
      %v679 = vshrl.u32 %v655, 16
      %v681 = vrot.slane %v679, 1
      %v682 = vshll.u32 %v655, 16
      %v684 = vrot.slane %v682, 2
      %v685 = vor.u32 %v681, %v684
      %v686 = vsel %vm656, %v678, %v685
      %v688 = vshrl.u32 %v625, 16
      %v690 = vrot.slane %v688, 1
      %v691 = vshll.u32 %v625, 16
      %v693 = vrot.slane %v691, 2
      %v694 = vor.u32 %v690, %v693
      %v696 = vshrl.u32 %v624, 16
      %v698 = vrot.slane %v696, 1
      %v699 = vshll.u32 %v624, 16
      %v701 = vrot.slane %v699, 2
      %v702 = vor.u32 %v698, %v701
      %v703 = vsel %vm656, %v694, %v702
      %v742 = vunpack.c.l.b16 %v292
      %v743 = vunpack.c.l.b16 %v293
      %v744 = vunpack.c.l.b16 %v294
      %v745 = vunpack.c.l.b16 %v295
      %v746 = vunpack.c.l.b16 %v296
      %v747 = vunpack.c.l.b16 %v297
      %v748 = vunpack.c.l.b16 %v298
      %v749 = vunpack.c.l.b16 %v299
      %v750 = vunpack.c.l.b16 %v300
      %v751 = vunpack.c.l.b16 %v301
      %v752 = vunpack.c.l.b16 %v302
      %v753 = vunpack.c.l.b16 %v303
      %v754 = vunpack.c.l.b16 %v304
      %v755 = vunpack.c.l.b16 %v305
      %v756 = vunpack.c.l.b16 %v306
      %v757 = vunpack.c.l.b16 %v307
      %v758 = vunpack.c.l.b16 %v308
      %v759 = vunpack.c.l.b16 %v309
      %v760 = vunpack.c.l.b16 %v310
      %v761 = vunpack.c.l.b16 %v311
      %v762 = vunpack.c.l.b16 %v312
      %v763 = vunpack.c.l.b16 %v313
      %v764 = vunpack.c.l.b16 %v314
      %v765 = vunpack.c.l.b16 %v315
      %v766 = vunpack.c.l.b16 %v316
      %v767 = vunpack.c.l.b16 %v317
      %v768 = vunpack.c.l.b16 %v318
      %v769 = vunpack.c.l.b16 %v319
      %v770 = vunpack.c.l.b16 %v320
      %v771 = vunpack.c.l.b16 %v321
      %v772 = vunpack.c.l.b16 %v322
      %v773 = vunpack.c.l.b16 %v323
      %v774 = vunpack.c.l.b16 %v324
      %v775 = vunpack.c.l.b16 %v325
      %v776 = vunpack.c.l.b16 %v326
      %v777 = vunpack.c.l.b16 %v327
      %v778 = vpack.c.b16 %v743, %v742
      %v779 = vpack.c.b16 %v745, %v744
      %v780 = vpack.c.b16 %v747, %v746
      %v781 = vpack.c.b16 %v749, %v748
      %v782 = vpack.c.b16 %v751, %v750
      %v783 = vpack.c.b16 %v753, %v752
      %v784 = vpack.c.b16 %v755, %v754
      %v785 = vpack.c.b16 %v757, %v756
      %v786 = vpack.c.b16 %v759, %v758
      %v787 = vpack.c.b16 %v761, %v760
      %v788 = vpack.c.b16 %v763, %v762
      %v789 = vpack.c.b16 %v765, %v764
      %v790 = vpack.c.b16 %v767, %v766
      %v791 = vpack.c.b16 %v769, %v768
      %v792 = vpack.c.b16 %v771, %v770
      %v793 = vpack.c.b16 %v773, %v772
      %v794 = vpack.c.b16 %v775, %v774
      %v795 = vpack.c.b16 %v777, %v776
      %v815 = vsel %vm626, %v703, 0
      %817 = vmatprep.subr.bf16.mxu0 0
      %818 = vmatpush1.bf16.msra.mxu0 %v785
      %819 = vmatprep.subr.bf16.mxu0 0
      %820 = vmatpush1.bf16.msra.mxu0 %v784
      %821 = vmatprep.subr.bf16.mxu0 0
      %822 = vmatpush1.bf16.msra.mxu0 %v783
      %823 = vmatprep.subr.bf16.mxu0 0
      %824 = vmatpush1.bf16.msra.mxu0 %v782
      %825 = vmatprep.subr.bf16.mxu0 0
      %826 = vmatpush1.bf16.msra.mxu0 %v781
      %827 = vmatprep.subr.bf16.mxu0 0
      %828 = vmatpush1.bf16.msra.mxu0 %v780
      %829 = vmatprep.subr.bf16.mxu0 0
      %830 = vmatpush1.bf16.msra.mxu0 %v779
      %831 = vmatprep.subr.bf16.mxu0 0
      %832 = vmatpush1.bf16.msra.mxu0 %v778
      %833 = vmatprep.subr.bf16.mxu0 0
      %834 = vmatpush2.bf16.msra.mxu0 %v793
      %835 = vmatprep.subr.bf16.mxu0 0
      %836 = vmatpush2.bf16.msra.mxu0 %v792
      %837 = vmatprep.subr.bf16.mxu0 0
      %838 = vmatpush2.bf16.msra.mxu0 %v791
      %839 = vmatprep.subr.bf16.mxu0 0
      %840 = vmatpush2.bf16.msra.mxu0 %v790
      %841 = vmatprep.subr.bf16.mxu0 0
      %842 = vmatpush2.bf16.msra.mxu0 %v789
      %843 = vmatprep.subr.bf16.mxu0 0
      %844 = vmatpush2.bf16.msra.mxu0 %v788
      %845 = vmatprep.subr.bf16.mxu0 0
      %846 = vmatpush2.bf16.msra.mxu0 %v787
      %847 = vmatprep.subr.bf16.mxu0 0
      %848 = vmatpush2.bf16.msra.mxu0 %v786
      %849 = vmatprep.mubr.bf16.mxu0 %v686
      %850 = vmatmul.mubr.bf16.gmra.mxu0 %v671
      %v851 = vpop.f32.mrf.mxu0
      %v852 = vadd.f32 0.0, %v851
      %v853 = vpop.f32.mrf.mxu0
      %v854 = vpop.f32.mrf.mxu0
      %v855 = vadd.f32 0.0, %v854
      %v856 = vpop.f32.mrf.mxu0
      %857 = vdwg.mxu0
      %858 = vmatprep.subr.bf16.mxu0 0
      %859 = vmatpush1.bf16.msra.mxu0 0
      %860 = vmatprep.subr.bf16.mxu0 0
      %861 = vmatpush1.bf16.msra.mxu0 0
      %862 = vmatprep.subr.bf16.mxu0 0
      %863 = vmatpush1.bf16.msra.mxu0 0
      %864 = vmatprep.subr.bf16.mxu0 0
      %865 = vmatpush1.bf16.msra.mxu0 0
      %866 = vmatprep.subr.bf16.mxu0 0
      %867 = vmatpush1.bf16.msra.mxu0 0
      %868 = vmatprep.subr.bf16.mxu0 0
      %869 = vmatpush1.bf16.msra.mxu0 0
      %870 = vmatprep.subr.bf16.mxu0 0
      %871 = vmatpush1.bf16.msra.mxu0 %v795
      %872 = vmatprep.subr.bf16.mxu0 0
      %873 = vmatpush1.bf16.msra.mxu0 %v794
      %874 = vmatprep.subr.bf16.mxu0 0
      %875 = vmatpush2.bf16.msra.mxu0 0
      %876 = vmatprep.subr.bf16.mxu0 0
      %877 = vmatpush2.bf16.msra.mxu0 0
      %878 = vmatprep.subr.bf16.mxu0 0
      %879 = vmatpush2.bf16.msra.mxu0 0
      %880 = vmatprep.subr.bf16.mxu0 0
      %881 = vmatpush2.bf16.msra.mxu0 0
      %882 = vmatprep.subr.bf16.mxu0 0
      %883 = vmatpush2.bf16.msra.mxu0 0
      %884 = vmatprep.subr.bf16.mxu0 0
      %885 = vmatpush2.bf16.msra.mxu0 0
      %886 = vmatprep.subr.bf16.mxu0 0
      %887 = vmatpush2.bf16.msra.mxu0 0
      %888 = vmatprep.subr.bf16.mxu0 0
      %889 = vmatpush2.bf16.msra.mxu0 0
      %890 = vmatprep.mubr.bf16.mxu0 0
      %891 = vmatmul.mubr.bf16.gmra.mxu0 %v815
      %v892 = vpop.f32.mrf.mxu0
      %v893 = vadd.f32 %v852, %v892
      %v894 = vpop.f32.mrf.mxu0
      %v895 = vpop.f32.mrf.mxu0
      %v896 = vadd.f32 %v855, %v895
      %v897 = vpop.f32.mrf.mxu0
      %898 = vdwg.mxu0
      %v899 = vpack.c.bf16 %v896, %v893
      %v901 = vunpack.c.l.b16 %v899
      %v902 = vunpack.c.h.b16 %v899
      %v903 = vpack.c.b16 %v901, %v901
      %v904 = vpack.c.b16 %v902, %v902
      %907 = vst.msk [vmem:[#allocation3 + $0x4] sm:$0xf] %vm255, %v903
      %908 = vst.msk [vmem:[#allocation3 + $0x8] sm:$0xf] %vm255, %v904
      %v909 = vld [vmem:[%s4] sm:$0xf]
      %v910 = vld [vmem:[%s4 + $0x4] sm:$0xf]
      %v911 = vld [vmem:[%s4 + $0x8] sm:$0xf]
      %v912 = vld [vmem:[%s4 + $0xc] sm:$0xf]
      %v913 = vld [vmem:[%s4 + $0x10] sm:$0xf]
      %v914 = vld [vmem:[%s4 + $0x14] sm:$0xf]
      %v915 = vld [vmem:[%s4 + $0x18] sm:$0xf]
      %v916 = vld [vmem:[%s4 + $0x1c] sm:$0xf]
      %v917 = vld [vmem:[%s4 + $0x20] sm:$0xf]
      %v918 = vld [vmem:[%s4 + $0x24] sm:$0xf]
      %v919 = vld [vmem:[%s4 + $0x28] sm:$0xf]
      %v920 = vld [vmem:[%s4 + $0x2c] sm:$0xf]
      %v921 = vld [vmem:[%s4 + $0x30] sm:$0xf]
      %v922 = vld [vmem:[%s4 + $0x34] sm:$0xf]
      %v923 = vld [vmem:[%s4 + $0x38] sm:$0xf]
      %v924 = vld [vmem:[%s4 + $0x3c] sm:$0xf]
      %v925 = vld [vmem:[%s4 + $0x40] sm:$0xf]
      %v926 = vld [vmem:[%s4 + $0x44] sm:$0xf]
      %v927 = vld [vmem:[%s4 + $0x48] sm:$0xf]
      %v928 = vld [vmem:[%s4 + $0x4c] sm:$0xf]
      %v929 = vld [vmem:[%s4 + $0x50] sm:$0xf]
      %v930 = vld [vmem:[%s4 + $0x54] sm:$0xf]
      %v931 = vld [vmem:[%s4 + $0x58] sm:$0xf]
      %v932 = vld [vmem:[%s4 + $0x5c] sm:$0xf]
      %v933 = vld [vmem:[%s4 + $0x60] sm:$0xf]
      %v934 = vld [vmem:[%s4 + $0x64] sm:$0xf]
      %v935 = vld [vmem:[%s4 + $0x68] sm:$0xf]
      %v936 = vld [vmem:[%s4 + $0x6c] sm:$0xf]
      %v937 = vld [vmem:[%s4 + $0x70] sm:$0xf]
      %v938 = vld [vmem:[%s4 + $0x74] sm:$0xf]
      %v939 = vld [vmem:[%s4 + $0x78] sm:$0xf]
      %v940 = vld [vmem:[%s4 + $0x7c] sm:$0xf]
      %v941 = vld [vmem:[%s4 + $0x80] sm:$0xf]
      %v942 = vld [vmem:[%s4 + $0x84] sm:$0xf]
      %v943 = vld [vmem:[%s4 + $0x88] sm:$0xf]
      %v944 = vld [vmem:[%s4 + $0x8c] sm:$0xf]
      %v945 = vld [vmem:[%s5] sm:$0x1]
      %v946 = vld [vmem:[#allocation3] sm:$0xe]
      %v947 = vld [vmem:[#allocation3 + $0x4] sm:$0xf]
      %v948 = vld [vmem:[#allocation3 + $0x8] sm:$0x3]
      %v949 = vsel %vm392, %v946, 0
      %v950 = vsel %vm393, %v947, 0
      %v951 = vsel %vm394, %v948, 0
      %v952 = vld [vmem:[#allocation3] sm:$0xc]
      %v953 = vld [vmem:[#allocation3 + $0x8] sm:$0x7]
      %v954 = vsel %vm430, %v952, 0
      %v955 = vsel %vm431, %v947, 0
      %v956 = vsel %vm432, %v953, 0
      %v957 = vld [vmem:[#allocation3] sm:$0x8]
      %v958 = vld [vmem:[#allocation3 + $0x8] sm:$0xf]
      %v959 = vsel %vm450, %v957, 0
      %v960 = vsel %vm451, %v947, 0
      %v961 = vsel %vm452, %v958, 0
      %v962 = vld [vmem:[#allocation3 + $0xc] sm:$0x1]
      %v963 = vsel %vm467, %v947, 0
      %v964 = vsel %vm468, %v958, 0
      %v965 = vsel %vm469, %v962, 0
      %v966 = vld [vmem:[#allocation3 + $0x4] sm:$0xe]
      %v967 = vld [vmem:[#allocation3 + $0xc] sm:$0x3]
      %v968 = vsel %vm392, %v966, 0
      %v969 = vsel %vm393, %v958, 0
      %v970 = vsel %vm394, %v967, 0
      %v971 = vld [vmem:[#allocation3 + $0x4] sm:$0xc]
      %v972 = vld [vmem:[#allocation3 + $0xc] sm:$0x7]
      %v973 = vsel %vm430, %v971, 0
      %v974 = vsel %vm431, %v958, 0
      %v975 = vsel %vm432, %v972, 0
      %v979 = vunpack.c.l.b16 %v949
      %v980 = vunpack.c.l.b16 %v950
      %v981 = vunpack.c.l.b16 %v951
      %v982 = vpack.c.b16 %v980, %v979
      %v983 = vpack.c.b16 %v981, %v981
      %v987 = vunpack.c.l.b16 %v952
      %v988 = vunpack.c.l.b16 %v947
      %v989 = vunpack.c.l.b16 %v948
      %v990 = vpack.c.b16 %v988, %v987
      %v991 = vpack.c.b16 %v989, %v989
      %v993 = vshrl.u32 %v990, 16
      %v995 = vshll.u32 %v990, 16
      %v997 = vrot.slane %v995, 1
      %v998 = vor.u32 %v993, %v997
      %v1000 = vshll.u32 %v991, 16
      %v1002 = vrot.slane %v1000, 1
      %v1003 = vsel %vm499, %v998, %v1002
      %v1004 = vshrl.u32 %v991, 16
      %v1006 = vor.u32 %v1004, %v1002
      %1007 = vrot.lane.b32.xlu0 %v1003, 32
      %v1008 = vpop.permute.xlu0 %1007
      %1009 = vrot.lane.b32.xlu0 %v1006, 32
      %v1010 = vpop.permute.xlu0 %1009
      %v1014 = vunpack.c.l.b16 %v954
      %v1015 = vunpack.c.l.b16 %v955
      %v1016 = vunpack.c.l.b16 %v956
      %v1017 = vpack.c.b16 %v1015, %v1014
      %v1018 = vpack.c.b16 %v1016, %v1016
      %v1019 = vrot.slane %v1017, 1
      %v1020 = vrot.slane %v1018, 1
      %v1021 = vsel %vm527, %v1019, %v1020
      %1022 = vrot.lane.b32.xlu0 %v1021, 64
      %v1023 = vpop.permute.xlu0 %1022
      %1024 = vrot.lane.b32.xlu0 %v1020, 64
      %v1025 = vpop.permute.xlu0 %1024
      %v1029 = vunpack.c.l.b16 %v959
      %v1030 = vunpack.c.l.b16 %v960
      %v1031 = vunpack.c.l.b16 %v961
      %v1032 = vpack.c.b16 %v1030, %v1029
      %v1033 = vpack.c.b16 %v1031, %v1031
      %v1034 = vrot.slane %v1032, 2
      %v1035 = vrot.slane %v1033, 2
      %v1036 = vsel %vm543, %v1034, %v1035
      %1037 = vrot.lane.b32.xlu0 %v1036, 96
      %v1038 = vpop.permute.xlu0 %1037
      %1039 = vrot.lane.b32.xlu0 %v1035, 96
      %v1040 = vpop.permute.xlu0 %1039
      %v1042 = vunpack.c.l.b16 %v958
      %v1043 = vpack.c.b16 %v1042, %v988
      %v1045 = vshrl.u32 %v1043, 16
      %v1047 = vrot.slane %v1045, 6
      %v1048 = vshll.u32 %v1043, 16
      %v1050 = vrot.slane %v1048, 7
      %v1051 = vor.u32 %v1047, %v1050
      %v1055 = vunpack.c.l.b16 %v963
      %v1056 = vunpack.c.l.b16 %v964
      %v1057 = vunpack.c.l.b16 %v965
      %v1058 = vpack.c.b16 %v1056, %v1055
      %v1059 = vpack.c.b16 %v1057, %v1057
      %v1060 = vrot.slane %v1058, 7
      %v1061 = vrot.slane %v1059, 7
      %v1062 = vsel %vm570, %v1060, %v1061
      %1063 = vrot.lane.b32.xlu0 %v1060, 32
      %v1064 = vpop.permute.xlu0 %1063
      %1065 = vrot.lane.b32.xlu0 %v1062, 32
      %v1066 = vpop.permute.xlu0 %1065
      %v1070 = vunpack.c.l.b16 %v968
      %v1071 = vunpack.c.l.b16 %v969
      %v1072 = vunpack.c.l.b16 %v970
      %v1073 = vpack.c.b16 %v1071, %v1070
      %v1074 = vpack.c.b16 %v1072, %v1072
      %1075 = vrot.lane.b32.xlu0 %v1073, 64
      %v1076 = vpop.permute.xlu0 %1075
      %1077 = vrot.lane.b32.xlu0 %v1074, 64
      %v1078 = vpop.permute.xlu0 %1077
      %v1081 = vunpack.c.l.b16 %v971
      %v1082 = vunpack.c.l.b16 %v967
      %v1083 = vpack.c.b16 %v1042, %v1081
      %v1084 = vpack.c.b16 %v1082, %v1082
      %v1086 = vshrl.u32 %v1083, 16
      %v1088 = vshll.u32 %v1083, 16
      %v1090 = vrot.slane %v1088, 1
      %v1091 = vor.u32 %v1086, %v1090
      %v1093 = vshll.u32 %v1084, 16
      %v1095 = vrot.slane %v1093, 1
      %v1096 = vsel %vm499, %v1091, %v1095
      %v1097 = vshrl.u32 %v1084, 16
      %v1099 = vor.u32 %v1097, %v1095
      %1100 = vrot.lane.b32.xlu0 %v1096, 96
      %v1101 = vpop.permute.xlu0 %1100
      %1102 = vrot.lane.b32.xlu0 %v1099, 96
      %v1103 = vpop.permute.xlu0 %1102
      %v1107 = vunpack.c.l.b16 %v973
      %v1108 = vunpack.c.l.b16 %v974
      %v1109 = vunpack.c.l.b16 %v975
      %v1110 = vpack.c.b16 %v1108, %v1107
      %v1111 = vpack.c.b16 %v1109, %v1109
      %v1112 = vrot.slane %v1110, 1
      %v1113 = vrot.slane %v1111, 1
      %v1114 = vsel %vm527, %v1112, %v1113
      %v1117 = vsel %vm626, %v982, %v1008
      %v1120 = vsel %vm626, %v983, %v1010
      %v1122 = vsel %vm633, %v1117, %v1023
      %v1124 = vsel %vm633, %v1120, %v1025
      %v1126 = vsel %vm638, %v1122, %v1038
      %v1128 = vsel %vm638, %v1124, %v1040
      %v1131 = vsel %vm626, %v1051, %v1064
      %v1133 = vsel %vm626, %v1051, %v1066
      %v1135 = vsel %vm633, %v1131, %v1076
      %v1137 = vsel %vm633, %v1133, %v1078
      %v1139 = vsel %vm638, %v1135, %v1101
      %v1141 = vsel %vm638, %v1137, %v1103
      %v1143 = vlaneseq
      %v1144 = vshrl.u32 %v1143, 7
      %v1145 = vsub.s32 0, %v1144
      %v1146 = vrot.slane %v945, %v1145
      %v1148 = vshrl.u32 %v1126, 16
      %v1150 = vrot.slane %v1148, 1
      %v1151 = vshll.u32 %v1126, 16
      %v1153 = vrot.slane %v1151, 2
      %v1154 = vor.u32 %v1150, %v1153
      %v1155 = vshrl.u32 %v1128, 16
      %v1157 = vrot.slane %v1155, 1
      %v1158 = vshll.u32 %v1128, 16
      %v1160 = vrot.slane %v1158, 2
      %v1161 = vor.u32 %v1157, %v1160
      %v1162 = vsel %vm656, %v1154, %v1161
      %v1163 = vshrl.u32 %v1139, 16
      %v1165 = vrot.slane %v1163, 1
      %v1166 = vshll.u32 %v1139, 16
      %v1168 = vrot.slane %v1166, 2
      %v1169 = vor.u32 %v1165, %v1168
      %v1170 = vshrl.u32 %v1141, 16
      %v1172 = vrot.slane %v1170, 1
      %v1173 = vshll.u32 %v1141, 16
      %v1175 = vrot.slane %v1173, 2
      %v1176 = vor.u32 %v1172, %v1175
      %v1177 = vsel %vm656, %v1169, %v1176
      %v1179 = vshrl.u32 %v1114, 16
      %v1181 = vrot.slane %v1179, 1
      %v1182 = vshll.u32 %v1114, 16
      %v1184 = vrot.slane %v1182, 2
      %v1185 = vor.u32 %v1181, %v1184
      %v1187 = vshrl.u32 %v1113, 16
      %v1189 = vrot.slane %v1187, 1
      %v1190 = vshll.u32 %v1113, 16
      %v1192 = vrot.slane %v1190, 2
      %v1193 = vor.u32 %v1189, %v1192
      %v1194 = vsel %vm656, %v1185, %v1193
      %v1233 = vunpack.c.l.b16 %v909
      %v1234 = vunpack.c.l.b16 %v910
      %v1235 = vunpack.c.l.b16 %v911
      %v1236 = vunpack.c.l.b16 %v912
      %v1237 = vunpack.c.l.b16 %v913
      %v1238 = vunpack.c.l.b16 %v914
      %v1239 = vunpack.c.l.b16 %v915
      %v1240 = vunpack.c.l.b16 %v916
      %v1241 = vunpack.c.l.b16 %v917
      %v1242 = vunpack.c.l.b16 %v918
      %v1243 = vunpack.c.l.b16 %v919
      %v1244 = vunpack.c.l.b16 %v920
      %v1245 = vunpack.c.l.b16 %v921
      %v1246 = vunpack.c.l.b16 %v922
      %v1247 = vunpack.c.l.b16 %v923
      %v1248 = vunpack.c.l.b16 %v924
      %v1249 = vunpack.c.l.b16 %v925
      %v1250 = vunpack.c.l.b16 %v926
      %v1251 = vunpack.c.l.b16 %v927
      %v1252 = vunpack.c.l.b16 %v928
      %v1253 = vunpack.c.l.b16 %v929
      %v1254 = vunpack.c.l.b16 %v930
      %v1255 = vunpack.c.l.b16 %v931
      %v1256 = vunpack.c.l.b16 %v932
      %v1257 = vunpack.c.l.b16 %v933
      %v1258 = vunpack.c.l.b16 %v934
      %v1259 = vunpack.c.l.b16 %v935
      %v1260 = vunpack.c.l.b16 %v936
      %v1261 = vunpack.c.l.b16 %v937
      %v1262 = vunpack.c.l.b16 %v938
      %v1263 = vunpack.c.l.b16 %v939
      %v1264 = vunpack.c.l.b16 %v940
      %v1265 = vunpack.c.l.b16 %v941
      %v1266 = vunpack.c.l.b16 %v942
      %v1267 = vunpack.c.l.b16 %v943
      %v1268 = vunpack.c.l.b16 %v944
      %v1269 = vpack.c.b16 %v1234, %v1233
      %v1270 = vpack.c.b16 %v1236, %v1235
      %v1271 = vpack.c.b16 %v1238, %v1237
      %v1272 = vpack.c.b16 %v1240, %v1239
      %v1273 = vpack.c.b16 %v1242, %v1241
      %v1274 = vpack.c.b16 %v1244, %v1243
      %v1275 = vpack.c.b16 %v1246, %v1245
      %v1276 = vpack.c.b16 %v1248, %v1247
      %v1277 = vpack.c.b16 %v1250, %v1249
      %v1278 = vpack.c.b16 %v1252, %v1251
      %v1279 = vpack.c.b16 %v1254, %v1253
      %v1280 = vpack.c.b16 %v1256, %v1255
      %v1281 = vpack.c.b16 %v1258, %v1257
      %v1282 = vpack.c.b16 %v1260, %v1259
      %v1283 = vpack.c.b16 %v1262, %v1261
      %v1284 = vpack.c.b16 %v1264, %v1263
      %v1285 = vpack.c.b16 %v1266, %v1265
      %v1286 = vpack.c.b16 %v1268, %v1267
      %v1306 = vsel %vm626, %v1194, 0
      %1308 = vmatprep.subr.bf16.mxu0 0
      %1309 = vmatpush1.bf16.msra.mxu0 %v1276
      %1310 = vmatprep.subr.bf16.mxu0 0
      %1311 = vmatpush1.bf16.msra.mxu0 %v1275
      %1312 = vmatprep.subr.bf16.mxu0 0
      %1313 = vmatpush1.bf16.msra.mxu0 %v1274
      %1314 = vmatprep.subr.bf16.mxu0 0
      %1315 = vmatpush1.bf16.msra.mxu0 %v1273
      %1316 = vmatprep.subr.bf16.mxu0 0
      %1317 = vmatpush1.bf16.msra.mxu0 %v1272
      %1318 = vmatprep.subr.bf16.mxu0 0
      %1319 = vmatpush1.bf16.msra.mxu0 %v1271
      %1320 = vmatprep.subr.bf16.mxu0 0
      %1321 = vmatpush1.bf16.msra.mxu0 %v1270
      %1322 = vmatprep.subr.bf16.mxu0 0
      %1323 = vmatpush1.bf16.msra.mxu0 %v1269
      %1324 = vmatprep.subr.bf16.mxu0 0
      %1325 = vmatpush2.bf16.msra.mxu0 %v1284
      %1326 = vmatprep.subr.bf16.mxu0 0
      %1327 = vmatpush2.bf16.msra.mxu0 %v1283
      %1328 = vmatprep.subr.bf16.mxu0 0
      %1329 = vmatpush2.bf16.msra.mxu0 %v1282
      %1330 = vmatprep.subr.bf16.mxu0 0
      %1331 = vmatpush2.bf16.msra.mxu0 %v1281
      %1332 = vmatprep.subr.bf16.mxu0 0
      %1333 = vmatpush2.bf16.msra.mxu0 %v1280
      %1334 = vmatprep.subr.bf16.mxu0 0
      %1335 = vmatpush2.bf16.msra.mxu0 %v1279
      %1336 = vmatprep.subr.bf16.mxu0 0
      %1337 = vmatpush2.bf16.msra.mxu0 %v1278
      %1338 = vmatprep.subr.bf16.mxu0 0
      %1339 = vmatpush2.bf16.msra.mxu0 %v1277
      %1340 = vmatprep.mubr.bf16.mxu0 %v1177
      %1341 = vmatmul.mubr.bf16.gmra.mxu0 %v1162
      %v1342 = vpop.f32.mrf.mxu0
      %v1343 = vadd.f32 %v1146, %v1342
      %v1344 = vpop.f32.mrf.mxu0
      %v1345 = vpop.f32.mrf.mxu0
      %v1346 = vadd.f32 %v1146, %v1345
      %v1347 = vpop.f32.mrf.mxu0
      %1348 = vdwg.mxu0
      %1349 = vmatprep.subr.bf16.mxu0 0
      %1350 = vmatpush1.bf16.msra.mxu0 0
      %1351 = vmatprep.subr.bf16.mxu0 0
      %1352 = vmatpush1.bf16.msra.mxu0 0
      %1353 = vmatprep.subr.bf16.mxu0 0
      %1354 = vmatpush1.bf16.msra.mxu0 0
      %1355 = vmatprep.subr.bf16.mxu0 0
      %1356 = vmatpush1.bf16.msra.mxu0 0
      %1357 = vmatprep.subr.bf16.mxu0 0
      %1358 = vmatpush1.bf16.msra.mxu0 0
      %1359 = vmatprep.subr.bf16.mxu0 0
      %1360 = vmatpush1.bf16.msra.mxu0 0
      %1361 = vmatprep.subr.bf16.mxu0 0
      %1362 = vmatpush1.bf16.msra.mxu0 %v1286
      %1363 = vmatprep.subr.bf16.mxu0 0
      %1364 = vmatpush1.bf16.msra.mxu0 %v1285
      %1365 = vmatprep.subr.bf16.mxu0 0
      %1366 = vmatpush2.bf16.msra.mxu0 0
      %1367 = vmatprep.subr.bf16.mxu0 0
      %1368 = vmatpush2.bf16.msra.mxu0 0
      %1369 = vmatprep.subr.bf16.mxu0 0
      %1370 = vmatpush2.bf16.msra.mxu0 0
      %1371 = vmatprep.subr.bf16.mxu0 0
      %1372 = vmatpush2.bf16.msra.mxu0 0
      %1373 = vmatprep.subr.bf16.mxu0 0
      %1374 = vmatpush2.bf16.msra.mxu0 0
      %1375 = vmatprep.subr.bf16.mxu0 0
      %1376 = vmatpush2.bf16.msra.mxu0 0
      %1377 = vmatprep.subr.bf16.mxu0 0
      %1378 = vmatpush2.bf16.msra.mxu0 0
      %1379 = vmatprep.subr.bf16.mxu0 0
      %1380 = vmatpush2.bf16.msra.mxu0 0
      %1381 = vmatprep.mubr.bf16.mxu0 0
      %1382 = vmatmul.mubr.bf16.gmra.mxu0 %v1306
      %v1383 = vpop.f32.mrf.mxu0
      %v1384 = vadd.f32 %v1343, %v1383
      %v1385 = vpop.f32.mrf.mxu0
      %v1386 = vpop.f32.mrf.mxu0
      %v1387 = vadd.f32 %v1346, %v1386
      %v1388 = vpop.f32.mrf.mxu0
      %1389 = vdwg.mxu0
      %vm1390 = vcmp.gt.f32.partialorder %v1384, 0.0
      %vm1391 = vcmp.gt.f32.partialorder %v1387, 0.0
      %v1392 = vmin.f32 %v1384, 0.0
      %v1393 = vmin.f32 %v1387, 0.0
      %v1394 = vmul.f32 %v1392, 1.442695
      %v1395 = vpow.pop %v1394
      %v1396 = vmul.f32 %v1393, 1.442695
      %v1397 = vpow.pop %v1396
      %v1398 = vsub.f32 %v1395, 1.0
      %v1399 = vsub.f32 %v1397, 1.0
      %v1400 = vsel %vm1390, %v1384, %v1398
      %v1401 = vsel %vm1391, %v1387, %v1399
      %v1402 = vpack.c.bf16 %v1401, %v1400
      %v1404 = vunpack.c.l.b16 %v1402
      %v1405 = vunpack.c.h.b16 %v1402
      %v1406 = vpack.c.b16 %v1404, %v1404
      %v1407 = vpack.c.b16 %v1405, %v1405
      %1410 = vst [vmem:[%s251] sm:$0xf] %v1406
      %1411 = vst [vmem:[%s251 + $0x4] sm:$0xf] %v1407
      %p1412 = scmp.lt.s32.totalorder %s17, 1
      %s1413 = scalar_select %p1412, %s17, 1
      %s1414 = smul.addr %s1413, 2
      %s1415 = smul.addr %s1414, 4
      %s1416 = scalar_lea.vmem %s6, %s1415
      // Predicated region
      $region45: #{decoder_forward.6} parent=43 // pred_check
        %p1417 = pneg %p166
      $region46: #{decoder_forward.6} parent=43 // pred_check_branch
        %1419 = sbr.rel (%p1417) target = $region48
      $region47: #{decoder_forward.6} parent=43 // pred_region
        _
      $region48: #{decoder_forward.6} parent=43 // pred_fallthru
        _
    $region44: #{decoder_forward.6} parent=5 // pred_fallthru
      _
    %p1420 = scmp.le.s32.totalorder 2, %s12
    // Predicated region
    $region49: #{decoder_forward.6} parent=5 // pred_check
      %p1421 = pneg %p1420
    $region50: #{decoder_forward.6} parent=5 // pred_check_branch
      %1423 = sbr.rel (%p1421) target = $region52
    $region51: #{decoder_forward.6} parent=5 // pred_region
      %s1424 = ssub.s32 %s12, 2
      // Predicated region
      $region53: #{decoder_forward.6} parent=51 // pred_check
        %p1425 = pneg %p172
      $region54: #{decoder_forward.6} parent=51 // pred_check_branch
        %1427 = sbr.rel (%p1425) target = $region56
      $region55: #{decoder_forward.6} parent=51 // pred_region
        %p1428 = scmp.lt.s32.totalorder %s18, 1
        %s1429 = scalar_select %p1428, %s18, 1
        %s1430 = smul.addr %s1429, 2
        %s1431 = smul.addr %s1430, 4
        %s1432 = scalar_lea.vmem %s6, %s1431
      $region56: #{decoder_forward.6} parent=51 // pred_fallthru
        _
    $region52: #{decoder_forward.6} parent=5 // pred_fallthru
      _
  $region6: #{decoder_forward.6} parent=0 // loop_footer
    %s16 = sadd.s32 1, %s12
  $region7: #{decoder_forward.6} parent=0 // loop_footer_branch
    %11 = sbr.rel target = $region3
  $region8: #{decoder_forward.6} parent=0 // loop_exit
    _

// kernel: decoder_forward.7
$region0: #{decoder_forward.7}
  #allocation0 [shape = 'u32[]', space=smem, size = 0x4, offset = 0x4, fixed_abs, tag = 'smem constant byte address 0x4 - core index']
  #allocation1 [shape = 'u32[144,128]{1,0:T(1,128)}', space=vmem, size = 0x12000, scoped, tag = 'internal scratch']
  #allocation2 [shape = 'bf16[96,32]{1,0:T(8,128)(2,1)}', space=vmem, size = 0x6000, scoped, tag = 'scratch operand']
  #allocation3 [shape = 'bf16[96,32]{1,0:T(8,128)(2,1)}', space=vmem, size = 0x6000, scoped, tag = 'scratch operand']
  %s0 = inlined_call_operand.vmem [shape: bf16[2,96,32], index: 0, kind: input, shape index: {}]
  %s1 = inlined_call_operand.vmem [shape: bf16[288,32], index: 1, kind: input, shape index: {}]
  %s2 = inlined_call_operand.vmem [shape: bf16[288,32], index: 2, kind: input, shape index: {}]
  %s3 = inlined_call_operand.vmem [shape: bf16[288,4], index: 3, kind: input, shape index: {}]
  %s4 = inlined_call_operand.vmem [shape: f32[1,4], index: 4, kind: input, shape index: {}]
  %s5 = inlined_call_operand.vmem [shape: f32[2,64,4], index: 5, kind: output, shape index: {}]
  %s6 = sld [smem:[#allocation0]]
  $region53: #{decoder_forward.7} parent=0
    _
  %s8 = ssub.s32 1, %s6
  %s9 = scalar_select 0, %s8, %s6
  loop: start=0, step=1, limit=4
  $region2: #{decoder_forward.7} parent=0 // loop_pre_header
    _
  $region3: #{decoder_forward.7} parent=0 // loop_header
    %s11 = sphi 0, %s15
    %p12 = scmp.ge.s32.totalorder %s11, 4
    %s21 = sphi 0, %s23
    %s24 = sphi 0, %s21
    %s25 = sphi 0, %s24
    %s41 = sphi 0, %s25
    %s45 = sphi 0, %s45
    %s47 = sphi 0, %s45
    %s48 = sphi 0, %s47
    %s62 = sphi 0, %s48
    %s66 = sphi 0, %s66
    %s68 = sphi 0, %s66
    %s69 = sphi 0, %s68
    %s83 = sphi 0, %s69
    %s87 = sphi 0, %s87
    %s89 = sphi 0, %s87
    %s90 = sphi 0, %s89
    %s104 = sphi 0, %s90
    %s108 = sphi 0, %s108
    %s110 = sphi 0, %s108
    %s111 = sphi 0, %s110
    %s125 = sphi 0, %s111
    %s131 = sphi 0, %s133
    %s134 = sphi 0, %s131
    %s135 = sphi 0, %s134
    %s151 = sphi 0, %s135
  $region4: #{decoder_forward.7} parent=0 // loop_header_branch
    %14 = sbr.rel (%p12) target = $region8
  $region5: #{decoder_forward.7} parent=0 // loop_body
    %s16 = ssub.s32 %s11, 1
    %s17 = ssub.s32 %s11, 2
    %s18 = sadd.s32 %s11, 1
    %s19 = ssub.s32 %s11, %s18
    %p20 = scmp.eq.s32.totalorder %s19, 0
    %s22 = sadd.s32 %s21, 1
    %s23 = scalar_select %p20, %s21, %s22
    %p26 = pneg %p20
    %p27 = scmp.eq.s32.totalorder %s11, 1
    %p28 = por %p26, %p27
    %p29 = scmp.ne.s32.totalorder %s21, %s24
    %p30 = scmp.eq.s32.totalorder %s11, 0
    %p31 = por %p29, %p30
    %p32 = scmp.ne.s32.totalorder %s21, %s24
    %p33 = scmp.eq.s32.totalorder %s16, 1
    %p34 = por %p32, %p33
    %p35 = scmp.ne.s32.totalorder %s24, %s25
    %p36 = scmp.eq.s32.totalorder %s16, 0
    %p37 = por %p35, %p36
    %p38 = scmp.ne.s32.totalorder %s24, %s25
    %p39 = scmp.eq.s32.totalorder %s17, 1
    %p40 = por %p38, %p39
    %p42 = scmp.ne.s32.totalorder %s25, %s41
    %p43 = scmp.eq.s32.totalorder %s17, 0
    %p44 = por %p42, %p43
    %s46 = sadd.s32 %s45, 1
    %p49 = scmp.eq.s32.totalorder %s11, 1
    %p50 = scmp.ne.s32.totalorder %s45, %s47
    %p51 = scmp.eq.s32.totalorder %s11, 0
    %p52 = por %p50, %p51
    %p53 = scmp.ne.s32.totalorder %s45, %s47
    %p54 = scmp.eq.s32.totalorder %s16, 1
    %p55 = por %p53, %p54
    %p56 = scmp.ne.s32.totalorder %s47, %s48
    %p57 = scmp.eq.s32.totalorder %s16, 0
    %p58 = por %p56, %p57
    %p59 = scmp.ne.s32.totalorder %s47, %s48
    %p60 = scmp.eq.s32.totalorder %s17, 1
    %p61 = por %p59, %p60
    %p63 = scmp.ne.s32.totalorder %s48, %s62
    %p64 = scmp.eq.s32.totalorder %s17, 0
    %p65 = por %p63, %p64
    %s67 = sadd.s32 %s66, 1
    %p70 = scmp.eq.s32.totalorder %s11, 1
    %p71 = scmp.ne.s32.totalorder %s66, %s68
    %p72 = scmp.eq.s32.totalorder %s11, 0
    %p73 = por %p71, %p72
    %p74 = scmp.ne.s32.totalorder %s66, %s68
    %p75 = scmp.eq.s32.totalorder %s16, 1
    %p76 = por %p74, %p75
    %p77 = scmp.ne.s32.totalorder %s68, %s69
    %p78 = scmp.eq.s32.totalorder %s16, 0
    %p79 = por %p77, %p78
    %p80 = scmp.ne.s32.totalorder %s68, %s69
    %p81 = scmp.eq.s32.totalorder %s17, 1
    %p82 = por %p80, %p81
    %p84 = scmp.ne.s32.totalorder %s69, %s83
    %p85 = scmp.eq.s32.totalorder %s17, 0
    %p86 = por %p84, %p85
    %s88 = sadd.s32 %s87, 1
    %p91 = scmp.eq.s32.totalorder %s11, 1
    %p92 = scmp.ne.s32.totalorder %s87, %s89
    %p93 = scmp.eq.s32.totalorder %s11, 0
    %p94 = por %p92, %p93
    %p95 = scmp.ne.s32.totalorder %s87, %s89
    %p96 = scmp.eq.s32.totalorder %s16, 1
    %p97 = por %p95, %p96
    %p98 = scmp.ne.s32.totalorder %s89, %s90
    %p99 = scmp.eq.s32.totalorder %s16, 0
    %p100 = por %p98, %p99
    %p101 = scmp.ne.s32.totalorder %s89, %s90
    %p102 = scmp.eq.s32.totalorder %s17, 1
    %p103 = por %p101, %p102
    %p105 = scmp.ne.s32.totalorder %s90, %s104
    %p106 = scmp.eq.s32.totalorder %s17, 0
    %p107 = por %p105, %p106
    %s109 = sadd.s32 %s108, 1
    %p112 = scmp.eq.s32.totalorder %s11, 1
    %p113 = scmp.ne.s32.totalorder %s108, %s110
    %p114 = scmp.eq.s32.totalorder %s11, 0
    %p115 = por %p113, %p114
    %p116 = scmp.ne.s32.totalorder %s108, %s110
    %p117 = scmp.eq.s32.totalorder %s16, 1
    %p118 = por %p116, %p117
    %p119 = scmp.ne.s32.totalorder %s110, %s111
    %p120 = scmp.eq.s32.totalorder %s16, 0
    %p121 = por %p119, %p120
    %p122 = scmp.ne.s32.totalorder %s110, %s111
    %p123 = scmp.eq.s32.totalorder %s17, 1
    %p124 = por %p122, %p123
    %p126 = scmp.ne.s32.totalorder %s111, %s125
    %p127 = scmp.eq.s32.totalorder %s17, 0
    %p128 = por %p126, %p127
    %s129 = ssub.s32 %s11, %s18
    %p130 = scmp.eq.s32.totalorder %s129, 0
    %s132 = sadd.s32 %s131, 1
    %s133 = scalar_select %p130, %s131, %s132
    %p136 = pneg %p130
    %p137 = scmp.eq.s32.totalorder %s11, 1
    %p138 = por %p136, %p137
    %p139 = scmp.ne.s32.totalorder %s131, %s134
    %p140 = scmp.eq.s32.totalorder %s11, 0
    %p141 = por %p139, %p140
    %p142 = scmp.ne.s32.totalorder %s131, %s134
    %p143 = scmp.eq.s32.totalorder %s16, 1
    %p144 = por %p142, %p143
    %p145 = scmp.ne.s32.totalorder %s134, %s135
    %p146 = scmp.eq.s32.totalorder %s16, 0
    %p147 = por %p145, %p146
    %p148 = scmp.ne.s32.totalorder %s134, %s135
    %p149 = scmp.eq.s32.totalorder %s17, 1
    %p150 = por %p148, %p149
    %p152 = scmp.ne.s32.totalorder %s135, %s151
    %p153 = scmp.eq.s32.totalorder %s17, 0
    %p154 = por %p152, %p153
    %p155 = scmp.le.s32.totalorder 1, %s11
    %p156 = scmp.lt.s32.totalorder %s11, 3
    %p157 = pnand %p155, %p156
    %p158 = pneg %p157
    // Predicated region
    $region9: #{decoder_forward.7} parent=5 // pred_check
      _
    $region10: #{decoder_forward.7} parent=5 // pred_check_branch
      %160 = sbr.rel (%p157) target = $region12
    $region11: #{decoder_forward.7} parent=5 // pred_region
      %s161 = ssub.s32 %s11, 1
      // Predicated region
      $region13: #{decoder_forward.7} parent=11 // pred_check
        %p162 = pneg %p58
      $region14: #{decoder_forward.7} parent=11 // pred_check_branch
        %164 = sbr.rel (%p162) target = $region16
      $region15: #{decoder_forward.7} parent=11 // pred_region
        _
      $region16: #{decoder_forward.7} parent=11 // pred_fallthru
        _
      // Predicated region
      $region17: #{decoder_forward.7} parent=11 // pred_check
        %p165 = pneg %p79
      $region18: #{decoder_forward.7} parent=11 // pred_check_branch
        %167 = sbr.rel (%p165) target = $region20
      $region19: #{decoder_forward.7} parent=11 // pred_region
        _
      $region20: #{decoder_forward.7} parent=11 // pred_fallthru
        _
      // Predicated region
      $region21: #{decoder_forward.7} parent=11 // pred_check
        %p168 = pneg %p100
      $region22: #{decoder_forward.7} parent=11 // pred_check_branch
        %170 = sbr.rel (%p168) target = $region24
      $region23: #{decoder_forward.7} parent=11 // pred_region
        _
      $region24: #{decoder_forward.7} parent=11 // pred_fallthru
        _
      // Predicated region
      $region25: #{decoder_forward.7} parent=11 // pred_check
        %p171 = pneg %p121
      $region26: #{decoder_forward.7} parent=11 // pred_check_branch
        %173 = sbr.rel (%p171) target = $region28
      $region27: #{decoder_forward.7} parent=11 // pred_region
        _
      $region28: #{decoder_forward.7} parent=11 // pred_fallthru
        _
    $region12: #{decoder_forward.7} parent=5 // pred_fallthru
      _
    %p174 = scmp.lt.s32.totalorder %s11, 2
    // Predicated region
    $region29: #{decoder_forward.7} parent=5 // pred_check
      %p175 = pneg %p174
    $region30: #{decoder_forward.7} parent=5 // pred_check_branch
      %177 = sbr.rel (%p175) target = $region32
    $region31: #{decoder_forward.7} parent=5 // pred_region
      // Predicated region
      $region33: #{decoder_forward.7} parent=31 // pred_check
        %p178 = pneg %p31
      $region34: #{decoder_forward.7} parent=31 // pred_check_branch
        %180 = sbr.rel (%p178) target = $region36
      $region35: #{decoder_forward.7} parent=31 // pred_region
        %p181 = scmp.lt.s32.totalorder %s11, 1
        %s182 = scalar_select %p181, %s11, 1
        %s183 = smul.addr %s182, 12
        %s184 = smul.addr %s183, 4
        %s185 = scalar_lea.vmem %s0, %s184
      $region36: #{decoder_forward.7} parent=31 // pred_fallthru
        _
    $region32: #{decoder_forward.7} parent=5 // pred_fallthru
      _
    %p186 = scmp.le.s32.totalorder 1, %s11
    %p187 = scmp.lt.s32.totalorder %s11, 3
    %p188 = pnand %p186, %p187
    %p189 = pneg %p188
    // Predicated region
    $region37: #{decoder_forward.7} parent=5 // pred_check
      _
    $region38: #{decoder_forward.7} parent=5 // pred_check_branch
      %191 = sbr.rel (%p188) target = $region40
    $region39: #{decoder_forward.7} parent=5 // pred_region
      %s192 = ssub.s32 %s11, 1
      %p193 = scmp.lt.s32.totalorder %s16, 1
      %s194 = scalar_select %p193, %s16, 1
      %s195 = smul.addr %s194, 12
      %s196 = smul.addr %s195, 4
      %s197 = scalar_lea.vmem %s0, %s196
      %p198 = pneg %p37
      %p199 = pneg %p34
      %p200 = pneg %p58
      %p201 = pneg %p55
      %p202 = pneg %p79
      %p203 = pneg %p76
      %p204 = pneg %p100
      %p205 = pneg %p97
      %p206 = pneg %p121
      %p207 = pneg %p118
      %p208 = pneg %p147
      %p209 = pneg %p144
      %p210 = scmp.lt.s32.totalorder %s16, 1
      %s211 = scalar_select %p210, %s16, 1
      %s212 = smul.addr %s211, 8
      %s213 = smul.addr %s212, 8
      %s214 = scalar_lea.vmem %s5, %s213
      %p215 = scmp.lt.s32.totalorder %s16, 1
      %s216 = scalar_select %p215, %s16, 1
      %s217 = smul.addr %s216, 12
      %s218 = smul.addr %s217, 4
      %s219 = scalar_lea.vmem %s0, %s218
      %p220 = scmp.lt.s32.totalorder %s16, 1
      %s221 = scalar_select %p220, %s16, 1
      %s222 = smul.addr %s221, 8
      %s223 = smul.addr %s222, 8
      %s224 = scalar_lea.vmem %s5, %s223
      %vm228 = vcmask 257024
      %229 = vst.msk [vmem:[#allocation2] sm:$0xf] %vm228, 0
      %230 = vst.msk [vmem:[#allocation2 + $0x4] sm:$0xf] %vm228, 0
      %231 = vst.msk [vmem:[#allocation2 + $0x28] sm:$0xf] %vm228, 0
      %232 = vst.msk [vmem:[#allocation2 + $0x2c] sm:$0xf] %vm228, 0
      %233 = vst.msk [vmem:[#allocation3] sm:$0xf] %vm228, 0
      %234 = vst.msk [vmem:[#allocation3 + $0x4] sm:$0xf] %vm228, 0
      %235 = vst.msk [vmem:[#allocation3 + $0x28] sm:$0xf] %vm228, 0
      %236 = vst.msk [vmem:[#allocation3 + $0x2c] sm:$0xf] %vm228, 0
      %v237 = vld [vmem:[%s1] sm:$0xf]
      %v238 = vld [vmem:[%s1 + $0x4] sm:$0xf]
      %v239 = vld [vmem:[%s1 + $0x8] sm:$0xf]
      %v240 = vld [vmem:[%s1 + $0xc] sm:$0xf]
      %v241 = vld [vmem:[%s1 + $0x10] sm:$0xf]
      %v242 = vld [vmem:[%s1 + $0x14] sm:$0xf]
      %v243 = vld [vmem:[%s1 + $0x18] sm:$0xf]
      %v244 = vld [vmem:[%s1 + $0x1c] sm:$0xf]
      %v245 = vld [vmem:[%s1 + $0x20] sm:$0xf]
      %v246 = vld [vmem:[%s1 + $0x24] sm:$0xf]
      %v247 = vld [vmem:[%s1 + $0x28] sm:$0xf]
      %v248 = vld [vmem:[%s1 + $0x2c] sm:$0xf]
      %v249 = vld [vmem:[%s1 + $0x30] sm:$0xf]
      %v250 = vld [vmem:[%s1 + $0x34] sm:$0xf]
      %v251 = vld [vmem:[%s1 + $0x38] sm:$0xf]
      %v252 = vld [vmem:[%s1 + $0x3c] sm:$0xf]
      %v253 = vld [vmem:[%s1 + $0x40] sm:$0xf]
      %v254 = vld [vmem:[%s1 + $0x44] sm:$0xf]
      %v255 = vld [vmem:[%s1 + $0x48] sm:$0xf]
      %v256 = vld [vmem:[%s1 + $0x4c] sm:$0xf]
      %v257 = vld [vmem:[%s1 + $0x50] sm:$0xf]
      %v258 = vld [vmem:[%s1 + $0x54] sm:$0xf]
      %v259 = vld [vmem:[%s1 + $0x58] sm:$0xf]
      %v260 = vld [vmem:[%s1 + $0x5c] sm:$0xf]
      %v261 = vld [vmem:[%s1 + $0x60] sm:$0xf]
      %v262 = vld [vmem:[%s1 + $0x64] sm:$0xf]
      %v263 = vld [vmem:[%s1 + $0x68] sm:$0xf]
      %v264 = vld [vmem:[%s1 + $0x6c] sm:$0xf]
      %v265 = vld [vmem:[%s1 + $0x70] sm:$0xf]
      %v266 = vld [vmem:[%s1 + $0x74] sm:$0xf]
      %v267 = vld [vmem:[%s1 + $0x78] sm:$0xf]
      %v268 = vld [vmem:[%s1 + $0x7c] sm:$0xf]
      %v269 = vld [vmem:[%s1 + $0x80] sm:$0xf]
      %v270 = vld [vmem:[%s1 + $0x84] sm:$0xf]
      %v271 = vld [vmem:[%s1 + $0x88] sm:$0xf]
      %v272 = vld [vmem:[%s1 + $0x8c] sm:$0xf]
      %v273 = vlaneseq
      %v274 = vshrl.u32 %v273, 7
      %v275 = vadd.s32 %v274, 8
      %v276 = vadd.s32 %v274, 16
      %v277 = vadd.s32 %v274, 24
      %v278 = vadd.s32 %v274, 32
      %v279 = vadd.s32 %v274, 40
      %v280 = vadd.s32 %v274, 48
      %v281 = vadd.s32 %v274, 56
      %vm282 = vcmp.lt.s32.totalorder %v274, 0
      %v283 = vsub.s32 0, %v274
      %v284 = vsel %vm282, %v283, %v274
      %v285 = vshrl.u32 %v284, 3
      %v286 = vand.u32 %v284, 7
      %v287 = vsub.s32 0, %v286
      %v288 = vsel %vm282, %v287, %v286
      %vm289 = vcmp.lt.s32.totalorder %v275, 0
      %v290 = vsub.s32 0, %v275
      %v291 = vsel %vm289, %v290, %v275
      %v292 = vshrl.u32 %v291, 3
      %v293 = vand.u32 %v291, 7
      %v294 = vsub.s32 0, %v293
      %v295 = vsel %vm289, %v294, %v293
      %vm296 = vcmp.lt.s32.totalorder %v276, 0
      %v297 = vsub.s32 0, %v276
      %v298 = vsel %vm296, %v297, %v276
      %v299 = vshrl.u32 %v298, 3
      %v300 = vand.u32 %v298, 7
      %v301 = vsub.s32 0, %v300
      %v302 = vsel %vm296, %v301, %v300
      %vm303 = vcmp.lt.s32.totalorder %v277, 0
      %v304 = vsub.s32 0, %v277
      %v305 = vsel %vm303, %v304, %v277
      %v306 = vshrl.u32 %v305, 3
      %v307 = vand.u32 %v305, 7
      %v308 = vsub.s32 0, %v307
      %v309 = vsel %vm303, %v308, %v307
      %vm310 = vcmp.lt.s32.totalorder %v278, 0
      %v311 = vsub.s32 0, %v278
      %v312 = vsel %vm310, %v311, %v278
      %v313 = vshrl.u32 %v312, 3
      %v314 = vand.u32 %v312, 7
      %v315 = vsub.s32 0, %v314
      %v316 = vsel %vm310, %v315, %v314
      %vm317 = vcmp.lt.s32.totalorder %v279, 0
      %v318 = vsub.s32 0, %v279
      %v319 = vsel %vm317, %v318, %v279
      %v320 = vshrl.u32 %v319, 3
      %v321 = vand.u32 %v319, 7
      %v322 = vsub.s32 0, %v321
      %v323 = vsel %vm317, %v322, %v321
      %vm324 = vcmp.lt.s32.totalorder %v280, 0
      %v325 = vsub.s32 0, %v280
      %v326 = vsel %vm324, %v325, %v280
      %v327 = vshrl.u32 %v326, 3
      %v328 = vand.u32 %v326, 7
      %v329 = vsub.s32 0, %v328
      %v330 = vsel %vm324, %v329, %v328
      %vm331 = vcmp.lt.s32.totalorder %v281, 0
      %v332 = vsub.s32 0, %v281
      %v333 = vsel %vm331, %v332, %v281
      %v334 = vshrl.u32 %v333, 3
      %v335 = vand.u32 %v333, 7
      %v336 = vsub.s32 0, %v335
      %v337 = vsel %vm331, %v336, %v335
      %vm338 = vcmp.ne.s32.totalorder %v288, 0
      %vm339 = vcmp.ne.s32.totalorder %v295, 0
      %vm340 = vcmp.ne.s32.totalorder %v302, 0
      %vm341 = vcmp.ne.s32.totalorder %v309, 0
      %vm342 = vcmp.ne.s32.totalorder %v316, 0
      %vm343 = vcmp.ne.s32.totalorder %v323, 0
      %vm344 = vcmp.ne.s32.totalorder %v330, 0
      %vm345 = vcmp.ne.s32.totalorder %v337, 0
      %vm346 = vcmp.lt.s32.totalorder %v288, 0
      %vm347 = vcmp.lt.s32.totalorder %v295, 0
      %vm348 = vcmp.lt.s32.totalorder %v302, 0
      %vm349 = vcmp.lt.s32.totalorder %v309, 0
      %vm350 = vcmp.lt.s32.totalorder %v316, 0
      %vm351 = vcmp.lt.s32.totalorder %v323, 0
      %vm352 = vcmp.lt.s32.totalorder %v330, 0
      %vm353 = vcmp.lt.s32.totalorder %v337, 0
      %vm354 = vmand %vm346, %vm338
      %vm355 = vmand %vm347, %vm339
      %vm356 = vmand %vm348, %vm340
      %vm357 = vmand %vm349, %vm341
      %vm358 = vmand %vm350, %vm342
      %vm359 = vmand %vm351, %vm343
      %vm360 = vmand %vm352, %vm344
      %vm361 = vmand %vm353, %vm345
      %v362 = vadd.s32 %v288, 8
      %v363 = vadd.s32 %v295, 8
      %v364 = vadd.s32 %v302, 8
      %v365 = vadd.s32 %v309, 8
      %v366 = vadd.s32 %v316, 8
      %v367 = vadd.s32 %v323, 8
      %v368 = vadd.s32 %v330, 8
      %v369 = vadd.s32 %v337, 8
      %v370 = vsel %vm354, %v362, %v288
      %v371 = vsel %vm355, %v363, %v295
      %v372 = vsel %vm356, %v364, %v302
      %v373 = vsel %vm357, %v365, %v309
      %v374 = vsel %vm358, %v366, %v316
      %v375 = vsel %vm359, %v367, %v323
      %v376 = vsel %vm360, %v368, %v330
      %v377 = vsel %vm361, %v369, %v337
      %vm378 = vcmp.ne.s32.totalorder %v370, 0
      %vm379 = vcmp.ne.s32.totalorder %v371, 0
      %vm380 = vcmp.ne.s32.totalorder %v372, 0
      %vm381 = vcmp.ne.s32.totalorder %v373, 0
      %vm382 = vcmp.ne.s32.totalorder %v374, 0
      %vm383 = vcmp.ne.s32.totalorder %v375, 0
      %vm384 = vcmp.ne.s32.totalorder %v376, 0
      %vm385 = vcmp.ne.s32.totalorder %v377, 0
      %vm386 = vcmp.ne.s32.totalorder %v370, 7
      %vm387 = vcmp.ne.s32.totalorder %v371, 7
      %vm388 = vcmp.ne.s32.totalorder %v372, 7
      %vm389 = vcmp.ne.s32.totalorder %v373, 7
      %vm390 = vcmp.ne.s32.totalorder %v374, 7
      %vm391 = vcmp.ne.s32.totalorder %v375, 7
      %vm392 = vcmp.ne.s32.totalorder %v376, 7
      %vm393 = vcmp.ne.s32.totalorder %v377, 7
      %v394 = vld [vmem:[%s219] sm:$0x8]
      %v395 = vld [vmem:[%s219 + $0x4] sm:$0xf]
      %v396 = vld [vmem:[%s219 + $0x8] sm:$0xf]
      %v397 = vld [vmem:[%s219 + $0xc] sm:$0xf]
      %v398 = vld [vmem:[%s219 + $0x10] sm:$0xf]
      %v399 = vld [vmem:[%s219 + $0x14] sm:$0xf]
      %v400 = vld [vmem:[%s219 + $0x18] sm:$0xf]
      %v401 = vld [vmem:[%s219 + $0x1c] sm:$0xf]
      %v402 = vld [vmem:[%s219 + $0x20] sm:$0xf]
      %v403 = vsel %vm378, 1, 0
      %v404 = vsel %vm379, 1, 0
      %v405 = vsel %vm380, 1, 0
      %v406 = vsel %vm381, 1, 0
      %v407 = vsel %vm382, 1, 0
      %v408 = vsel %vm383, 1, 0
      %v409 = vsel %vm384, 1, 0
      %v410 = vsel %vm385, 1, 0
      %vm411 = vcmp.eq.s32.totalorder %v403, 1
      %vm412 = vcmp.eq.s32.totalorder %v404, 1
      %vm413 = vcmp.eq.s32.totalorder %v405, 1
      %vm414 = vcmp.eq.s32.totalorder %v406, 1
      %vm415 = vcmp.eq.s32.totalorder %v407, 1
      %vm416 = vcmp.eq.s32.totalorder %v408, 1
      %vm417 = vcmp.eq.s32.totalorder %v409, 1
      %vm418 = vcmp.eq.s32.totalorder %v410, 1
      %vm419 = vmpackc.low %vm411, %vm411
      %vm420 = vmpackc.low %vm412, %vm412
      %vm421 = vmpackc.low %vm413, %vm413
      %vm422 = vmpackc.low %vm414, %vm414
      %vm423 = vmpackc.low %vm415, %vm415
      %vm424 = vmpackc.low %vm416, %vm416
      %vm425 = vmpackc.low %vm417, %vm417
      %vm426 = vmpackc.low %vm418, %vm418
      %v427 = vsel %vm419, 65537, 0
      %v428 = vsel %vm420, 65537, 0
      %v429 = vsel %vm421, 65537, 0
      %v430 = vsel %vm422, 65537, 0
      %v431 = vsel %vm423, 65537, 0
      %v432 = vsel %vm424, 65537, 0
      %v433 = vsel %vm425, 65537, 0
      %v434 = vsel %vm426, 65537, 0
      %vm435 = vsmask.f32 3328
      %vm436 = vsmask.f32 7440
      %vm437 = vmor %vm435, %vm436
      %v439 = vshll.u32 %v427, 16
      %v441 = vrot.slane %v439, 5
      %v442 = vshrl.u32 %v427, 16
      %v444 = vrot.slane %v442, 4
      %v445 = vor.u32 %v444, %v441
      %v446 = vrot.slane %v445, 4
      %v448 = vshll.u32 %v428, 16
      %v450 = vrot.slane %v448, 5
      %v451 = vsel %vm437, %v446, %v450
      %v452 = vshrl.u32 %v428, 16
      %v454 = vrot.slane %v452, 4
      %v455 = vor.u32 %v454, %v450
      %v456 = vrot.slane %v455, 4
      %v458 = vshll.u32 %v429, 16
      %v460 = vrot.slane %v458, 5
      %v461 = vsel %vm437, %v456, %v460
      %v462 = vshrl.u32 %v429, 16
      %v464 = vrot.slane %v462, 4
      %v465 = vor.u32 %v464, %v460
      %v466 = vrot.slane %v465, 4
      %v468 = vshll.u32 %v430, 16
      %v470 = vrot.slane %v468, 5
      %v471 = vsel %vm437, %v466, %v470
      %v472 = vshrl.u32 %v430, 16
      %v474 = vrot.slane %v472, 4
      %v475 = vor.u32 %v474, %v470
      %v476 = vrot.slane %v475, 4
      %v478 = vshll.u32 %v431, 16
      %v480 = vrot.slane %v478, 5
      %v481 = vsel %vm437, %v476, %v480
      %v482 = vshrl.u32 %v431, 16
      %v484 = vrot.slane %v482, 4
      %v485 = vor.u32 %v484, %v480
      %v486 = vrot.slane %v485, 4
      %v488 = vshll.u32 %v432, 16
      %v490 = vrot.slane %v488, 5
      %v491 = vsel %vm437, %v486, %v490
      %v492 = vshrl.u32 %v432, 16
      %v494 = vrot.slane %v492, 4
      %v495 = vor.u32 %v494, %v490
      %v496 = vrot.slane %v495, 4
      %v498 = vshll.u32 %v433, 16
      %v500 = vrot.slane %v498, 5
      %v501 = vsel %vm437, %v496, %v500
      %v502 = vshrl.u32 %v433, 16
      %v504 = vrot.slane %v502, 4
      %v505 = vor.u32 %v504, %v500
      %v506 = vrot.slane %v505, 4
      %v508 = vshll.u32 %v434, 16
      %v510 = vrot.slane %v508, 5
      %v511 = vsel %vm437, %v506, %v510
      %v512 = vshrl.u32 %v434, 16
      %v514 = vrot.slane %v512, 4
      %v515 = vor.u32 %v514, %v510
      %v516 = vrot.slane %v515, 4
      %vm517 = vcmp.ne.s16.totalorder %v441, 0
      %vm518 = vcmp.ne.s16.totalorder %v451, 0
      %vm519 = vcmp.ne.s16.totalorder %v461, 0
      %vm520 = vcmp.ne.s16.totalorder %v471, 0
      %vm521 = vcmp.ne.s16.totalorder %v481, 0
      %vm522 = vcmp.ne.s16.totalorder %v491, 0
      %vm523 = vcmp.ne.s16.totalorder %v501, 0
      %vm524 = vcmp.ne.s16.totalorder %v511, 0
      %vm525 = vcmp.ne.s16.totalorder %v516, 0
      %v526 = vsel %vm517, %v394, 0
      %v527 = vsel %vm518, %v395, 0
      %v528 = vsel %vm519, %v396, 0
      %v529 = vsel %vm520, %v397, 0
      %v530 = vsel %vm521, %v398, 0
      %v531 = vsel %vm522, %v399, 0
      %v532 = vsel %vm523, %v400, 0
      %v533 = vsel %vm524, %v401, 0
      %v534 = vsel %vm525, %v402, 0
      %v535 = vld [vmem:[%s219 + $0x24] sm:$0x1]
      %v536 = vsel %vm386, 1, 0
      %v537 = vsel %vm387, 1, 0
      %v538 = vsel %vm388, 1, 0
      %v539 = vsel %vm389, 1, 0
      %v540 = vsel %vm390, 1, 0
      %v541 = vsel %vm391, 1, 0
      %v542 = vsel %vm392, 1, 0
      %v543 = vsel %vm393, 1, 0
      %vm544 = vcmp.eq.s32.totalorder %v536, 1
      %vm545 = vcmp.eq.s32.totalorder %v537, 1
      %vm546 = vcmp.eq.s32.totalorder %v538, 1
      %vm547 = vcmp.eq.s32.totalorder %v539, 1
      %vm548 = vcmp.eq.s32.totalorder %v540, 1
      %vm549 = vcmp.eq.s32.totalorder %v541, 1
      %vm550 = vcmp.eq.s32.totalorder %v542, 1
      %vm551 = vcmp.eq.s32.totalorder %v543, 1
      %vm552 = vmpackc.low %vm544, %vm544
      %vm553 = vmpackc.low %vm545, %vm545
      %vm554 = vmpackc.low %vm546, %vm546
      %vm555 = vmpackc.low %vm547, %vm547
      %vm556 = vmpackc.low %vm548, %vm548
      %vm557 = vmpackc.low %vm549, %vm549
      %vm558 = vmpackc.low %vm550, %vm550
      %vm559 = vmpackc.low %vm551, %vm551
      %v560 = vsel %vm552, 65537, 0
      %v561 = vsel %vm553, 65537, 0
      %v562 = vsel %vm554, 65537, 0
      %v563 = vsel %vm555, 65537, 0
      %v564 = vsel %vm556, 65537, 0
      %v565 = vsel %vm557, 65537, 0
      %v566 = vsel %vm558, 65537, 0
      %v567 = vsel %vm559, 65537, 0
      %vm568 = vsmask.f32 256
      %vm569 = vsmask.f32 4368
      %vm570 = vmor %vm568, %vm569
      %v572 = vshrl.u32 %v560, 16
      %v574 = vrot.slane %v572, 7
      %v575 = vshll.u32 %v560, 16
      %v577 = vor.u32 %v574, %v575
      %v578 = vrot.slane %v574, 4
      %v580 = vshrl.u32 %v561, 16
      %v582 = vrot.slane %v580, 7
      %v583 = vshll.u32 %v561, 16
      %v585 = vor.u32 %v582, %v583
      %v586 = vsel %vm570, %v578, %v585
      %v587 = vrot.slane %v582, 4
      %v589 = vshrl.u32 %v562, 16
      %v591 = vrot.slane %v589, 7
      %v592 = vshll.u32 %v562, 16
      %v594 = vor.u32 %v591, %v592
      %v595 = vsel %vm570, %v587, %v594
      %v596 = vrot.slane %v591, 4
      %v598 = vshrl.u32 %v563, 16
      %v600 = vrot.slane %v598, 7
      %v601 = vshll.u32 %v563, 16
      %v603 = vor.u32 %v600, %v601
      %v604 = vsel %vm570, %v596, %v603
      %v605 = vrot.slane %v600, 4
      %v607 = vshrl.u32 %v564, 16
      %v609 = vrot.slane %v607, 7
      %v610 = vshll.u32 %v564, 16
      %v612 = vor.u32 %v609, %v610
      %v613 = vsel %vm570, %v605, %v612
      %v614 = vrot.slane %v609, 4
      %v616 = vshrl.u32 %v565, 16
      %v618 = vrot.slane %v616, 7
      %v619 = vshll.u32 %v565, 16
      %v621 = vor.u32 %v618, %v619
      %v622 = vsel %vm570, %v614, %v621
      %v623 = vrot.slane %v618, 4
      %v625 = vshrl.u32 %v566, 16
      %v627 = vrot.slane %v625, 7
      %v628 = vshll.u32 %v566, 16
      %v630 = vor.u32 %v627, %v628
      %v631 = vsel %vm570, %v623, %v630
      %v632 = vrot.slane %v627, 4
      %v634 = vshrl.u32 %v567, 16
      %v636 = vrot.slane %v634, 7
      %v637 = vshll.u32 %v567, 16
      %v639 = vor.u32 %v636, %v637
      %v640 = vsel %vm570, %v632, %v639
      %v641 = vrot.slane %v636, 4
      %vm642 = vcmp.ne.s16.totalorder %v577, 0
      %vm643 = vcmp.ne.s16.totalorder %v586, 0
      %vm644 = vcmp.ne.s16.totalorder %v595, 0
      %vm645 = vcmp.ne.s16.totalorder %v604, 0
      %vm646 = vcmp.ne.s16.totalorder %v613, 0
      %vm647 = vcmp.ne.s16.totalorder %v622, 0
      %vm648 = vcmp.ne.s16.totalorder %v631, 0
      %vm649 = vcmp.ne.s16.totalorder %v640, 0
      %vm650 = vcmp.ne.s16.totalorder %v641, 0
      %v651 = vsel %vm642, %v395, 0
      %v652 = vsel %vm643, %v396, 0
      %v653 = vsel %vm644, %v397, 0
      %v654 = vsel %vm645, %v398, 0
      %v655 = vsel %vm646, %v399, 0
      %v656 = vsel %vm647, %v400, 0
      %v657 = vsel %vm648, %v401, 0
      %v658 = vsel %vm649, %v402, 0
      %v659 = vsel %vm650, %v535, 0
      %v660 = vld [vmem:[%s219 + $0x4] sm:$0x8]
      %v661 = vld [vmem:[%s219 + $0x24] sm:$0xf]
      %v662 = vsel %vm517, %v660, 0
      %v663 = vsel %vm518, %v396, 0
      %v664 = vsel %vm519, %v397, 0
      %v665 = vsel %vm520, %v398, 0
      %v666 = vsel %vm521, %v399, 0
      %v667 = vsel %vm522, %v400, 0
      %v668 = vsel %vm523, %v401, 0
      %v669 = vsel %vm524, %v402, 0
      %v670 = vsel %vm525, %v661, 0
      %v671 = vld [vmem:[%s219 + $0x28] sm:$0x1]
      %v672 = vsel %vm642, %v396, 0
      %v673 = vsel %vm643, %v397, 0
      %v674 = vsel %vm644, %v398, 0
      %v675 = vsel %vm645, %v399, 0
      %v676 = vsel %vm646, %v400, 0
      %v677 = vsel %vm647, %v401, 0
      %v678 = vsel %vm648, %v402, 0
      %v679 = vsel %vm649, %v661, 0
      %v680 = vsel %vm650, %v671, 0
      %v681 = vld [vmem:[%s219 + $0x8] sm:$0x8]
      %v682 = vld [vmem:[%s219 + $0x28] sm:$0xf]
      %v683 = vsel %vm517, %v681, 0
      %v684 = vsel %vm518, %v397, 0
      %v685 = vsel %vm519, %v398, 0
      %v686 = vsel %vm520, %v399, 0
      %v687 = vsel %vm521, %v400, 0
      %v688 = vsel %vm522, %v401, 0
      %v689 = vsel %vm523, %v402, 0
      %v690 = vsel %vm524, %v661, 0
      %v691 = vsel %vm525, %v682, 0
      %v692 = vld [vmem:[%s219 + $0x2c] sm:$0x1]
      %v693 = vsel %vm642, %v397, 0
      %v694 = vsel %vm643, %v398, 0
      %v695 = vsel %vm644, %v399, 0
      %v696 = vsel %vm645, %v400, 0
      %v697 = vsel %vm646, %v401, 0
      %v698 = vsel %vm647, %v402, 0
      %v699 = vsel %vm648, %v661, 0
      %v700 = vsel %vm649, %v682, 0
      %v701 = vsel %vm650, %v692, 0
      %v711 = vunpack.c.l.b16 %v526
      %v712 = vunpack.c.l.b16 %v527
      %v713 = vunpack.c.l.b16 %v528
      %v714 = vunpack.c.l.b16 %v529
      %v715 = vunpack.c.l.b16 %v530
      %v716 = vunpack.c.l.b16 %v531
      %v717 = vunpack.c.l.b16 %v532
      %v718 = vunpack.c.l.b16 %v533
      %v719 = vunpack.c.l.b16 %v534
      %v720 = vpack.c.b16 %v712, %v711
      %v721 = vpack.c.b16 %v714, %v713
      %v722 = vpack.c.b16 %v716, %v715
      %v723 = vpack.c.b16 %v718, %v717
      %v724 = vpack.c.b16 %v719, %v719
      %v733 = vunpack.c.l.b16 %v395
      %v734 = vunpack.c.l.b16 %v396
      %v735 = vunpack.c.l.b16 %v397
      %v736 = vunpack.c.l.b16 %v398
      %v737 = vunpack.c.l.b16 %v399
      %v738 = vunpack.c.l.b16 %v400
      %v739 = vunpack.c.l.b16 %v401
      %v740 = vunpack.c.l.b16 %v402
      %v741 = vpack.c.b16 %v734, %v733
      %v742 = vpack.c.b16 %v736, %v735
      %v743 = vpack.c.b16 %v738, %v737
      %v744 = vpack.c.b16 %v740, %v739
      %v746 = vshrl.u32 %v741, 16
      %v748 = vrot.slane %v746, 4
      %v749 = vshll.u32 %v741, 16
      %v751 = vrot.slane %v749, 5
      %v752 = vor.u32 %v748, %v751
      %v754 = vshrl.u32 %v742, 16
      %v756 = vrot.slane %v754, 4
      %v757 = vshll.u32 %v742, 16
      %v759 = vrot.slane %v757, 5
      %v760 = vor.u32 %v756, %v759
      %v761 = vsel %vm435, %v752, %v760
      %v763 = vshrl.u32 %v743, 16
      %v765 = vrot.slane %v763, 4
      %v766 = vshll.u32 %v743, 16
      %v768 = vrot.slane %v766, 5
      %v769 = vor.u32 %v765, %v768
      %v770 = vsel %vm435, %v760, %v769
      %v772 = vshrl.u32 %v744, 16
      %v774 = vrot.slane %v772, 4
      %v775 = vshll.u32 %v744, 16
      %v777 = vrot.slane %v775, 5
      %v778 = vor.u32 %v774, %v777
      %v779 = vsel %vm435, %v769, %v778
      %780 = vrot.lane.b32.xlu0 %v752, 32
      %v781 = vpop.permute.xlu0 %780
      %782 = vrot.lane.b32.xlu0 %v761, 32
      %v783 = vpop.permute.xlu0 %782
      %784 = vrot.lane.b32.xlu0 %v770, 32
      %v785 = vpop.permute.xlu0 %784
      %786 = vrot.lane.b32.xlu0 %v779, 32
      %v787 = vpop.permute.xlu0 %786
      %788 = vrot.lane.b32.xlu0 %v778, 32
      %v789 = vpop.permute.xlu0 %788
      %v799 = vunpack.c.l.b16 %v651
      %v800 = vunpack.c.l.b16 %v652
      %v801 = vunpack.c.l.b16 %v653
      %v802 = vunpack.c.l.b16 %v654
      %v803 = vunpack.c.l.b16 %v655
      %v804 = vunpack.c.l.b16 %v656
      %v805 = vunpack.c.l.b16 %v657
      %v806 = vunpack.c.l.b16 %v658
      %v807 = vunpack.c.l.b16 %v659
      %v808 = vpack.c.b16 %v800, %v799
      %v809 = vpack.c.b16 %v802, %v801
      %v810 = vpack.c.b16 %v804, %v803
      %v811 = vpack.c.b16 %v806, %v805
      %v812 = vpack.c.b16 %v807, %v807
      %vm813 = vcmask 1042432
      %v814 = vrot.slane %v808, 5
      %v815 = vrot.slane %v809, 5
      %v816 = vsel %vm813, %v814, %v815
      %v817 = vrot.slane %v810, 5
      %v818 = vsel %vm813, %v815, %v817
      %v819 = vrot.slane %v811, 5
      %v820 = vsel %vm813, %v817, %v819
      %v821 = vrot.slane %v812, 5
      %v822 = vsel %vm813, %v819, %v821
      %823 = vrot.lane.b32.xlu0 %v814, 64
      %v824 = vpop.permute.xlu0 %823
      %825 = vrot.lane.b32.xlu0 %v816, 64
      %v826 = vpop.permute.xlu0 %825
      %827 = vrot.lane.b32.xlu0 %v818, 64
      %v828 = vpop.permute.xlu0 %827
      %829 = vrot.lane.b32.xlu0 %v820, 64
      %v830 = vpop.permute.xlu0 %829
      %831 = vrot.lane.b32.xlu0 %v822, 64
      %v832 = vpop.permute.xlu0 %831
      %v842 = vunpack.c.l.b16 %v662
      %v843 = vunpack.c.l.b16 %v663
      %v844 = vunpack.c.l.b16 %v664
      %v845 = vunpack.c.l.b16 %v665
      %v846 = vunpack.c.l.b16 %v666
      %v847 = vunpack.c.l.b16 %v667
      %v848 = vunpack.c.l.b16 %v668
      %v849 = vunpack.c.l.b16 %v669
      %v850 = vunpack.c.l.b16 %v670
      %v851 = vpack.c.b16 %v843, %v842
      %v852 = vpack.c.b16 %v845, %v844
      %v853 = vpack.c.b16 %v847, %v846
      %v854 = vpack.c.b16 %v849, %v848
      %v855 = vpack.c.b16 %v850, %v850
      %856 = vrot.lane.b32.xlu0 %v851, 96
      %v857 = vpop.permute.xlu0 %856
      %858 = vrot.lane.b32.xlu0 %v852, 96
      %v859 = vpop.permute.xlu0 %858
      %860 = vrot.lane.b32.xlu0 %v853, 96
      %v861 = vpop.permute.xlu0 %860
      %862 = vrot.lane.b32.xlu0 %v854, 96
      %v863 = vpop.permute.xlu0 %862
      %864 = vrot.lane.b32.xlu0 %v855, 96
      %v865 = vpop.permute.xlu0 %864
      %v867 = vunpack.c.l.b16 %v661
      %v868 = vpack.c.b16 %v735, %v734
      %v869 = vpack.c.b16 %v737, %v736
      %v870 = vpack.c.b16 %v739, %v738
      %v871 = vpack.c.b16 %v867, %v740
      %v873 = vshrl.u32 %v868, 16
      %v875 = vrot.slane %v873, 4
      %v876 = vshll.u32 %v868, 16
      %v878 = vrot.slane %v876, 5
      %v879 = vor.u32 %v875, %v878
      %v881 = vshrl.u32 %v869, 16
      %v883 = vrot.slane %v881, 4
      %v884 = vshll.u32 %v869, 16
      %v886 = vrot.slane %v884, 5
      %v887 = vor.u32 %v883, %v886
      %v888 = vsel %vm435, %v879, %v887
      %v890 = vshrl.u32 %v870, 16
      %v892 = vrot.slane %v890, 4
      %v893 = vshll.u32 %v870, 16
      %v895 = vrot.slane %v893, 5
      %v896 = vor.u32 %v892, %v895
      %v897 = vsel %vm435, %v887, %v896
      %v899 = vshrl.u32 %v871, 16
      %v901 = vrot.slane %v899, 4
      %v902 = vshll.u32 %v871, 16
      %v904 = vrot.slane %v902, 5
      %v905 = vor.u32 %v901, %v904
      %v906 = vsel %vm435, %v896, %v905
      %v916 = vunpack.c.l.b16 %v672
      %v917 = vunpack.c.l.b16 %v673
      %v918 = vunpack.c.l.b16 %v674
      %v919 = vunpack.c.l.b16 %v675
      %v920 = vunpack.c.l.b16 %v676
      %v921 = vunpack.c.l.b16 %v677
      %v922 = vunpack.c.l.b16 %v678
      %v923 = vunpack.c.l.b16 %v679
      %v924 = vunpack.c.l.b16 %v680
      %v925 = vpack.c.b16 %v917, %v916
      %v926 = vpack.c.b16 %v919, %v918
      %v927 = vpack.c.b16 %v921, %v920
      %v928 = vpack.c.b16 %v923, %v922
      %v929 = vpack.c.b16 %v924, %v924
      %v930 = vrot.slane %v925, 5
      %v931 = vrot.slane %v926, 5
      %v932 = vsel %vm813, %v930, %v931
      %v933 = vrot.slane %v927, 5
      %v934 = vsel %vm813, %v931, %v933
      %v935 = vrot.slane %v928, 5
      %v936 = vsel %vm813, %v933, %v935
      %v937 = vrot.slane %v929, 5
      %v938 = vsel %vm813, %v935, %v937
      %939 = vrot.lane.b32.xlu0 %v930, 32
      %v940 = vpop.permute.xlu0 %939
      %941 = vrot.lane.b32.xlu0 %v932, 32
      %v942 = vpop.permute.xlu0 %941
      %943 = vrot.lane.b32.xlu0 %v934, 32
      %v944 = vpop.permute.xlu0 %943
      %945 = vrot.lane.b32.xlu0 %v936, 32
      %v946 = vpop.permute.xlu0 %945
      %947 = vrot.lane.b32.xlu0 %v938, 32
      %v948 = vpop.permute.xlu0 %947
      %v958 = vunpack.c.l.b16 %v683
      %v959 = vunpack.c.l.b16 %v684
      %v960 = vunpack.c.l.b16 %v685
      %v961 = vunpack.c.l.b16 %v686
      %v962 = vunpack.c.l.b16 %v687
      %v963 = vunpack.c.l.b16 %v688
      %v964 = vunpack.c.l.b16 %v689
      %v965 = vunpack.c.l.b16 %v690
      %v966 = vunpack.c.l.b16 %v691
      %v967 = vpack.c.b16 %v959, %v958
      %v968 = vpack.c.b16 %v961, %v960
      %v969 = vpack.c.b16 %v963, %v962
      %v970 = vpack.c.b16 %v965, %v964
      %v971 = vpack.c.b16 %v966, %v966
      %972 = vrot.lane.b32.xlu0 %v967, 64
      %v973 = vpop.permute.xlu0 %972
      %974 = vrot.lane.b32.xlu0 %v968, 64
      %v975 = vpop.permute.xlu0 %974
      %976 = vrot.lane.b32.xlu0 %v969, 64
      %v977 = vpop.permute.xlu0 %976
      %978 = vrot.lane.b32.xlu0 %v970, 64
      %v979 = vpop.permute.xlu0 %978
      %980 = vrot.lane.b32.xlu0 %v971, 64
      %v981 = vpop.permute.xlu0 %980
      %v983 = vunpack.c.l.b16 %v682
      %v984 = vpack.c.b16 %v983, %v867
      %v986 = vshrl.u32 %v984, 16
      %v988 = vrot.slane %v986, 4
      %v989 = vshll.u32 %v984, 16
      %v991 = vrot.slane %v989, 5
      %v992 = vor.u32 %v988, %v991
      %v993 = vsel %vm435, %v778, %v992
      %994 = vrot.lane.b32.xlu0 %v760, 96
      %v995 = vpop.permute.xlu0 %994
      %996 = vrot.lane.b32.xlu0 %v770, 96
      %v997 = vpop.permute.xlu0 %996
      %998 = vrot.lane.b32.xlu0 %v779, 96
      %v999 = vpop.permute.xlu0 %998
      %1000 = vrot.lane.b32.xlu0 %v993, 96
      %v1001 = vpop.permute.xlu0 %1000
      %1002 = vrot.lane.b32.xlu0 %v992, 96
      %v1003 = vpop.permute.xlu0 %1002
      %v1013 = vunpack.c.l.b16 %v693
      %v1014 = vunpack.c.l.b16 %v694
      %v1015 = vunpack.c.l.b16 %v695
      %v1016 = vunpack.c.l.b16 %v696
      %v1017 = vunpack.c.l.b16 %v697
      %v1018 = vunpack.c.l.b16 %v698
      %v1019 = vunpack.c.l.b16 %v699
      %v1020 = vunpack.c.l.b16 %v700
      %v1021 = vunpack.c.l.b16 %v701
      %v1022 = vpack.c.b16 %v1014, %v1013
      %v1023 = vpack.c.b16 %v1016, %v1015
      %v1024 = vpack.c.b16 %v1018, %v1017
      %v1025 = vpack.c.b16 %v1020, %v1019
      %v1026 = vpack.c.b16 %v1021, %v1021
      %v1027 = vrot.slane %v1022, 5
      %v1028 = vrot.slane %v1023, 5
      %v1029 = vsel %vm813, %v1027, %v1028
      %v1030 = vrot.slane %v1024, 5
      %v1031 = vsel %vm813, %v1028, %v1030
      %v1032 = vrot.slane %v1025, 5
      %v1033 = vsel %vm813, %v1030, %v1032
      %v1034 = vrot.slane %v1026, 5
      %v1035 = vsel %vm813, %v1032, %v1034
      %vm1036 = vcmask 261120
      %v1039 = vsel %vm1036, %v720, %v781
      %v1042 = vsel %vm1036, %v721, %v783
      %v1045 = vsel %vm1036, %v722, %v785
      %v1048 = vsel %vm1036, %v723, %v787
      %v1051 = vsel %vm1036, %v724, %v789
      %vm1052 = vcmask 523264
      %v1054 = vsel %vm1052, %v1039, %v824
      %v1056 = vsel %vm1052, %v1042, %v826
      %v1058 = vsel %vm1052, %v1045, %v828
      %v1060 = vsel %vm1052, %v1048, %v830
      %v1062 = vsel %vm1052, %v1051, %v832
      %vm1063 = vcmask 785408
      %v1065 = vsel %vm1063, %v1054, %v857
      %v1067 = vsel %vm1063, %v1056, %v859
      %v1069 = vsel %vm1063, %v1058, %v861
      %v1071 = vsel %vm1063, %v1060, %v863
      %v1073 = vsel %vm1063, %v1062, %v865
      %v1076 = vsel %vm1036, %v879, %v940
      %v1079 = vsel %vm1036, %v888, %v942
      %v1082 = vsel %vm1036, %v897, %v944
      %v1085 = vsel %vm1036, %v906, %v946
      %v1088 = vsel %vm1036, %v905, %v948
      %v1090 = vsel %vm1052, %v1076, %v973
      %v1092 = vsel %vm1052, %v1079, %v975
      %v1094 = vsel %vm1052, %v1082, %v977
      %v1096 = vsel %vm1052, %v1085, %v979
      %v1098 = vsel %vm1052, %v1088, %v981
      %v1100 = vsel %vm1063, %v1090, %v995
      %v1102 = vsel %vm1063, %v1092, %v997
      %v1104 = vsel %vm1063, %v1094, %v999
      %v1106 = vsel %vm1063, %v1096, %v1001
      %v1108 = vsel %vm1063, %v1098, %v1003
      %vm1109 = vsmask.f32 4352
      %v1110 = vshrl.u32 %v1065, 16
      %v1112 = vrot.slane %v1110, 3
      %v1113 = vshll.u32 %v1065, 16
      %v1115 = vrot.slane %v1113, 4
      %v1116 = vor.u32 %v1112, %v1115
      %v1117 = vshrl.u32 %v1067, 16
      %v1119 = vrot.slane %v1117, 3
      %v1120 = vshll.u32 %v1067, 16
      %v1122 = vrot.slane %v1120, 4
      %v1123 = vor.u32 %v1119, %v1122
      %v1124 = vsel %vm1109, %v1116, %v1123
      %v1125 = vshrl.u32 %v1100, 16
      %v1127 = vrot.slane %v1125, 3
      %v1128 = vshll.u32 %v1100, 16
      %v1130 = vrot.slane %v1128, 4
      %v1131 = vor.u32 %v1127, %v1130
      %v1132 = vshrl.u32 %v1102, 16
      %v1134 = vrot.slane %v1132, 3
      %v1135 = vshll.u32 %v1102, 16
      %v1137 = vrot.slane %v1135, 4
      %v1138 = vor.u32 %v1134, %v1137
      %v1139 = vsel %vm1109, %v1131, %v1138
      %v1141 = vshrl.u32 %v1027, 16
      %v1143 = vrot.slane %v1141, 3
      %v1144 = vshll.u32 %v1027, 16
      %v1146 = vrot.slane %v1144, 4
      %v1147 = vor.u32 %v1143, %v1146
      %v1149 = vshrl.u32 %v1029, 16
      %v1151 = vrot.slane %v1149, 3
      %v1152 = vshll.u32 %v1029, 16
      %v1154 = vrot.slane %v1152, 4
      %v1155 = vor.u32 %v1151, %v1154
      %v1156 = vsel %vm1109, %v1147, %v1155
      %v1157 = vshrl.u32 %v1069, 16
      %v1159 = vrot.slane %v1157, 3
      %v1160 = vshll.u32 %v1069, 16
      %v1162 = vrot.slane %v1160, 4
      %v1163 = vor.u32 %v1159, %v1162
      %v1164 = vsel %vm1109, %v1123, %v1163
      %v1165 = vshrl.u32 %v1104, 16
      %v1167 = vrot.slane %v1165, 3
      %v1168 = vshll.u32 %v1104, 16
      %v1170 = vrot.slane %v1168, 4
      %v1171 = vor.u32 %v1167, %v1170
      %v1172 = vsel %vm1109, %v1138, %v1171
      %v1174 = vshrl.u32 %v1031, 16
      %v1176 = vrot.slane %v1174, 3
      %v1177 = vshll.u32 %v1031, 16
      %v1179 = vrot.slane %v1177, 4
      %v1180 = vor.u32 %v1176, %v1179
      %v1181 = vsel %vm1109, %v1155, %v1180
      %v1182 = vshrl.u32 %v1071, 16
      %v1184 = vrot.slane %v1182, 3
      %v1185 = vshll.u32 %v1071, 16
      %v1187 = vrot.slane %v1185, 4
      %v1188 = vor.u32 %v1184, %v1187
      %v1189 = vsel %vm1109, %v1163, %v1188
      %v1190 = vshrl.u32 %v1106, 16
      %v1192 = vrot.slane %v1190, 3
      %v1193 = vshll.u32 %v1106, 16
      %v1195 = vrot.slane %v1193, 4
      %v1196 = vor.u32 %v1192, %v1195
      %v1197 = vsel %vm1109, %v1171, %v1196
      %v1199 = vshrl.u32 %v1033, 16
      %v1201 = vrot.slane %v1199, 3
      %v1202 = vshll.u32 %v1033, 16
      %v1204 = vrot.slane %v1202, 4
      %v1205 = vor.u32 %v1201, %v1204
      %v1206 = vsel %vm1109, %v1180, %v1205
      %v1207 = vshrl.u32 %v1073, 16
      %v1209 = vrot.slane %v1207, 3
      %v1210 = vshll.u32 %v1073, 16
      %v1212 = vrot.slane %v1210, 4
      %v1213 = vor.u32 %v1209, %v1212
      %v1214 = vsel %vm1109, %v1188, %v1213
      %v1215 = vshrl.u32 %v1108, 16
      %v1217 = vrot.slane %v1215, 3
      %v1218 = vshll.u32 %v1108, 16
      %v1220 = vrot.slane %v1218, 4
      %v1221 = vor.u32 %v1217, %v1220
      %v1222 = vsel %vm1109, %v1196, %v1221
      %v1224 = vshrl.u32 %v1035, 16
      %v1226 = vrot.slane %v1224, 3
      %v1227 = vshll.u32 %v1035, 16
      %v1229 = vrot.slane %v1227, 4
      %v1230 = vor.u32 %v1226, %v1229
      %v1231 = vsel %vm1109, %v1205, %v1230
      %v1276 = vunpack.c.l.b16 %v237
      %v1277 = vunpack.c.l.b16 %v238
      %v1278 = vunpack.c.l.b16 %v239
      %v1279 = vunpack.c.l.b16 %v240
      %v1280 = vunpack.c.l.b16 %v241
      %v1281 = vunpack.c.l.b16 %v242
      %v1282 = vunpack.c.l.b16 %v243
      %v1283 = vunpack.c.l.b16 %v244
      %v1284 = vunpack.c.l.b16 %v245
      %v1285 = vunpack.c.l.b16 %v246
      %v1286 = vunpack.c.l.b16 %v247
      %v1287 = vunpack.c.l.b16 %v248
      %v1288 = vunpack.c.l.b16 %v249
      %v1289 = vunpack.c.l.b16 %v250
      %v1290 = vunpack.c.l.b16 %v251
      %v1291 = vunpack.c.l.b16 %v252
      %v1292 = vunpack.c.l.b16 %v253
      %v1293 = vunpack.c.l.b16 %v254
      %v1294 = vunpack.c.l.b16 %v255
      %v1295 = vunpack.c.l.b16 %v256
      %v1296 = vunpack.c.l.b16 %v257
      %v1297 = vunpack.c.l.b16 %v258
      %v1298 = vunpack.c.l.b16 %v259
      %v1299 = vunpack.c.l.b16 %v260
      %v1300 = vunpack.c.l.b16 %v261
      %v1301 = vunpack.c.l.b16 %v262
      %v1302 = vunpack.c.l.b16 %v263
      %v1303 = vunpack.c.l.b16 %v264
      %v1304 = vunpack.c.l.b16 %v265
      %v1305 = vunpack.c.l.b16 %v266
      %v1306 = vunpack.c.l.b16 %v267
      %v1307 = vunpack.c.l.b16 %v268
      %v1308 = vunpack.c.l.b16 %v269
      %v1309 = vunpack.c.l.b16 %v270
      %v1310 = vunpack.c.l.b16 %v271
      %v1311 = vunpack.c.l.b16 %v272
      %v1312 = vpack.c.b16 %v1277, %v1276
      %v1313 = vpack.c.b16 %v1279, %v1278
      %v1314 = vpack.c.b16 %v1281, %v1280
      %v1315 = vpack.c.b16 %v1283, %v1282
      %v1316 = vpack.c.b16 %v1285, %v1284
      %v1317 = vpack.c.b16 %v1287, %v1286
      %v1318 = vpack.c.b16 %v1289, %v1288
      %v1319 = vpack.c.b16 %v1291, %v1290
      %v1320 = vpack.c.b16 %v1293, %v1292
      %v1321 = vpack.c.b16 %v1295, %v1294
      %v1322 = vpack.c.b16 %v1297, %v1296
      %v1323 = vpack.c.b16 %v1299, %v1298
      %v1324 = vpack.c.b16 %v1301, %v1300
      %v1325 = vpack.c.b16 %v1303, %v1302
      %v1326 = vpack.c.b16 %v1305, %v1304
      %v1327 = vpack.c.b16 %v1307, %v1306
      %v1328 = vpack.c.b16 %v1309, %v1308
      %v1329 = vpack.c.b16 %v1311, %v1310
      %v1349 = vsel %vm1036, %v1156, 0
      %v1352 = vsel %vm1036, %v1181, 0
      %v1355 = vsel %vm1036, %v1206, 0
      %v1358 = vsel %vm1036, %v1231, 0
      %1360 = vmatprep.subr.bf16.mxu0 0
      %1361 = vmatpush1.bf16.msra.mxu0 %v1319
      %1362 = vmatprep.subr.bf16.mxu0 0
      %1363 = vmatpush1.bf16.msra.mxu0 %v1318
      %1364 = vmatprep.subr.bf16.mxu0 0
      %1365 = vmatpush1.bf16.msra.mxu0 %v1317
      %1366 = vmatprep.subr.bf16.mxu0 0
      %1367 = vmatpush1.bf16.msra.mxu0 %v1316
      %1368 = vmatprep.subr.bf16.mxu0 0
      %1369 = vmatpush1.bf16.msra.mxu0 %v1315
      %1370 = vmatprep.subr.bf16.mxu0 0
      %1371 = vmatpush1.bf16.msra.mxu0 %v1314
      %1372 = vmatprep.subr.bf16.mxu0 0
      %1373 = vmatpush1.bf16.msra.mxu0 %v1313
      %1374 = vmatprep.subr.bf16.mxu0 0
      %1375 = vmatpush1.bf16.msra.mxu0 %v1312
      %1376 = vmatprep.subr.bf16.mxu0 0
      %1377 = vmatpush2.bf16.msra.mxu0 %v1327
      %1378 = vmatprep.subr.bf16.mxu0 0
      %1379 = vmatpush2.bf16.msra.mxu0 %v1326
      %1380 = vmatprep.subr.bf16.mxu0 0
      %1381 = vmatpush2.bf16.msra.mxu0 %v1325
      %1382 = vmatprep.subr.bf16.mxu0 0
      %1383 = vmatpush2.bf16.msra.mxu0 %v1324
      %1384 = vmatprep.subr.bf16.mxu0 0
      %1385 = vmatpush2.bf16.msra.mxu0 %v1323
      %1386 = vmatprep.subr.bf16.mxu0 0
      %1387 = vmatpush2.bf16.msra.mxu0 %v1322
      %1388 = vmatprep.subr.bf16.mxu0 0
      %1389 = vmatpush2.bf16.msra.mxu0 %v1321
      %1390 = vmatprep.subr.bf16.mxu0 0
      %1391 = vmatpush2.bf16.msra.mxu0 %v1320
      %1392 = vmatprep.mubr.bf16.mxu0 %v1139
      %1393 = vmatmul.mubr.bf16.gmra.mxu0 %v1124
      %v1394 = vpop.f32.mrf.mxu0
      %v1395 = vadd.f32 0.0, %v1394
      %v1396 = vpop.f32.mrf.mxu0
      %v1397 = vpop.f32.mrf.mxu0
      %v1398 = vadd.f32 0.0, %v1397
      %v1399 = vpop.f32.mrf.mxu0
      %1400 = vmatprep.mubr.bf16.mxu0 %v1172
      %1401 = vmatmul.mubr.bf16.gmra.mxu0 %v1164
      %v1402 = vpop.f32.mrf.mxu0
      %v1403 = vadd.f32 0.0, %v1402
      %v1404 = vpop.f32.mrf.mxu0
      %v1405 = vpop.f32.mrf.mxu0
      %v1406 = vadd.f32 0.0, %v1405
      %v1407 = vpop.f32.mrf.mxu0
      %1408 = vmatprep.mubr.bf16.mxu0 %v1197
      %1409 = vmatmul.mubr.bf16.gmra.mxu0 %v1189
      %v1410 = vpop.f32.mrf.mxu0
      %v1411 = vadd.f32 0.0, %v1410
      %v1412 = vpop.f32.mrf.mxu0
      %v1413 = vpop.f32.mrf.mxu0
      %v1414 = vadd.f32 0.0, %v1413
      %v1415 = vpop.f32.mrf.mxu0
      %1416 = vmatprep.mubr.bf16.mxu0 %v1222
      %1417 = vmatmul.mubr.bf16.gmra.mxu0 %v1214
      %v1418 = vpop.f32.mrf.mxu0
      %v1419 = vadd.f32 0.0, %v1418
      %v1420 = vpop.f32.mrf.mxu0
      %v1421 = vpop.f32.mrf.mxu0
      %v1422 = vadd.f32 0.0, %v1421
      %v1423 = vpop.f32.mrf.mxu0
      %1424 = vdwg.mxu0
      %1425 = vmatprep.subr.bf16.mxu0 0
      %1426 = vmatpush1.bf16.msra.mxu0 0
      %1427 = vmatprep.subr.bf16.mxu0 0
      %1428 = vmatpush1.bf16.msra.mxu0 0
      %1429 = vmatprep.subr.bf16.mxu0 0
      %1430 = vmatpush1.bf16.msra.mxu0 0
      %1431 = vmatprep.subr.bf16.mxu0 0
      %1432 = vmatpush1.bf16.msra.mxu0 0
      %1433 = vmatprep.subr.bf16.mxu0 0
      %1434 = vmatpush1.bf16.msra.mxu0 0
      %1435 = vmatprep.subr.bf16.mxu0 0
      %1436 = vmatpush1.bf16.msra.mxu0 0
      %1437 = vmatprep.subr.bf16.mxu0 0
      %1438 = vmatpush1.bf16.msra.mxu0 %v1329
      %1439 = vmatprep.subr.bf16.mxu0 0
      %1440 = vmatpush1.bf16.msra.mxu0 %v1328
      %1441 = vmatprep.subr.bf16.mxu0 0
      %1442 = vmatpush2.bf16.msra.mxu0 0
      %1443 = vmatprep.subr.bf16.mxu0 0
      %1444 = vmatpush2.bf16.msra.mxu0 0
      %1445 = vmatprep.subr.bf16.mxu0 0
      %1446 = vmatpush2.bf16.msra.mxu0 0
      %1447 = vmatprep.subr.bf16.mxu0 0
      %1448 = vmatpush2.bf16.msra.mxu0 0
      %1449 = vmatprep.subr.bf16.mxu0 0
      %1450 = vmatpush2.bf16.msra.mxu0 0
      %1451 = vmatprep.subr.bf16.mxu0 0
      %1452 = vmatpush2.bf16.msra.mxu0 0
      %1453 = vmatprep.subr.bf16.mxu0 0
      %1454 = vmatpush2.bf16.msra.mxu0 0
      %1455 = vmatprep.subr.bf16.mxu0 0
      %1456 = vmatpush2.bf16.msra.mxu0 0
      %1457 = vmatprep.mubr.bf16.mxu0 0
      %1458 = vmatmul.mubr.bf16.gmra.mxu0 %v1349
      %v1459 = vpop.f32.mrf.mxu0
      %v1460 = vadd.f32 %v1395, %v1459
      %v1461 = vpop.f32.mrf.mxu0
      %v1462 = vpop.f32.mrf.mxu0
      %v1463 = vadd.f32 %v1398, %v1462
      %v1464 = vpop.f32.mrf.mxu0
      %1465 = vmatprep.mubr.bf16.mxu0 0
      %1466 = vmatmul.mubr.bf16.gmra.mxu0 %v1352
      %v1467 = vpop.f32.mrf.mxu0
      %v1468 = vadd.f32 %v1403, %v1467
      %v1469 = vpop.f32.mrf.mxu0
      %v1470 = vpop.f32.mrf.mxu0
      %v1471 = vadd.f32 %v1406, %v1470
      %v1472 = vpop.f32.mrf.mxu0
      %1473 = vmatprep.mubr.bf16.mxu0 0
      %1474 = vmatmul.mubr.bf16.gmra.mxu0 %v1355
      %v1475 = vpop.f32.mrf.mxu0
      %v1476 = vadd.f32 %v1411, %v1475
      %v1477 = vpop.f32.mrf.mxu0
      %v1478 = vpop.f32.mrf.mxu0
      %v1479 = vadd.f32 %v1414, %v1478
      %v1480 = vpop.f32.mrf.mxu0
      %1481 = vmatprep.mubr.bf16.mxu0 0
      %1482 = vmatmul.mubr.bf16.gmra.mxu0 %v1358
      %v1483 = vpop.f32.mrf.mxu0
      %v1484 = vadd.f32 %v1419, %v1483
      %v1485 = vpop.f32.mrf.mxu0
      %v1486 = vpop.f32.mrf.mxu0
      %v1487 = vadd.f32 %v1422, %v1486
      %v1488 = vpop.f32.mrf.mxu0
      %1489 = vdwg.mxu0
      %v1490 = vpack.c.bf16 %v1463, %v1460
      %v1491 = vpack.c.bf16 %v1471, %v1468
      %v1492 = vpack.c.bf16 %v1479, %v1476
      %v1493 = vpack.c.bf16 %v1487, %v1484
      %v1498 = vunpack.c.l.b16 %v1490
      %v1499 = vunpack.c.h.b16 %v1490
      %v1500 = vunpack.c.l.b16 %v1491
      %v1501 = vunpack.c.h.b16 %v1491
      %v1502 = vunpack.c.l.b16 %v1492
      %v1503 = vunpack.c.h.b16 %v1492
      %v1504 = vunpack.c.l.b16 %v1493
      %v1505 = vunpack.c.h.b16 %v1493
      %v1506 = vpack.c.b16 %v1498, %v1498
      %v1507 = vpack.c.b16 %v1499, %v1499
      %v1508 = vpack.c.b16 %v1500, %v1500
      %v1509 = vpack.c.b16 %v1501, %v1501
      %v1510 = vpack.c.b16 %v1502, %v1502
      %v1511 = vpack.c.b16 %v1503, %v1503
      %v1512 = vpack.c.b16 %v1504, %v1504
      %v1513 = vpack.c.b16 %v1505, %v1505
      %1522 = vst.msk [vmem:[#allocation2 + $0x8] sm:$0xf] %vm228, %v1506
      %1523 = vst.msk [vmem:[#allocation2 + $0xc] sm:$0xf] %vm228, %v1507
      %1524 = vst.msk [vmem:[#allocation2 + $0x10] sm:$0xf] %vm228, %v1508
      %1525 = vst.msk [vmem:[#allocation2 + $0x14] sm:$0xf] %vm228, %v1509
      %1526 = vst.msk [vmem:[#allocation2 + $0x18] sm:$0xf] %vm228, %v1510
      %1527 = vst.msk [vmem:[#allocation2 + $0x1c] sm:$0xf] %vm228, %v1511
      %1528 = vst.msk [vmem:[#allocation2 + $0x20] sm:$0xf] %vm228, %v1512
      %1529 = vst.msk [vmem:[#allocation2 + $0x24] sm:$0xf] %vm228, %v1513
      %v1530 = vld [vmem:[%s2] sm:$0xf]
      %v1531 = vld [vmem:[%s2 + $0x4] sm:$0xf]
      %v1532 = vld [vmem:[%s2 + $0x8] sm:$0xf]
      %v1533 = vld [vmem:[%s2 + $0xc] sm:$0xf]
      %v1534 = vld [vmem:[%s2 + $0x10] sm:$0xf]
      %v1535 = vld [vmem:[%s2 + $0x14] sm:$0xf]
      %v1536 = vld [vmem:[%s2 + $0x18] sm:$0xf]
      %v1537 = vld [vmem:[%s2 + $0x1c] sm:$0xf]
      %v1538 = vld [vmem:[%s2 + $0x20] sm:$0xf]
      %v1539 = vld [vmem:[%s2 + $0x24] sm:$0xf]
      %v1540 = vld [vmem:[%s2 + $0x28] sm:$0xf]
      %v1541 = vld [vmem:[%s2 + $0x2c] sm:$0xf]
      %v1542 = vld [vmem:[%s2 + $0x30] sm:$0xf]
      %v1543 = vld [vmem:[%s2 + $0x34] sm:$0xf]
      %v1544 = vld [vmem:[%s2 + $0x38] sm:$0xf]
      %v1545 = vld [vmem:[%s2 + $0x3c] sm:$0xf]
      %v1546 = vld [vmem:[%s2 + $0x40] sm:$0xf]
      %v1547 = vld [vmem:[%s2 + $0x44] sm:$0xf]
      %v1548 = vld [vmem:[%s2 + $0x48] sm:$0xf]
      %v1549 = vld [vmem:[%s2 + $0x4c] sm:$0xf]
      %v1550 = vld [vmem:[%s2 + $0x50] sm:$0xf]
      %v1551 = vld [vmem:[%s2 + $0x54] sm:$0xf]
      %v1552 = vld [vmem:[%s2 + $0x58] sm:$0xf]
      %v1553 = vld [vmem:[%s2 + $0x5c] sm:$0xf]
      %v1554 = vld [vmem:[%s2 + $0x60] sm:$0xf]
      %v1555 = vld [vmem:[%s2 + $0x64] sm:$0xf]
      %v1556 = vld [vmem:[%s2 + $0x68] sm:$0xf]
      %v1557 = vld [vmem:[%s2 + $0x6c] sm:$0xf]
      %v1558 = vld [vmem:[%s2 + $0x70] sm:$0xf]
      %v1559 = vld [vmem:[%s2 + $0x74] sm:$0xf]
      %v1560 = vld [vmem:[%s2 + $0x78] sm:$0xf]
      %v1561 = vld [vmem:[%s2 + $0x7c] sm:$0xf]
      %v1562 = vld [vmem:[%s2 + $0x80] sm:$0xf]
      %v1563 = vld [vmem:[%s2 + $0x84] sm:$0xf]
      %v1564 = vld [vmem:[%s2 + $0x88] sm:$0xf]
      %v1565 = vld [vmem:[%s2 + $0x8c] sm:$0xf]
      %v1566 = vld [vmem:[#allocation2] sm:$0x8]
      %v1567 = vld [vmem:[#allocation2 + $0x4] sm:$0xf]
      %v1568 = vld [vmem:[#allocation2 + $0x8] sm:$0xf]
      %v1569 = vld [vmem:[#allocation2 + $0xc] sm:$0xf]
      %v1570 = vld [vmem:[#allocation2 + $0x10] sm:$0xf]
      %v1571 = vld [vmem:[#allocation2 + $0x14] sm:$0xf]
      %v1572 = vld [vmem:[#allocation2 + $0x18] sm:$0xf]
      %v1573 = vld [vmem:[#allocation2 + $0x1c] sm:$0xf]
      %v1574 = vld [vmem:[#allocation2 + $0x20] sm:$0xf]
      %v1575 = vsel %vm517, %v1566, 0
      %v1576 = vsel %vm518, %v1567, 0
      %v1577 = vsel %vm519, %v1568, 0
      %v1578 = vsel %vm520, %v1569, 0
      %v1579 = vsel %vm521, %v1570, 0
      %v1580 = vsel %vm522, %v1571, 0
      %v1581 = vsel %vm523, %v1572, 0
      %v1582 = vsel %vm524, %v1573, 0
      %v1583 = vsel %vm525, %v1574, 0
      %v1584 = vld [vmem:[#allocation2 + $0x24] sm:$0x1]
      %v1585 = vsel %vm642, %v1567, 0
      %v1586 = vsel %vm643, %v1568, 0
      %v1587 = vsel %vm644, %v1569, 0
      %v1588 = vsel %vm645, %v1570, 0
      %v1589 = vsel %vm646, %v1571, 0
      %v1590 = vsel %vm647, %v1572, 0
      %v1591 = vsel %vm648, %v1573, 0
      %v1592 = vsel %vm649, %v1574, 0
      %v1593 = vsel %vm650, %v1584, 0
      %v1594 = vld [vmem:[#allocation2 + $0x4] sm:$0x8]
      %v1595 = vld [vmem:[#allocation2 + $0x24] sm:$0xf]
      %v1596 = vsel %vm517, %v1594, 0
      %v1597 = vsel %vm518, %v1568, 0
      %v1598 = vsel %vm519, %v1569, 0
      %v1599 = vsel %vm520, %v1570, 0
      %v1600 = vsel %vm521, %v1571, 0
      %v1601 = vsel %vm522, %v1572, 0
      %v1602 = vsel %vm523, %v1573, 0
      %v1603 = vsel %vm524, %v1574, 0
      %v1604 = vsel %vm525, %v1595, 0
      %v1605 = vld [vmem:[#allocation2 + $0x28] sm:$0x1]
      %v1606 = vsel %vm642, %v1568, 0
      %v1607 = vsel %vm643, %v1569, 0
      %v1608 = vsel %vm644, %v1570, 0
      %v1609 = vsel %vm645, %v1571, 0
      %v1610 = vsel %vm646, %v1572, 0
      %v1611 = vsel %vm647, %v1573, 0
      %v1612 = vsel %vm648, %v1574, 0
      %v1613 = vsel %vm649, %v1595, 0
      %v1614 = vsel %vm650, %v1605, 0
      %v1615 = vld [vmem:[#allocation2 + $0x8] sm:$0x8]
      %v1616 = vld [vmem:[#allocation2 + $0x28] sm:$0xf]
      %v1617 = vsel %vm517, %v1615, 0
      %v1618 = vsel %vm518, %v1569, 0
      %v1619 = vsel %vm519, %v1570, 0
      %v1620 = vsel %vm520, %v1571, 0
      %v1621 = vsel %vm521, %v1572, 0
      %v1622 = vsel %vm522, %v1573, 0
      %v1623 = vsel %vm523, %v1574, 0
      %v1624 = vsel %vm524, %v1595, 0
      %v1625 = vsel %vm525, %v1616, 0
      %v1626 = vld [vmem:[#allocation2 + $0x2c] sm:$0x1]
      %v1627 = vsel %vm642, %v1569, 0
      %v1628 = vsel %vm643, %v1570, 0
      %v1629 = vsel %vm644, %v1571, 0
      %v1630 = vsel %vm645, %v1572, 0
      %v1631 = vsel %vm646, %v1573, 0
      %v1632 = vsel %vm647, %v1574, 0
      %v1633 = vsel %vm648, %v1595, 0
      %v1634 = vsel %vm649, %v1616, 0
      %v1635 = vsel %vm650, %v1626, 0
      %v1645 = vunpack.c.l.b16 %v1575
      %v1646 = vunpack.c.l.b16 %v1576
      %v1647 = vunpack.c.l.b16 %v1577
      %v1648 = vunpack.c.l.b16 %v1578
      %v1649 = vunpack.c.l.b16 %v1579
      %v1650 = vunpack.c.l.b16 %v1580
      %v1651 = vunpack.c.l.b16 %v1581
      %v1652 = vunpack.c.l.b16 %v1582
      %v1653 = vunpack.c.l.b16 %v1583
      %v1654 = vpack.c.b16 %v1646, %v1645
      %v1655 = vpack.c.b16 %v1648, %v1647
      %v1656 = vpack.c.b16 %v1650, %v1649
      %v1657 = vpack.c.b16 %v1652, %v1651
      %v1658 = vpack.c.b16 %v1653, %v1653
      %v1667 = vunpack.c.l.b16 %v1567
      %v1668 = vunpack.c.l.b16 %v1568
      %v1669 = vunpack.c.l.b16 %v1569
      %v1670 = vunpack.c.l.b16 %v1570
      %v1671 = vunpack.c.l.b16 %v1571
      %v1672 = vunpack.c.l.b16 %v1572
      %v1673 = vunpack.c.l.b16 %v1573
      %v1674 = vunpack.c.l.b16 %v1574
      %v1675 = vpack.c.b16 %v1668, %v1667
      %v1676 = vpack.c.b16 %v1670, %v1669
      %v1677 = vpack.c.b16 %v1672, %v1671
      %v1678 = vpack.c.b16 %v1674, %v1673
      %v1680 = vshrl.u32 %v1675, 16
      %v1682 = vrot.slane %v1680, 4
      %v1683 = vshll.u32 %v1675, 16
      %v1685 = vrot.slane %v1683, 5
      %v1686 = vor.u32 %v1682, %v1685
      %v1688 = vshrl.u32 %v1676, 16
      %v1690 = vrot.slane %v1688, 4
      %v1691 = vshll.u32 %v1676, 16
      %v1693 = vrot.slane %v1691, 5
      %v1694 = vor.u32 %v1690, %v1693
      %v1695 = vsel %vm435, %v1686, %v1694
      %v1697 = vshrl.u32 %v1677, 16
      %v1699 = vrot.slane %v1697, 4
      %v1700 = vshll.u32 %v1677, 16
      %v1702 = vrot.slane %v1700, 5
      %v1703 = vor.u32 %v1699, %v1702
      %v1704 = vsel %vm435, %v1694, %v1703
      %v1706 = vshrl.u32 %v1678, 16
      %v1708 = vrot.slane %v1706, 4
      %v1709 = vshll.u32 %v1678, 16
      %v1711 = vrot.slane %v1709, 5
      %v1712 = vor.u32 %v1708, %v1711
      %v1713 = vsel %vm435, %v1703, %v1712
      %1714 = vrot.lane.b32.xlu0 %v1686, 32
      %v1715 = vpop.permute.xlu0 %1714
      %1716 = vrot.lane.b32.xlu0 %v1695, 32
      %v1717 = vpop.permute.xlu0 %1716
      %1718 = vrot.lane.b32.xlu0 %v1704, 32
      %v1719 = vpop.permute.xlu0 %1718
      %1720 = vrot.lane.b32.xlu0 %v1713, 32
      %v1721 = vpop.permute.xlu0 %1720
      %1722 = vrot.lane.b32.xlu0 %v1712, 32
      %v1723 = vpop.permute.xlu0 %1722
      %v1733 = vunpack.c.l.b16 %v1585
      %v1734 = vunpack.c.l.b16 %v1586
      %v1735 = vunpack.c.l.b16 %v1587
      %v1736 = vunpack.c.l.b16 %v1588
      %v1737 = vunpack.c.l.b16 %v1589
      %v1738 = vunpack.c.l.b16 %v1590
      %v1739 = vunpack.c.l.b16 %v1591
      %v1740 = vunpack.c.l.b16 %v1592
      %v1741 = vunpack.c.l.b16 %v1593
      %v1742 = vpack.c.b16 %v1734, %v1733
      %v1743 = vpack.c.b16 %v1736, %v1735
      %v1744 = vpack.c.b16 %v1738, %v1737
      %v1745 = vpack.c.b16 %v1740, %v1739
      %v1746 = vpack.c.b16 %v1741, %v1741
      %v1747 = vrot.slane %v1742, 5
      %v1748 = vrot.slane %v1743, 5
      %v1749 = vsel %vm813, %v1747, %v1748
      %v1750 = vrot.slane %v1744, 5
      %v1751 = vsel %vm813, %v1748, %v1750
      %v1752 = vrot.slane %v1745, 5
      %v1753 = vsel %vm813, %v1750, %v1752
      %v1754 = vrot.slane %v1746, 5
      %v1755 = vsel %vm813, %v1752, %v1754
      %1756 = vrot.lane.b32.xlu0 %v1747, 64
      %v1757 = vpop.permute.xlu0 %1756
      %1758 = vrot.lane.b32.xlu0 %v1749, 64
      %v1759 = vpop.permute.xlu0 %1758
      %1760 = vrot.lane.b32.xlu0 %v1751, 64
      %v1761 = vpop.permute.xlu0 %1760
      %1762 = vrot.lane.b32.xlu0 %v1753, 64
      %v1763 = vpop.permute.xlu0 %1762
      %1764 = vrot.lane.b32.xlu0 %v1755, 64
      %v1765 = vpop.permute.xlu0 %1764
      %v1775 = vunpack.c.l.b16 %v1596
      %v1776 = vunpack.c.l.b16 %v1597
      %v1777 = vunpack.c.l.b16 %v1598
      %v1778 = vunpack.c.l.b16 %v1599
      %v1779 = vunpack.c.l.b16 %v1600
      %v1780 = vunpack.c.l.b16 %v1601
      %v1781 = vunpack.c.l.b16 %v1602
      %v1782 = vunpack.c.l.b16 %v1603
      %v1783 = vunpack.c.l.b16 %v1604
      %v1784 = vpack.c.b16 %v1776, %v1775
      %v1785 = vpack.c.b16 %v1778, %v1777
      %v1786 = vpack.c.b16 %v1780, %v1779
      %v1787 = vpack.c.b16 %v1782, %v1781
      %v1788 = vpack.c.b16 %v1783, %v1783
      %1789 = vrot.lane.b32.xlu0 %v1784, 96
      %v1790 = vpop.permute.xlu0 %1789
      %1791 = vrot.lane.b32.xlu0 %v1785, 96
      %v1792 = vpop.permute.xlu0 %1791
      %1793 = vrot.lane.b32.xlu0 %v1786, 96
      %v1794 = vpop.permute.xlu0 %1793
      %1795 = vrot.lane.b32.xlu0 %v1787, 96
      %v1796 = vpop.permute.xlu0 %1795
      %1797 = vrot.lane.b32.xlu0 %v1788, 96
      %v1798 = vpop.permute.xlu0 %1797
      %v1800 = vunpack.c.l.b16 %v1595
      %v1801 = vpack.c.b16 %v1669, %v1668
      %v1802 = vpack.c.b16 %v1671, %v1670
      %v1803 = vpack.c.b16 %v1673, %v1672
      %v1804 = vpack.c.b16 %v1800, %v1674
      %v1806 = vshrl.u32 %v1801, 16
      %v1808 = vrot.slane %v1806, 4
      %v1809 = vshll.u32 %v1801, 16
      %v1811 = vrot.slane %v1809, 5
      %v1812 = vor.u32 %v1808, %v1811
      %v1814 = vshrl.u32 %v1802, 16
      %v1816 = vrot.slane %v1814, 4
      %v1817 = vshll.u32 %v1802, 16
      %v1819 = vrot.slane %v1817, 5
      %v1820 = vor.u32 %v1816, %v1819
      %v1821 = vsel %vm435, %v1812, %v1820
      %v1823 = vshrl.u32 %v1803, 16
      %v1825 = vrot.slane %v1823, 4
      %v1826 = vshll.u32 %v1803, 16
      %v1828 = vrot.slane %v1826, 5
      %v1829 = vor.u32 %v1825, %v1828
      %v1830 = vsel %vm435, %v1820, %v1829
      %v1832 = vshrl.u32 %v1804, 16
      %v1834 = vrot.slane %v1832, 4
      %v1835 = vshll.u32 %v1804, 16
      %v1837 = vrot.slane %v1835, 5
      %v1838 = vor.u32 %v1834, %v1837
      %v1839 = vsel %vm435, %v1829, %v1838
      %v1849 = vunpack.c.l.b16 %v1606
      %v1850 = vunpack.c.l.b16 %v1607
      %v1851 = vunpack.c.l.b16 %v1608
      %v1852 = vunpack.c.l.b16 %v1609
      %v1853 = vunpack.c.l.b16 %v1610
      %v1854 = vunpack.c.l.b16 %v1611
      %v1855 = vunpack.c.l.b16 %v1612
      %v1856 = vunpack.c.l.b16 %v1613
      %v1857 = vunpack.c.l.b16 %v1614
      %v1858 = vpack.c.b16 %v1850, %v1849
      %v1859 = vpack.c.b16 %v1852, %v1851
      %v1860 = vpack.c.b16 %v1854, %v1853
      %v1861 = vpack.c.b16 %v1856, %v1855
      %v1862 = vpack.c.b16 %v1857, %v1857
      %v1863 = vrot.slane %v1858, 5
      %v1864 = vrot.slane %v1859, 5
      %v1865 = vsel %vm813, %v1863, %v1864
      %v1866 = vrot.slane %v1860, 5
      %v1867 = vsel %vm813, %v1864, %v1866
      %v1868 = vrot.slane %v1861, 5
      %v1869 = vsel %vm813, %v1866, %v1868
      %v1870 = vrot.slane %v1862, 5
      %v1871 = vsel %vm813, %v1868, %v1870
      %1872 = vrot.lane.b32.xlu0 %v1863, 32
      %v1873 = vpop.permute.xlu0 %1872
      %1874 = vrot.lane.b32.xlu0 %v1865, 32
      %v1875 = vpop.permute.xlu0 %1874
      %1876 = vrot.lane.b32.xlu0 %v1867, 32
      %v1877 = vpop.permute.xlu0 %1876
      %1878 = vrot.lane.b32.xlu0 %v1869, 32
      %v1879 = vpop.permute.xlu0 %1878
      %1880 = vrot.lane.b32.xlu0 %v1871, 32
      %v1881 = vpop.permute.xlu0 %1880
      %v1891 = vunpack.c.l.b16 %v1617
      %v1892 = vunpack.c.l.b16 %v1618
      %v1893 = vunpack.c.l.b16 %v1619
      %v1894 = vunpack.c.l.b16 %v1620
      %v1895 = vunpack.c.l.b16 %v1621
      %v1896 = vunpack.c.l.b16 %v1622
      %v1897 = vunpack.c.l.b16 %v1623
      %v1898 = vunpack.c.l.b16 %v1624
      %v1899 = vunpack.c.l.b16 %v1625
      %v1900 = vpack.c.b16 %v1892, %v1891
      %v1901 = vpack.c.b16 %v1894, %v1893
      %v1902 = vpack.c.b16 %v1896, %v1895
      %v1903 = vpack.c.b16 %v1898, %v1897
      %v1904 = vpack.c.b16 %v1899, %v1899
      %1905 = vrot.lane.b32.xlu0 %v1900, 64
      %v1906 = vpop.permute.xlu0 %1905
      %1907 = vrot.lane.b32.xlu0 %v1901, 64
      %v1908 = vpop.permute.xlu0 %1907
      %1909 = vrot.lane.b32.xlu0 %v1902, 64
      %v1910 = vpop.permute.xlu0 %1909
      %1911 = vrot.lane.b32.xlu0 %v1903, 64
      %v1912 = vpop.permute.xlu0 %1911
      %1913 = vrot.lane.b32.xlu0 %v1904, 64
      %v1914 = vpop.permute.xlu0 %1913
      %v1916 = vunpack.c.l.b16 %v1616
      %v1917 = vpack.c.b16 %v1916, %v1800
      %v1919 = vshrl.u32 %v1917, 16
      %v1921 = vrot.slane %v1919, 4
      %v1922 = vshll.u32 %v1917, 16
      %v1924 = vrot.slane %v1922, 5
      %v1925 = vor.u32 %v1921, %v1924
      %v1926 = vsel %vm435, %v1712, %v1925
      %1927 = vrot.lane.b32.xlu0 %v1694, 96
      %v1928 = vpop.permute.xlu0 %1927
      %1929 = vrot.lane.b32.xlu0 %v1704, 96
      %v1930 = vpop.permute.xlu0 %1929
      %1931 = vrot.lane.b32.xlu0 %v1713, 96
      %v1932 = vpop.permute.xlu0 %1931
      %1933 = vrot.lane.b32.xlu0 %v1926, 96
      %v1934 = vpop.permute.xlu0 %1933
      %1935 = vrot.lane.b32.xlu0 %v1925, 96
      %v1936 = vpop.permute.xlu0 %1935
      %v1946 = vunpack.c.l.b16 %v1627
      %v1947 = vunpack.c.l.b16 %v1628
      %v1948 = vunpack.c.l.b16 %v1629
      %v1949 = vunpack.c.l.b16 %v1630
      %v1950 = vunpack.c.l.b16 %v1631
      %v1951 = vunpack.c.l.b16 %v1632
      %v1952 = vunpack.c.l.b16 %v1633
      %v1953 = vunpack.c.l.b16 %v1634
      %v1954 = vunpack.c.l.b16 %v1635
      %v1955 = vpack.c.b16 %v1947, %v1946
      %v1956 = vpack.c.b16 %v1949, %v1948
      %v1957 = vpack.c.b16 %v1951, %v1950
      %v1958 = vpack.c.b16 %v1953, %v1952
      %v1959 = vpack.c.b16 %v1954, %v1954
      %v1960 = vrot.slane %v1955, 5
      %v1961 = vrot.slane %v1956, 5
      %v1962 = vsel %vm813, %v1960, %v1961
      %v1963 = vrot.slane %v1957, 5
      %v1964 = vsel %vm813, %v1961, %v1963
      %v1965 = vrot.slane %v1958, 5
      %v1966 = vsel %vm813, %v1963, %v1965
      %v1967 = vrot.slane %v1959, 5
      %v1968 = vsel %vm813, %v1965, %v1967
      %v1971 = vsel %vm1036, %v1654, %v1715
      %v1974 = vsel %vm1036, %v1655, %v1717
      %v1977 = vsel %vm1036, %v1656, %v1719
      %v1980 = vsel %vm1036, %v1657, %v1721
      %v1983 = vsel %vm1036, %v1658, %v1723
      %v1985 = vsel %vm1052, %v1971, %v1757
      %v1987 = vsel %vm1052, %v1974, %v1759
      %v1989 = vsel %vm1052, %v1977, %v1761
      %v1991 = vsel %vm1052, %v1980, %v1763
      %v1993 = vsel %vm1052, %v1983, %v1765
      %v1995 = vsel %vm1063, %v1985, %v1790
      %v1997 = vsel %vm1063, %v1987, %v1792
      %v1999 = vsel %vm1063, %v1989, %v1794
      %v2001 = vsel %vm1063, %v1991, %v1796
      %v2003 = vsel %vm1063, %v1993, %v1798
      %v2006 = vsel %vm1036, %v1812, %v1873
      %v2009 = vsel %vm1036, %v1821, %v1875
      %v2012 = vsel %vm1036, %v1830, %v1877
      %v2015 = vsel %vm1036, %v1839, %v1879
      %v2018 = vsel %vm1036, %v1838, %v1881
      %v2020 = vsel %vm1052, %v2006, %v1906
      %v2022 = vsel %vm1052, %v2009, %v1908
      %v2024 = vsel %vm1052, %v2012, %v1910
      %v2026 = vsel %vm1052, %v2015, %v1912
      %v2028 = vsel %vm1052, %v2018, %v1914
      %v2030 = vsel %vm1063, %v2020, %v1928
      %v2032 = vsel %vm1063, %v2022, %v1930
      %v2034 = vsel %vm1063, %v2024, %v1932
      %v2036 = vsel %vm1063, %v2026, %v1934
      %v2038 = vsel %vm1063, %v2028, %v1936
      %v2039 = vshrl.u32 %v1995, 16
      %v2041 = vrot.slane %v2039, 3
      %v2042 = vshll.u32 %v1995, 16
      %v2044 = vrot.slane %v2042, 4
      %v2045 = vor.u32 %v2041, %v2044
      %v2046 = vshrl.u32 %v1997, 16
      %v2048 = vrot.slane %v2046, 3
      %v2049 = vshll.u32 %v1997, 16
      %v2051 = vrot.slane %v2049, 4
      %v2052 = vor.u32 %v2048, %v2051
      %v2053 = vsel %vm1109, %v2045, %v2052
      %v2054 = vshrl.u32 %v2030, 16
      %v2056 = vrot.slane %v2054, 3
      %v2057 = vshll.u32 %v2030, 16
      %v2059 = vrot.slane %v2057, 4
      %v2060 = vor.u32 %v2056, %v2059
      %v2061 = vshrl.u32 %v2032, 16
      %v2063 = vrot.slane %v2061, 3
      %v2064 = vshll.u32 %v2032, 16
      %v2066 = vrot.slane %v2064, 4
      %v2067 = vor.u32 %v2063, %v2066
      %v2068 = vsel %vm1109, %v2060, %v2067
      %v2070 = vshrl.u32 %v1960, 16
      %v2072 = vrot.slane %v2070, 3
      %v2073 = vshll.u32 %v1960, 16
      %v2075 = vrot.slane %v2073, 4
      %v2076 = vor.u32 %v2072, %v2075
      %v2078 = vshrl.u32 %v1962, 16
      %v2080 = vrot.slane %v2078, 3
      %v2081 = vshll.u32 %v1962, 16
      %v2083 = vrot.slane %v2081, 4
      %v2084 = vor.u32 %v2080, %v2083
      %v2085 = vsel %vm1109, %v2076, %v2084
      %v2086 = vshrl.u32 %v1999, 16
      %v2088 = vrot.slane %v2086, 3
      %v2089 = vshll.u32 %v1999, 16
      %v2091 = vrot.slane %v2089, 4
      %v2092 = vor.u32 %v2088, %v2091
      %v2093 = vsel %vm1109, %v2052, %v2092
      %v2094 = vshrl.u32 %v2034, 16
      %v2096 = vrot.slane %v2094, 3
      %v2097 = vshll.u32 %v2034, 16
      %v2099 = vrot.slane %v2097, 4
      %v2100 = vor.u32 %v2096, %v2099
      %v2101 = vsel %vm1109, %v2067, %v2100
      %v2103 = vshrl.u32 %v1964, 16
      %v2105 = vrot.slane %v2103, 3
      %v2106 = vshll.u32 %v1964, 16
      %v2108 = vrot.slane %v2106, 4
      %v2109 = vor.u32 %v2105, %v2108
      %v2110 = vsel %vm1109, %v2084, %v2109
      %v2111 = vshrl.u32 %v2001, 16
      %v2113 = vrot.slane %v2111, 3
      %v2114 = vshll.u32 %v2001, 16
      %v2116 = vrot.slane %v2114, 4
      %v2117 = vor.u32 %v2113, %v2116
      %v2118 = vsel %vm1109, %v2092, %v2117
      %v2119 = vshrl.u32 %v2036, 16
      %v2121 = vrot.slane %v2119, 3
      %v2122 = vshll.u32 %v2036, 16
      %v2124 = vrot.slane %v2122, 4
      %v2125 = vor.u32 %v2121, %v2124
      %v2126 = vsel %vm1109, %v2100, %v2125
      %v2128 = vshrl.u32 %v1966, 16
      %v2130 = vrot.slane %v2128, 3
      %v2131 = vshll.u32 %v1966, 16
      %v2133 = vrot.slane %v2131, 4
      %v2134 = vor.u32 %v2130, %v2133
      %v2135 = vsel %vm1109, %v2109, %v2134
      %v2136 = vshrl.u32 %v2003, 16
      %v2138 = vrot.slane %v2136, 3
      %v2139 = vshll.u32 %v2003, 16
      %v2141 = vrot.slane %v2139, 4
      %v2142 = vor.u32 %v2138, %v2141
      %v2143 = vsel %vm1109, %v2117, %v2142
      %v2144 = vshrl.u32 %v2038, 16
      %v2146 = vrot.slane %v2144, 3
      %v2147 = vshll.u32 %v2038, 16
      %v2149 = vrot.slane %v2147, 4
      %v2150 = vor.u32 %v2146, %v2149
      %v2151 = vsel %vm1109, %v2125, %v2150
      %v2153 = vshrl.u32 %v1968, 16
      %v2155 = vrot.slane %v2153, 3
      %v2156 = vshll.u32 %v1968, 16
      %v2158 = vrot.slane %v2156, 4
      %v2159 = vor.u32 %v2155, %v2158
      %v2160 = vsel %vm1109, %v2134, %v2159
      %v2205 = vunpack.c.l.b16 %v1530
      %v2206 = vunpack.c.l.b16 %v1531
      %v2207 = vunpack.c.l.b16 %v1532
      %v2208 = vunpack.c.l.b16 %v1533
      %v2209 = vunpack.c.l.b16 %v1534
      %v2210 = vunpack.c.l.b16 %v1535
      %v2211 = vunpack.c.l.b16 %v1536
      %v2212 = vunpack.c.l.b16 %v1537
      %v2213 = vunpack.c.l.b16 %v1538
      %v2214 = vunpack.c.l.b16 %v1539
      %v2215 = vunpack.c.l.b16 %v1540
      %v2216 = vunpack.c.l.b16 %v1541
      %v2217 = vunpack.c.l.b16 %v1542
      %v2218 = vunpack.c.l.b16 %v1543
      %v2219 = vunpack.c.l.b16 %v1544
      %v2220 = vunpack.c.l.b16 %v1545
      %v2221 = vunpack.c.l.b16 %v1546
      %v2222 = vunpack.c.l.b16 %v1547
      %v2223 = vunpack.c.l.b16 %v1548
      %v2224 = vunpack.c.l.b16 %v1549
      %v2225 = vunpack.c.l.b16 %v1550
      %v2226 = vunpack.c.l.b16 %v1551
      %v2227 = vunpack.c.l.b16 %v1552
      %v2228 = vunpack.c.l.b16 %v1553
      %v2229 = vunpack.c.l.b16 %v1554
      %v2230 = vunpack.c.l.b16 %v1555
      %v2231 = vunpack.c.l.b16 %v1556
      %v2232 = vunpack.c.l.b16 %v1557
      %v2233 = vunpack.c.l.b16 %v1558
      %v2234 = vunpack.c.l.b16 %v1559
      %v2235 = vunpack.c.l.b16 %v1560
      %v2236 = vunpack.c.l.b16 %v1561
      %v2237 = vunpack.c.l.b16 %v1562
      %v2238 = vunpack.c.l.b16 %v1563
      %v2239 = vunpack.c.l.b16 %v1564
      %v2240 = vunpack.c.l.b16 %v1565
      %v2241 = vpack.c.b16 %v2206, %v2205
      %v2242 = vpack.c.b16 %v2208, %v2207
      %v2243 = vpack.c.b16 %v2210, %v2209
      %v2244 = vpack.c.b16 %v2212, %v2211
      %v2245 = vpack.c.b16 %v2214, %v2213
      %v2246 = vpack.c.b16 %v2216, %v2215
      %v2247 = vpack.c.b16 %v2218, %v2217
      %v2248 = vpack.c.b16 %v2220, %v2219
      %v2249 = vpack.c.b16 %v2222, %v2221
      %v2250 = vpack.c.b16 %v2224, %v2223
      %v2251 = vpack.c.b16 %v2226, %v2225
      %v2252 = vpack.c.b16 %v2228, %v2227
      %v2253 = vpack.c.b16 %v2230, %v2229
      %v2254 = vpack.c.b16 %v2232, %v2231
      %v2255 = vpack.c.b16 %v2234, %v2233
      %v2256 = vpack.c.b16 %v2236, %v2235
      %v2257 = vpack.c.b16 %v2238, %v2237
      %v2258 = vpack.c.b16 %v2240, %v2239
      %v2278 = vsel %vm1036, %v2085, 0
      %v2281 = vsel %vm1036, %v2110, 0
      %v2284 = vsel %vm1036, %v2135, 0
      %v2287 = vsel %vm1036, %v2160, 0
      %2289 = vmatprep.subr.bf16.mxu0 0
      %2290 = vmatpush1.bf16.msra.mxu0 %v2248
      %2291 = vmatprep.subr.bf16.mxu0 0
      %2292 = vmatpush1.bf16.msra.mxu0 %v2247
      %2293 = vmatprep.subr.bf16.mxu0 0
      %2294 = vmatpush1.bf16.msra.mxu0 %v2246
      %2295 = vmatprep.subr.bf16.mxu0 0
      %2296 = vmatpush1.bf16.msra.mxu0 %v2245
      %2297 = vmatprep.subr.bf16.mxu0 0
      %2298 = vmatpush1.bf16.msra.mxu0 %v2244
      %2299 = vmatprep.subr.bf16.mxu0 0
      %2300 = vmatpush1.bf16.msra.mxu0 %v2243
      %2301 = vmatprep.subr.bf16.mxu0 0
      %2302 = vmatpush1.bf16.msra.mxu0 %v2242
      %2303 = vmatprep.subr.bf16.mxu0 0
      %2304 = vmatpush1.bf16.msra.mxu0 %v2241
      %2305 = vmatprep.subr.bf16.mxu0 0
      %2306 = vmatpush2.bf16.msra.mxu0 %v2256
      %2307 = vmatprep.subr.bf16.mxu0 0
      %2308 = vmatpush2.bf16.msra.mxu0 %v2255
      %2309 = vmatprep.subr.bf16.mxu0 0
      %2310 = vmatpush2.bf16.msra.mxu0 %v2254
      %2311 = vmatprep.subr.bf16.mxu0 0
      %2312 = vmatpush2.bf16.msra.mxu0 %v2253
      %2313 = vmatprep.subr.bf16.mxu0 0
      %2314 = vmatpush2.bf16.msra.mxu0 %v2252
      %2315 = vmatprep.subr.bf16.mxu0 0
      %2316 = vmatpush2.bf16.msra.mxu0 %v2251
      %2317 = vmatprep.subr.bf16.mxu0 0
      %2318 = vmatpush2.bf16.msra.mxu0 %v2250
      %2319 = vmatprep.subr.bf16.mxu0 0
      %2320 = vmatpush2.bf16.msra.mxu0 %v2249
      %2321 = vmatprep.mubr.bf16.mxu0 %v2068
      %2322 = vmatmul.mubr.bf16.gmra.mxu0 %v2053
      %v2323 = vpop.f32.mrf.mxu0
      %v2324 = vadd.f32 0.0, %v2323
      %v2325 = vpop.f32.mrf.mxu0
      %v2326 = vpop.f32.mrf.mxu0
      %v2327 = vadd.f32 0.0, %v2326
      %v2328 = vpop.f32.mrf.mxu0
      %2329 = vmatprep.mubr.bf16.mxu0 %v2101
      %2330 = vmatmul.mubr.bf16.gmra.mxu0 %v2093
      %v2331 = vpop.f32.mrf.mxu0
      %v2332 = vadd.f32 0.0, %v2331
      %v2333 = vpop.f32.mrf.mxu0
      %v2334 = vpop.f32.mrf.mxu0
      %v2335 = vadd.f32 0.0, %v2334
      %v2336 = vpop.f32.mrf.mxu0
      %2337 = vmatprep.mubr.bf16.mxu0 %v2126
      %2338 = vmatmul.mubr.bf16.gmra.mxu0 %v2118
      %v2339 = vpop.f32.mrf.mxu0
      %v2340 = vadd.f32 0.0, %v2339
      %v2341 = vpop.f32.mrf.mxu0
      %v2342 = vpop.f32.mrf.mxu0
      %v2343 = vadd.f32 0.0, %v2342
      %v2344 = vpop.f32.mrf.mxu0
      %2345 = vmatprep.mubr.bf16.mxu0 %v2151
      %2346 = vmatmul.mubr.bf16.gmra.mxu0 %v2143
      %v2347 = vpop.f32.mrf.mxu0
      %v2348 = vadd.f32 0.0, %v2347
      %v2349 = vpop.f32.mrf.mxu0
      %v2350 = vpop.f32.mrf.mxu0
      %v2351 = vadd.f32 0.0, %v2350
      %v2352 = vpop.f32.mrf.mxu0
      %2353 = vdwg.mxu0
      %2354 = vmatprep.subr.bf16.mxu0 0
      %2355 = vmatpush1.bf16.msra.mxu0 0
      %2356 = vmatprep.subr.bf16.mxu0 0
      %2357 = vmatpush1.bf16.msra.mxu0 0
      %2358 = vmatprep.subr.bf16.mxu0 0
      %2359 = vmatpush1.bf16.msra.mxu0 0
      %2360 = vmatprep.subr.bf16.mxu0 0
      %2361 = vmatpush1.bf16.msra.mxu0 0
      %2362 = vmatprep.subr.bf16.mxu0 0
      %2363 = vmatpush1.bf16.msra.mxu0 0
      %2364 = vmatprep.subr.bf16.mxu0 0
      %2365 = vmatpush1.bf16.msra.mxu0 0
      %2366 = vmatprep.subr.bf16.mxu0 0
      %2367 = vmatpush1.bf16.msra.mxu0 %v2258
      %2368 = vmatprep.subr.bf16.mxu0 0
      %2369 = vmatpush1.bf16.msra.mxu0 %v2257
      %2370 = vmatprep.subr.bf16.mxu0 0
      %2371 = vmatpush2.bf16.msra.mxu0 0
      %2372 = vmatprep.subr.bf16.mxu0 0
      %2373 = vmatpush2.bf16.msra.mxu0 0
      %2374 = vmatprep.subr.bf16.mxu0 0
      %2375 = vmatpush2.bf16.msra.mxu0 0
      %2376 = vmatprep.subr.bf16.mxu0 0
      %2377 = vmatpush2.bf16.msra.mxu0 0
      %2378 = vmatprep.subr.bf16.mxu0 0
      %2379 = vmatpush2.bf16.msra.mxu0 0
      %2380 = vmatprep.subr.bf16.mxu0 0
      %2381 = vmatpush2.bf16.msra.mxu0 0
      %2382 = vmatprep.subr.bf16.mxu0 0
      %2383 = vmatpush2.bf16.msra.mxu0 0
      %2384 = vmatprep.subr.bf16.mxu0 0
      %2385 = vmatpush2.bf16.msra.mxu0 0
      %2386 = vmatprep.mubr.bf16.mxu0 0
      %2387 = vmatmul.mubr.bf16.gmra.mxu0 %v2278
      %v2388 = vpop.f32.mrf.mxu0
      %v2389 = vadd.f32 %v2324, %v2388
      %v2390 = vpop.f32.mrf.mxu0
      %v2391 = vpop.f32.mrf.mxu0
      %v2392 = vadd.f32 %v2327, %v2391
      %v2393 = vpop.f32.mrf.mxu0
      %2394 = vmatprep.mubr.bf16.mxu0 0
      %2395 = vmatmul.mubr.bf16.gmra.mxu0 %v2281
      %v2396 = vpop.f32.mrf.mxu0
      %v2397 = vadd.f32 %v2332, %v2396
      %v2398 = vpop.f32.mrf.mxu0
      %v2399 = vpop.f32.mrf.mxu0
      %v2400 = vadd.f32 %v2335, %v2399
      %v2401 = vpop.f32.mrf.mxu0
      %2402 = vmatprep.mubr.bf16.mxu0 0
      %2403 = vmatmul.mubr.bf16.gmra.mxu0 %v2284
      %v2404 = vpop.f32.mrf.mxu0
      %v2405 = vadd.f32 %v2340, %v2404
      %v2406 = vpop.f32.mrf.mxu0
      %v2407 = vpop.f32.mrf.mxu0
      %v2408 = vadd.f32 %v2343, %v2407
      %v2409 = vpop.f32.mrf.mxu0
      %2410 = vmatprep.mubr.bf16.mxu0 0
      %2411 = vmatmul.mubr.bf16.gmra.mxu0 %v2287
      %v2412 = vpop.f32.mrf.mxu0
      %v2413 = vadd.f32 %v2348, %v2412
      %v2414 = vpop.f32.mrf.mxu0
      %v2415 = vpop.f32.mrf.mxu0
      %v2416 = vadd.f32 %v2351, %v2415
      %v2417 = vpop.f32.mrf.mxu0
      %2418 = vdwg.mxu0
      %v2419 = vpack.c.bf16 %v2392, %v2389
      %v2420 = vpack.c.bf16 %v2400, %v2397
      %v2421 = vpack.c.bf16 %v2408, %v2405
      %v2422 = vpack.c.bf16 %v2416, %v2413
      %v2427 = vunpack.c.l.b16 %v2419
      %v2428 = vunpack.c.h.b16 %v2419
      %v2429 = vunpack.c.l.b16 %v2420
      %v2430 = vunpack.c.h.b16 %v2420
      %v2431 = vunpack.c.l.b16 %v2421
      %v2432 = vunpack.c.h.b16 %v2421
      %v2433 = vunpack.c.l.b16 %v2422
      %v2434 = vunpack.c.h.b16 %v2422
      %v2435 = vpack.c.b16 %v2427, %v2427
      %v2436 = vpack.c.b16 %v2428, %v2428
      %v2437 = vpack.c.b16 %v2429, %v2429
      %v2438 = vpack.c.b16 %v2430, %v2430
      %v2439 = vpack.c.b16 %v2431, %v2431
      %v2440 = vpack.c.b16 %v2432, %v2432
      %v2441 = vpack.c.b16 %v2433, %v2433
      %v2442 = vpack.c.b16 %v2434, %v2434
      %2451 = vst.msk [vmem:[#allocation3 + $0x8] sm:$0xf] %vm228, %v2435
      %2452 = vst.msk [vmem:[#allocation3 + $0xc] sm:$0xf] %vm228, %v2436
      %2453 = vst.msk [vmem:[#allocation3 + $0x10] sm:$0xf] %vm228, %v2437
      %2454 = vst.msk [vmem:[#allocation3 + $0x14] sm:$0xf] %vm228, %v2438
      %2455 = vst.msk [vmem:[#allocation3 + $0x18] sm:$0xf] %vm228, %v2439
      %2456 = vst.msk [vmem:[#allocation3 + $0x1c] sm:$0xf] %vm228, %v2440
      %2457 = vst.msk [vmem:[#allocation3 + $0x20] sm:$0xf] %vm228, %v2441
      %2458 = vst.msk [vmem:[#allocation3 + $0x24] sm:$0xf] %vm228, %v2442
      %v2459 = vld [vmem:[%s3] sm:$0xf]
      %v2460 = vld [vmem:[%s3 + $0x4] sm:$0xf]
      %v2461 = vld [vmem:[%s3 + $0x8] sm:$0xf]
      %v2462 = vld [vmem:[%s3 + $0xc] sm:$0xf]
      %v2463 = vld [vmem:[%s3 + $0x10] sm:$0xf]
      %v2464 = vld [vmem:[%s3 + $0x14] sm:$0xf]
      %v2465 = vld [vmem:[%s3 + $0x18] sm:$0xf]
      %v2466 = vld [vmem:[%s3 + $0x1c] sm:$0xf]
      %v2467 = vld [vmem:[%s3 + $0x20] sm:$0xf]
      %v2468 = vld [vmem:[%s3 + $0x24] sm:$0xf]
      %v2469 = vld [vmem:[%s3 + $0x28] sm:$0xf]
      %v2470 = vld [vmem:[%s3 + $0x2c] sm:$0xf]
      %v2471 = vld [vmem:[%s3 + $0x30] sm:$0xf]
      %v2472 = vld [vmem:[%s3 + $0x34] sm:$0xf]
      %v2473 = vld [vmem:[%s3 + $0x38] sm:$0xf]
      %v2474 = vld [vmem:[%s3 + $0x3c] sm:$0xf]
      %v2475 = vld [vmem:[%s3 + $0x40] sm:$0xf]
      %v2476 = vld [vmem:[%s3 + $0x44] sm:$0xf]
      %v2477 = vld [vmem:[%s3 + $0x48] sm:$0xf]
      %v2478 = vld [vmem:[%s3 + $0x4c] sm:$0xf]
      %v2479 = vld [vmem:[%s3 + $0x50] sm:$0xf]
      %v2480 = vld [vmem:[%s3 + $0x54] sm:$0xf]
      %v2481 = vld [vmem:[%s3 + $0x58] sm:$0xf]
      %v2482 = vld [vmem:[%s3 + $0x5c] sm:$0xf]
      %v2483 = vld [vmem:[%s3 + $0x60] sm:$0xf]
      %v2484 = vld [vmem:[%s3 + $0x64] sm:$0xf]
      %v2485 = vld [vmem:[%s3 + $0x68] sm:$0xf]
      %v2486 = vld [vmem:[%s3 + $0x6c] sm:$0xf]
      %v2487 = vld [vmem:[%s3 + $0x70] sm:$0xf]
      %v2488 = vld [vmem:[%s3 + $0x74] sm:$0xf]
      %v2489 = vld [vmem:[%s3 + $0x78] sm:$0xf]
      %v2490 = vld [vmem:[%s3 + $0x7c] sm:$0xf]
      %v2491 = vld [vmem:[%s3 + $0x80] sm:$0xf]
      %v2492 = vld [vmem:[%s3 + $0x84] sm:$0xf]
      %v2493 = vld [vmem:[%s3 + $0x88] sm:$0xf]
      %v2494 = vld [vmem:[%s3 + $0x8c] sm:$0xf]
      %v2495 = vld [vmem:[%s4] sm:$0x1]
      %v2496 = vld [vmem:[#allocation3] sm:$0x8]
      %v2497 = vld [vmem:[#allocation3 + $0x4] sm:$0xf]
      %v2498 = vld [vmem:[#allocation3 + $0x8] sm:$0xf]
      %v2499 = vld [vmem:[#allocation3 + $0xc] sm:$0xf]
      %v2500 = vld [vmem:[#allocation3 + $0x10] sm:$0xf]
      %v2501 = vld [vmem:[#allocation3 + $0x14] sm:$0xf]
      %v2502 = vld [vmem:[#allocation3 + $0x18] sm:$0xf]
      %v2503 = vld [vmem:[#allocation3 + $0x1c] sm:$0xf]
      %v2504 = vld [vmem:[#allocation3 + $0x20] sm:$0xf]
      %v2505 = vsel %vm517, %v2496, 0
      %v2506 = vsel %vm518, %v2497, 0
      %v2507 = vsel %vm519, %v2498, 0
      %v2508 = vsel %vm520, %v2499, 0
      %v2509 = vsel %vm521, %v2500, 0
      %v2510 = vsel %vm522, %v2501, 0
      %v2511 = vsel %vm523, %v2502, 0
      %v2512 = vsel %vm524, %v2503, 0
      %v2513 = vsel %vm525, %v2504, 0
      %v2514 = vld [vmem:[#allocation3 + $0x24] sm:$0x1]
      %v2515 = vsel %vm642, %v2497, 0
      %v2516 = vsel %vm643, %v2498, 0
      %v2517 = vsel %vm644, %v2499, 0
      %v2518 = vsel %vm645, %v2500, 0
      %v2519 = vsel %vm646, %v2501, 0
      %v2520 = vsel %vm647, %v2502, 0
      %v2521 = vsel %vm648, %v2503, 0
      %v2522 = vsel %vm649, %v2504, 0
      %v2523 = vsel %vm650, %v2514, 0
      %v2524 = vld [vmem:[#allocation3 + $0x4] sm:$0x8]
      %v2525 = vld [vmem:[#allocation3 + $0x24] sm:$0xf]
      %v2526 = vsel %vm517, %v2524, 0
      %v2527 = vsel %vm518, %v2498, 0
      %v2528 = vsel %vm519, %v2499, 0
      %v2529 = vsel %vm520, %v2500, 0
      %v2530 = vsel %vm521, %v2501, 0
      %v2531 = vsel %vm522, %v2502, 0
      %v2532 = vsel %vm523, %v2503, 0
      %v2533 = vsel %vm524, %v2504, 0
      %v2534 = vsel %vm525, %v2525, 0
      %v2535 = vld [vmem:[#allocation3 + $0x28] sm:$0x1]
      %v2536 = vsel %vm642, %v2498, 0
      %v2537 = vsel %vm643, %v2499, 0
      %v2538 = vsel %vm644, %v2500, 0
      %v2539 = vsel %vm645, %v2501, 0
      %v2540 = vsel %vm646, %v2502, 0
      %v2541 = vsel %vm647, %v2503, 0
      %v2542 = vsel %vm648, %v2504, 0
      %v2543 = vsel %vm649, %v2525, 0
      %v2544 = vsel %vm650, %v2535, 0
      %v2545 = vld [vmem:[#allocation3 + $0x8] sm:$0x8]
      %v2546 = vld [vmem:[#allocation3 + $0x28] sm:$0xf]
      %v2547 = vsel %vm517, %v2545, 0
      %v2548 = vsel %vm518, %v2499, 0
      %v2549 = vsel %vm519, %v2500, 0
      %v2550 = vsel %vm520, %v2501, 0
      %v2551 = vsel %vm521, %v2502, 0
      %v2552 = vsel %vm522, %v2503, 0
      %v2553 = vsel %vm523, %v2504, 0
      %v2554 = vsel %vm524, %v2525, 0
      %v2555 = vsel %vm525, %v2546, 0
      %v2556 = vld [vmem:[#allocation3 + $0x2c] sm:$0x1]
      %v2557 = vsel %vm642, %v2499, 0
      %v2558 = vsel %vm643, %v2500, 0
      %v2559 = vsel %vm644, %v2501, 0
      %v2560 = vsel %vm645, %v2502, 0
      %v2561 = vsel %vm646, %v2503, 0
      %v2562 = vsel %vm647, %v2504, 0
      %v2563 = vsel %vm648, %v2525, 0
      %v2564 = vsel %vm649, %v2546, 0
      %v2565 = vsel %vm650, %v2556, 0
      %v2575 = vunpack.c.l.b16 %v2505
      %v2576 = vunpack.c.l.b16 %v2506
      %v2577 = vunpack.c.l.b16 %v2507
      %v2578 = vunpack.c.l.b16 %v2508
      %v2579 = vunpack.c.l.b16 %v2509
      %v2580 = vunpack.c.l.b16 %v2510
      %v2581 = vunpack.c.l.b16 %v2511
      %v2582 = vunpack.c.l.b16 %v2512
      %v2583 = vunpack.c.l.b16 %v2513
      %v2584 = vpack.c.b16 %v2576, %v2575
      %v2585 = vpack.c.b16 %v2578, %v2577
      %v2586 = vpack.c.b16 %v2580, %v2579
      %v2587 = vpack.c.b16 %v2582, %v2581
      %v2588 = vpack.c.b16 %v2583, %v2583
      %v2597 = vunpack.c.l.b16 %v2497
      %v2598 = vunpack.c.l.b16 %v2498
      %v2599 = vunpack.c.l.b16 %v2499
      %v2600 = vunpack.c.l.b16 %v2500
      %v2601 = vunpack.c.l.b16 %v2501
      %v2602 = vunpack.c.l.b16 %v2502
      %v2603 = vunpack.c.l.b16 %v2503
      %v2604 = vunpack.c.l.b16 %v2504
      %v2605 = vpack.c.b16 %v2598, %v2597
      %v2606 = vpack.c.b16 %v2600, %v2599
      %v2607 = vpack.c.b16 %v2602, %v2601
      %v2608 = vpack.c.b16 %v2604, %v2603
      %v2610 = vshrl.u32 %v2605, 16
      %v2612 = vrot.slane %v2610, 4
      %v2613 = vshll.u32 %v2605, 16
      %v2615 = vrot.slane %v2613, 5
      %v2616 = vor.u32 %v2612, %v2615
      %v2618 = vshrl.u32 %v2606, 16
      %v2620 = vrot.slane %v2618, 4
      %v2621 = vshll.u32 %v2606, 16
      %v2623 = vrot.slane %v2621, 5
      %v2624 = vor.u32 %v2620, %v2623
      %v2625 = vsel %vm435, %v2616, %v2624
      %v2627 = vshrl.u32 %v2607, 16
      %v2629 = vrot.slane %v2627, 4
      %v2630 = vshll.u32 %v2607, 16
      %v2632 = vrot.slane %v2630, 5
      %v2633 = vor.u32 %v2629, %v2632
      %v2634 = vsel %vm435, %v2624, %v2633
      %v2636 = vshrl.u32 %v2608, 16
      %v2638 = vrot.slane %v2636, 4
      %v2639 = vshll.u32 %v2608, 16
      %v2641 = vrot.slane %v2639, 5
      %v2642 = vor.u32 %v2638, %v2641
      %v2643 = vsel %vm435, %v2633, %v2642
      %2644 = vrot.lane.b32.xlu0 %v2616, 32
      %v2645 = vpop.permute.xlu0 %2644
      %2646 = vrot.lane.b32.xlu0 %v2625, 32
      %v2647 = vpop.permute.xlu0 %2646
      %2648 = vrot.lane.b32.xlu0 %v2634, 32
      %v2649 = vpop.permute.xlu0 %2648
      %2650 = vrot.lane.b32.xlu0 %v2643, 32
      %v2651 = vpop.permute.xlu0 %2650
      %2652 = vrot.lane.b32.xlu0 %v2642, 32
      %v2653 = vpop.permute.xlu0 %2652
      %v2663 = vunpack.c.l.b16 %v2515
      %v2664 = vunpack.c.l.b16 %v2516
      %v2665 = vunpack.c.l.b16 %v2517
      %v2666 = vunpack.c.l.b16 %v2518
      %v2667 = vunpack.c.l.b16 %v2519
      %v2668 = vunpack.c.l.b16 %v2520
      %v2669 = vunpack.c.l.b16 %v2521
      %v2670 = vunpack.c.l.b16 %v2522
      %v2671 = vunpack.c.l.b16 %v2523
      %v2672 = vpack.c.b16 %v2664, %v2663
      %v2673 = vpack.c.b16 %v2666, %v2665
      %v2674 = vpack.c.b16 %v2668, %v2667
      %v2675 = vpack.c.b16 %v2670, %v2669
      %v2676 = vpack.c.b16 %v2671, %v2671
      %v2677 = vrot.slane %v2672, 5
      %v2678 = vrot.slane %v2673, 5
      %v2679 = vsel %vm813, %v2677, %v2678
      %v2680 = vrot.slane %v2674, 5
      %v2681 = vsel %vm813, %v2678, %v2680
      %v2682 = vrot.slane %v2675, 5
      %v2683 = vsel %vm813, %v2680, %v2682
      %v2684 = vrot.slane %v2676, 5
      %v2685 = vsel %vm813, %v2682, %v2684
      %2686 = vrot.lane.b32.xlu0 %v2677, 64
      %v2687 = vpop.permute.xlu0 %2686
      %2688 = vrot.lane.b32.xlu0 %v2679, 64
      %v2689 = vpop.permute.xlu0 %2688
      %2690 = vrot.lane.b32.xlu0 %v2681, 64
      %v2691 = vpop.permute.xlu0 %2690
      %2692 = vrot.lane.b32.xlu0 %v2683, 64
      %v2693 = vpop.permute.xlu0 %2692
      %2694 = vrot.lane.b32.xlu0 %v2685, 64
      %v2695 = vpop.permute.xlu0 %2694
      %v2705 = vunpack.c.l.b16 %v2526
      %v2706 = vunpack.c.l.b16 %v2527
      %v2707 = vunpack.c.l.b16 %v2528
      %v2708 = vunpack.c.l.b16 %v2529
      %v2709 = vunpack.c.l.b16 %v2530
      %v2710 = vunpack.c.l.b16 %v2531
      %v2711 = vunpack.c.l.b16 %v2532
      %v2712 = vunpack.c.l.b16 %v2533
      %v2713 = vunpack.c.l.b16 %v2534
      %v2714 = vpack.c.b16 %v2706, %v2705
      %v2715 = vpack.c.b16 %v2708, %v2707
      %v2716 = vpack.c.b16 %v2710, %v2709
      %v2717 = vpack.c.b16 %v2712, %v2711
      %v2718 = vpack.c.b16 %v2713, %v2713
      %2719 = vrot.lane.b32.xlu0 %v2714, 96
      %v2720 = vpop.permute.xlu0 %2719
      %2721 = vrot.lane.b32.xlu0 %v2715, 96
      %v2722 = vpop.permute.xlu0 %2721
      %2723 = vrot.lane.b32.xlu0 %v2716, 96
      %v2724 = vpop.permute.xlu0 %2723
      %2725 = vrot.lane.b32.xlu0 %v2717, 96
      %v2726 = vpop.permute.xlu0 %2725
      %2727 = vrot.lane.b32.xlu0 %v2718, 96
      %v2728 = vpop.permute.xlu0 %2727
      %v2730 = vunpack.c.l.b16 %v2525
      %v2731 = vpack.c.b16 %v2599, %v2598
      %v2732 = vpack.c.b16 %v2601, %v2600
      %v2733 = vpack.c.b16 %v2603, %v2602
      %v2734 = vpack.c.b16 %v2730, %v2604
      %v2736 = vshrl.u32 %v2731, 16
      %v2738 = vrot.slane %v2736, 4
      %v2739 = vshll.u32 %v2731, 16
      %v2741 = vrot.slane %v2739, 5
      %v2742 = vor.u32 %v2738, %v2741
      %v2744 = vshrl.u32 %v2732, 16
      %v2746 = vrot.slane %v2744, 4
      %v2747 = vshll.u32 %v2732, 16
      %v2749 = vrot.slane %v2747, 5
      %v2750 = vor.u32 %v2746, %v2749
      %v2751 = vsel %vm435, %v2742, %v2750
      %v2753 = vshrl.u32 %v2733, 16
      %v2755 = vrot.slane %v2753, 4
      %v2756 = vshll.u32 %v2733, 16
      %v2758 = vrot.slane %v2756, 5
      %v2759 = vor.u32 %v2755, %v2758
      %v2760 = vsel %vm435, %v2750, %v2759
      %v2762 = vshrl.u32 %v2734, 16
      %v2764 = vrot.slane %v2762, 4
      %v2765 = vshll.u32 %v2734, 16
      %v2767 = vrot.slane %v2765, 5
      %v2768 = vor.u32 %v2764, %v2767
      %v2769 = vsel %vm435, %v2759, %v2768
      %v2779 = vunpack.c.l.b16 %v2536
      %v2780 = vunpack.c.l.b16 %v2537
      %v2781 = vunpack.c.l.b16 %v2538
      %v2782 = vunpack.c.l.b16 %v2539
      %v2783 = vunpack.c.l.b16 %v2540
      %v2784 = vunpack.c.l.b16 %v2541
      %v2785 = vunpack.c.l.b16 %v2542
      %v2786 = vunpack.c.l.b16 %v2543
      %v2787 = vunpack.c.l.b16 %v2544
      %v2788 = vpack.c.b16 %v2780, %v2779
      %v2789 = vpack.c.b16 %v2782, %v2781
      %v2790 = vpack.c.b16 %v2784, %v2783
      %v2791 = vpack.c.b16 %v2786, %v2785
      %v2792 = vpack.c.b16 %v2787, %v2787
      %v2793 = vrot.slane %v2788, 5
      %v2794 = vrot.slane %v2789, 5
      %v2795 = vsel %vm813, %v2793, %v2794
      %v2796 = vrot.slane %v2790, 5
      %v2797 = vsel %vm813, %v2794, %v2796
      %v2798 = vrot.slane %v2791, 5
      %v2799 = vsel %vm813, %v2796, %v2798
      %v2800 = vrot.slane %v2792, 5
      %v2801 = vsel %vm813, %v2798, %v2800
      %2802 = vrot.lane.b32.xlu0 %v2793, 32
      %v2803 = vpop.permute.xlu0 %2802
      %2804 = vrot.lane.b32.xlu0 %v2795, 32
      %v2805 = vpop.permute.xlu0 %2804
      %2806 = vrot.lane.b32.xlu0 %v2797, 32
      %v2807 = vpop.permute.xlu0 %2806
      %2808 = vrot.lane.b32.xlu0 %v2799, 32
      %v2809 = vpop.permute.xlu0 %2808
      %2810 = vrot.lane.b32.xlu0 %v2801, 32
      %v2811 = vpop.permute.xlu0 %2810
      %v2821 = vunpack.c.l.b16 %v2547
      %v2822 = vunpack.c.l.b16 %v2548
      %v2823 = vunpack.c.l.b16 %v2549
      %v2824 = vunpack.c.l.b16 %v2550
      %v2825 = vunpack.c.l.b16 %v2551
      %v2826 = vunpack.c.l.b16 %v2552
      %v2827 = vunpack.c.l.b16 %v2553
      %v2828 = vunpack.c.l.b16 %v2554
      %v2829 = vunpack.c.l.b16 %v2555
      %v2830 = vpack.c.b16 %v2822, %v2821
      %v2831 = vpack.c.b16 %v2824, %v2823
      %v2832 = vpack.c.b16 %v2826, %v2825
      %v2833 = vpack.c.b16 %v2828, %v2827
      %v2834 = vpack.c.b16 %v2829, %v2829
      %2835 = vrot.lane.b32.xlu0 %v2830, 64
      %v2836 = vpop.permute.xlu0 %2835
      %2837 = vrot.lane.b32.xlu0 %v2831, 64
      %v2838 = vpop.permute.xlu0 %2837
      %2839 = vrot.lane.b32.xlu0 %v2832, 64
      %v2840 = vpop.permute.xlu0 %2839
      %2841 = vrot.lane.b32.xlu0 %v2833, 64
      %v2842 = vpop.permute.xlu0 %2841
      %2843 = vrot.lane.b32.xlu0 %v2834, 64
      %v2844 = vpop.permute.xlu0 %2843
      %v2846 = vunpack.c.l.b16 %v2546
      %v2847 = vpack.c.b16 %v2846, %v2730
      %v2849 = vshrl.u32 %v2847, 16
      %v2851 = vrot.slane %v2849, 4
      %v2852 = vshll.u32 %v2847, 16
      %v2854 = vrot.slane %v2852, 5
      %v2855 = vor.u32 %v2851, %v2854
      %v2856 = vsel %vm435, %v2642, %v2855
      %2857 = vrot.lane.b32.xlu0 %v2624, 96
      %v2858 = vpop.permute.xlu0 %2857
      %2859 = vrot.lane.b32.xlu0 %v2634, 96
      %v2860 = vpop.permute.xlu0 %2859
      %2861 = vrot.lane.b32.xlu0 %v2643, 96
      %v2862 = vpop.permute.xlu0 %2861
      %2863 = vrot.lane.b32.xlu0 %v2856, 96
      %v2864 = vpop.permute.xlu0 %2863
      %2865 = vrot.lane.b32.xlu0 %v2855, 96
      %v2866 = vpop.permute.xlu0 %2865
      %v2876 = vunpack.c.l.b16 %v2557
      %v2877 = vunpack.c.l.b16 %v2558
      %v2878 = vunpack.c.l.b16 %v2559
      %v2879 = vunpack.c.l.b16 %v2560
      %v2880 = vunpack.c.l.b16 %v2561
      %v2881 = vunpack.c.l.b16 %v2562
      %v2882 = vunpack.c.l.b16 %v2563
      %v2883 = vunpack.c.l.b16 %v2564
      %v2884 = vunpack.c.l.b16 %v2565
      %v2885 = vpack.c.b16 %v2877, %v2876
      %v2886 = vpack.c.b16 %v2879, %v2878
      %v2887 = vpack.c.b16 %v2881, %v2880
      %v2888 = vpack.c.b16 %v2883, %v2882
      %v2889 = vpack.c.b16 %v2884, %v2884
      %v2890 = vrot.slane %v2885, 5
      %v2891 = vrot.slane %v2886, 5
      %v2892 = vsel %vm813, %v2890, %v2891
      %v2893 = vrot.slane %v2887, 5
      %v2894 = vsel %vm813, %v2891, %v2893
      %v2895 = vrot.slane %v2888, 5
      %v2896 = vsel %vm813, %v2893, %v2895
      %v2897 = vrot.slane %v2889, 5
      %v2898 = vsel %vm813, %v2895, %v2897
      %v2901 = vsel %vm1036, %v2584, %v2645
      %v2904 = vsel %vm1036, %v2585, %v2647
      %v2907 = vsel %vm1036, %v2586, %v2649
      %v2910 = vsel %vm1036, %v2587, %v2651
      %v2913 = vsel %vm1036, %v2588, %v2653
      %v2915 = vsel %vm1052, %v2901, %v2687
      %v2917 = vsel %vm1052, %v2904, %v2689
      %v2919 = vsel %vm1052, %v2907, %v2691
      %v2921 = vsel %vm1052, %v2910, %v2693
      %v2923 = vsel %vm1052, %v2913, %v2695
      %v2925 = vsel %vm1063, %v2915, %v2720
      %v2927 = vsel %vm1063, %v2917, %v2722
      %v2929 = vsel %vm1063, %v2919, %v2724
      %v2931 = vsel %vm1063, %v2921, %v2726
      %v2933 = vsel %vm1063, %v2923, %v2728
      %v2936 = vsel %vm1036, %v2742, %v2803
      %v2939 = vsel %vm1036, %v2751, %v2805
      %v2942 = vsel %vm1036, %v2760, %v2807
      %v2945 = vsel %vm1036, %v2769, %v2809
      %v2948 = vsel %vm1036, %v2768, %v2811
      %v2950 = vsel %vm1052, %v2936, %v2836
      %v2952 = vsel %vm1052, %v2939, %v2838
      %v2954 = vsel %vm1052, %v2942, %v2840
      %v2956 = vsel %vm1052, %v2945, %v2842
      %v2958 = vsel %vm1052, %v2948, %v2844
      %v2960 = vsel %vm1063, %v2950, %v2858
      %v2962 = vsel %vm1063, %v2952, %v2860
      %v2964 = vsel %vm1063, %v2954, %v2862
      %v2966 = vsel %vm1063, %v2956, %v2864
      %v2968 = vsel %vm1063, %v2958, %v2866
      %v2970 = vlaneseq
      %v2971 = vshrl.u32 %v2970, 7
      %v2972 = vsub.s32 0, %v2971
      %v2973 = vrot.slane %v2495, %v2972
      %v2975 = vshrl.u32 %v2925, 16
      %v2977 = vrot.slane %v2975, 3
      %v2978 = vshll.u32 %v2925, 16
      %v2980 = vrot.slane %v2978, 4
      %v2981 = vor.u32 %v2977, %v2980
      %v2982 = vshrl.u32 %v2927, 16
      %v2984 = vrot.slane %v2982, 3
      %v2985 = vshll.u32 %v2927, 16
      %v2987 = vrot.slane %v2985, 4
      %v2988 = vor.u32 %v2984, %v2987
      %v2989 = vsel %vm1109, %v2981, %v2988
      %v2990 = vshrl.u32 %v2960, 16
      %v2992 = vrot.slane %v2990, 3
      %v2993 = vshll.u32 %v2960, 16
      %v2995 = vrot.slane %v2993, 4
      %v2996 = vor.u32 %v2992, %v2995
      %v2997 = vshrl.u32 %v2962, 16
      %v2999 = vrot.slane %v2997, 3
      %v3000 = vshll.u32 %v2962, 16
      %v3002 = vrot.slane %v3000, 4
      %v3003 = vor.u32 %v2999, %v3002
      %v3004 = vsel %vm1109, %v2996, %v3003
      %v3006 = vshrl.u32 %v2890, 16
      %v3008 = vrot.slane %v3006, 3
      %v3009 = vshll.u32 %v2890, 16
      %v3011 = vrot.slane %v3009, 4
      %v3012 = vor.u32 %v3008, %v3011
      %v3014 = vshrl.u32 %v2892, 16
      %v3016 = vrot.slane %v3014, 3
      %v3017 = vshll.u32 %v2892, 16
      %v3019 = vrot.slane %v3017, 4
      %v3020 = vor.u32 %v3016, %v3019
      %v3021 = vsel %vm1109, %v3012, %v3020
      %v3022 = vshrl.u32 %v2929, 16
      %v3024 = vrot.slane %v3022, 3
      %v3025 = vshll.u32 %v2929, 16
      %v3027 = vrot.slane %v3025, 4
      %v3028 = vor.u32 %v3024, %v3027
      %v3029 = vsel %vm1109, %v2988, %v3028
      %v3030 = vshrl.u32 %v2964, 16
      %v3032 = vrot.slane %v3030, 3
      %v3033 = vshll.u32 %v2964, 16
      %v3035 = vrot.slane %v3033, 4
      %v3036 = vor.u32 %v3032, %v3035
      %v3037 = vsel %vm1109, %v3003, %v3036
      %v3039 = vshrl.u32 %v2894, 16
      %v3041 = vrot.slane %v3039, 3
      %v3042 = vshll.u32 %v2894, 16
      %v3044 = vrot.slane %v3042, 4
      %v3045 = vor.u32 %v3041, %v3044
      %v3046 = vsel %vm1109, %v3020, %v3045
      %v3047 = vshrl.u32 %v2931, 16
      %v3049 = vrot.slane %v3047, 3
      %v3050 = vshll.u32 %v2931, 16
      %v3052 = vrot.slane %v3050, 4
      %v3053 = vor.u32 %v3049, %v3052
      %v3054 = vsel %vm1109, %v3028, %v3053
      %v3055 = vshrl.u32 %v2966, 16
      %v3057 = vrot.slane %v3055, 3
      %v3058 = vshll.u32 %v2966, 16
      %v3060 = vrot.slane %v3058, 4
      %v3061 = vor.u32 %v3057, %v3060
      %v3062 = vsel %vm1109, %v3036, %v3061
      %v3064 = vshrl.u32 %v2896, 16
      %v3066 = vrot.slane %v3064, 3
      %v3067 = vshll.u32 %v2896, 16
      %v3069 = vrot.slane %v3067, 4
      %v3070 = vor.u32 %v3066, %v3069
      %v3071 = vsel %vm1109, %v3045, %v3070
      %v3072 = vshrl.u32 %v2933, 16
      %v3074 = vrot.slane %v3072, 3
      %v3075 = vshll.u32 %v2933, 16
      %v3077 = vrot.slane %v3075, 4
      %v3078 = vor.u32 %v3074, %v3077
      %v3079 = vsel %vm1109, %v3053, %v3078
      %v3080 = vshrl.u32 %v2968, 16
      %v3082 = vrot.slane %v3080, 3
      %v3083 = vshll.u32 %v2968, 16
      %v3085 = vrot.slane %v3083, 4
      %v3086 = vor.u32 %v3082, %v3085
      %v3087 = vsel %vm1109, %v3061, %v3086
      %v3089 = vshrl.u32 %v2898, 16
      %v3091 = vrot.slane %v3089, 3
      %v3092 = vshll.u32 %v2898, 16
      %v3094 = vrot.slane %v3092, 4
      %v3095 = vor.u32 %v3091, %v3094
      %v3096 = vsel %vm1109, %v3070, %v3095
      %v3141 = vunpack.c.l.b16 %v2459
      %v3142 = vunpack.c.l.b16 %v2460
      %v3143 = vunpack.c.l.b16 %v2461
      %v3144 = vunpack.c.l.b16 %v2462
      %v3145 = vunpack.c.l.b16 %v2463
      %v3146 = vunpack.c.l.b16 %v2464
      %v3147 = vunpack.c.l.b16 %v2465
      %v3148 = vunpack.c.l.b16 %v2466
      %v3149 = vunpack.c.l.b16 %v2467
      %v3150 = vunpack.c.l.b16 %v2468
      %v3151 = vunpack.c.l.b16 %v2469
      %v3152 = vunpack.c.l.b16 %v2470
      %v3153 = vunpack.c.l.b16 %v2471
      %v3154 = vunpack.c.l.b16 %v2472
      %v3155 = vunpack.c.l.b16 %v2473
      %v3156 = vunpack.c.l.b16 %v2474
      %v3157 = vunpack.c.l.b16 %v2475
      %v3158 = vunpack.c.l.b16 %v2476
      %v3159 = vunpack.c.l.b16 %v2477
      %v3160 = vunpack.c.l.b16 %v2478
      %v3161 = vunpack.c.l.b16 %v2479
      %v3162 = vunpack.c.l.b16 %v2480
      %v3163 = vunpack.c.l.b16 %v2481
      %v3164 = vunpack.c.l.b16 %v2482
      %v3165 = vunpack.c.l.b16 %v2483
      %v3166 = vunpack.c.l.b16 %v2484
      %v3167 = vunpack.c.l.b16 %v2485
      %v3168 = vunpack.c.l.b16 %v2486
      %v3169 = vunpack.c.l.b16 %v2487
      %v3170 = vunpack.c.l.b16 %v2488
      %v3171 = vunpack.c.l.b16 %v2489
      %v3172 = vunpack.c.l.b16 %v2490
      %v3173 = vunpack.c.l.b16 %v2491
      %v3174 = vunpack.c.l.b16 %v2492
      %v3175 = vunpack.c.l.b16 %v2493
      %v3176 = vunpack.c.l.b16 %v2494
      %v3177 = vpack.c.b16 %v3142, %v3141
      %v3178 = vpack.c.b16 %v3144, %v3143
      %v3179 = vpack.c.b16 %v3146, %v3145
      %v3180 = vpack.c.b16 %v3148, %v3147
      %v3181 = vpack.c.b16 %v3150, %v3149
      %v3182 = vpack.c.b16 %v3152, %v3151
      %v3183 = vpack.c.b16 %v3154, %v3153
      %v3184 = vpack.c.b16 %v3156, %v3155
      %v3185 = vpack.c.b16 %v3158, %v3157
      %v3186 = vpack.c.b16 %v3160, %v3159
      %v3187 = vpack.c.b16 %v3162, %v3161
      %v3188 = vpack.c.b16 %v3164, %v3163
      %v3189 = vpack.c.b16 %v3166, %v3165
      %v3190 = vpack.c.b16 %v3168, %v3167
      %v3191 = vpack.c.b16 %v3170, %v3169
      %v3192 = vpack.c.b16 %v3172, %v3171
      %v3193 = vpack.c.b16 %v3174, %v3173
      %v3194 = vpack.c.b16 %v3176, %v3175
      %v3214 = vsel %vm1036, %v3021, 0
      %v3217 = vsel %vm1036, %v3046, 0
      %v3220 = vsel %vm1036, %v3071, 0
      %v3223 = vsel %vm1036, %v3096, 0
      %3225 = vmatprep.subr.bf16.mxu0 0
      %3226 = vmatpush1.bf16.msra.mxu0 %v3184
      %3227 = vmatprep.subr.bf16.mxu0 0
      %3228 = vmatpush1.bf16.msra.mxu0 %v3183
      %3229 = vmatprep.subr.bf16.mxu0 0
      %3230 = vmatpush1.bf16.msra.mxu0 %v3182
      %3231 = vmatprep.subr.bf16.mxu0 0
      %3232 = vmatpush1.bf16.msra.mxu0 %v3181
      %3233 = vmatprep.subr.bf16.mxu0 0
      %3234 = vmatpush1.bf16.msra.mxu0 %v3180
      %3235 = vmatprep.subr.bf16.mxu0 0
      %3236 = vmatpush1.bf16.msra.mxu0 %v3179
      %3237 = vmatprep.subr.bf16.mxu0 0
      %3238 = vmatpush1.bf16.msra.mxu0 %v3178
      %3239 = vmatprep.subr.bf16.mxu0 0
      %3240 = vmatpush1.bf16.msra.mxu0 %v3177
      %3241 = vmatprep.subr.bf16.mxu0 0
      %3242 = vmatpush2.bf16.msra.mxu0 %v3192
      %3243 = vmatprep.subr.bf16.mxu0 0
      %3244 = vmatpush2.bf16.msra.mxu0 %v3191
      %3245 = vmatprep.subr.bf16.mxu0 0
      %3246 = vmatpush2.bf16.msra.mxu0 %v3190
      %3247 = vmatprep.subr.bf16.mxu0 0
      %3248 = vmatpush2.bf16.msra.mxu0 %v3189
      %3249 = vmatprep.subr.bf16.mxu0 0
      %3250 = vmatpush2.bf16.msra.mxu0 %v3188
      %3251 = vmatprep.subr.bf16.mxu0 0
      %3252 = vmatpush2.bf16.msra.mxu0 %v3187
      %3253 = vmatprep.subr.bf16.mxu0 0
      %3254 = vmatpush2.bf16.msra.mxu0 %v3186
      %3255 = vmatprep.subr.bf16.mxu0 0
      %3256 = vmatpush2.bf16.msra.mxu0 %v3185
      %3257 = vmatprep.mubr.bf16.mxu0 %v3004
      %3258 = vmatmul.mubr.bf16.gmra.mxu0 %v2989
      %v3259 = vpop.f32.mrf.mxu0
      %v3260 = vadd.f32 %v2973, %v3259
      %v3261 = vpop.f32.mrf.mxu0
      %v3262 = vpop.f32.mrf.mxu0
      %v3263 = vadd.f32 %v2973, %v3262
      %v3264 = vpop.f32.mrf.mxu0
      %3265 = vmatprep.mubr.bf16.mxu0 %v3037
      %3266 = vmatmul.mubr.bf16.gmra.mxu0 %v3029
      %v3267 = vpop.f32.mrf.mxu0
      %v3268 = vadd.f32 %v2973, %v3267
      %v3269 = vpop.f32.mrf.mxu0
      %v3270 = vpop.f32.mrf.mxu0
      %v3271 = vadd.f32 %v2973, %v3270
      %v3272 = vpop.f32.mrf.mxu0
      %3273 = vmatprep.mubr.bf16.mxu0 %v3062
      %3274 = vmatmul.mubr.bf16.gmra.mxu0 %v3054
      %v3275 = vpop.f32.mrf.mxu0
      %v3276 = vadd.f32 %v2973, %v3275
      %v3277 = vpop.f32.mrf.mxu0
      %v3278 = vpop.f32.mrf.mxu0
      %v3279 = vadd.f32 %v2973, %v3278
      %v3280 = vpop.f32.mrf.mxu0
      %3281 = vmatprep.mubr.bf16.mxu0 %v3087
      %3282 = vmatmul.mubr.bf16.gmra.mxu0 %v3079
      %v3283 = vpop.f32.mrf.mxu0
      %v3284 = vadd.f32 %v2973, %v3283
      %v3285 = vpop.f32.mrf.mxu0
      %v3286 = vpop.f32.mrf.mxu0
      %v3287 = vadd.f32 %v2973, %v3286
      %v3288 = vpop.f32.mrf.mxu0
      %3289 = vdwg.mxu0
      %3290 = vmatprep.subr.bf16.mxu0 0
      %3291 = vmatpush1.bf16.msra.mxu0 0
      %3292 = vmatprep.subr.bf16.mxu0 0
      %3293 = vmatpush1.bf16.msra.mxu0 0
      %3294 = vmatprep.subr.bf16.mxu0 0
      %3295 = vmatpush1.bf16.msra.mxu0 0
      %3296 = vmatprep.subr.bf16.mxu0 0
      %3297 = vmatpush1.bf16.msra.mxu0 0
      %3298 = vmatprep.subr.bf16.mxu0 0
      %3299 = vmatpush1.bf16.msra.mxu0 0
      %3300 = vmatprep.subr.bf16.mxu0 0
      %3301 = vmatpush1.bf16.msra.mxu0 0
      %3302 = vmatprep.subr.bf16.mxu0 0
      %3303 = vmatpush1.bf16.msra.mxu0 %v3194
      %3304 = vmatprep.subr.bf16.mxu0 0
      %3305 = vmatpush1.bf16.msra.mxu0 %v3193
      %3306 = vmatprep.subr.bf16.mxu0 0
      %3307 = vmatpush2.bf16.msra.mxu0 0
      %3308 = vmatprep.subr.bf16.mxu0 0
      %3309 = vmatpush2.bf16.msra.mxu0 0
      %3310 = vmatprep.subr.bf16.mxu0 0
      %3311 = vmatpush2.bf16.msra.mxu0 0
      %3312 = vmatprep.subr.bf16.mxu0 0
      %3313 = vmatpush2.bf16.msra.mxu0 0
      %3314 = vmatprep.subr.bf16.mxu0 0
      %3315 = vmatpush2.bf16.msra.mxu0 0
      %3316 = vmatprep.subr.bf16.mxu0 0
      %3317 = vmatpush2.bf16.msra.mxu0 0
      %3318 = vmatprep.subr.bf16.mxu0 0
      %3319 = vmatpush2.bf16.msra.mxu0 0
      %3320 = vmatprep.subr.bf16.mxu0 0
      %3321 = vmatpush2.bf16.msra.mxu0 0
      %3322 = vmatprep.mubr.bf16.mxu0 0
      %3323 = vmatmul.mubr.bf16.gmra.mxu0 %v3214
      %v3324 = vpop.f32.mrf.mxu0
      %v3325 = vadd.f32 %v3260, %v3324
      %v3326 = vpop.f32.mrf.mxu0
      %v3327 = vpop.f32.mrf.mxu0
      %v3328 = vadd.f32 %v3263, %v3327
      %v3329 = vpop.f32.mrf.mxu0
      %3330 = vmatprep.mubr.bf16.mxu0 0
      %3331 = vmatmul.mubr.bf16.gmra.mxu0 %v3217
      %v3332 = vpop.f32.mrf.mxu0
      %v3333 = vadd.f32 %v3268, %v3332
      %v3334 = vpop.f32.mrf.mxu0
      %v3335 = vpop.f32.mrf.mxu0
      %v3336 = vadd.f32 %v3271, %v3335
      %v3337 = vpop.f32.mrf.mxu0
      %3338 = vmatprep.mubr.bf16.mxu0 0
      %3339 = vmatmul.mubr.bf16.gmra.mxu0 %v3220
      %v3340 = vpop.f32.mrf.mxu0
      %v3341 = vadd.f32 %v3276, %v3340
      %v3342 = vpop.f32.mrf.mxu0
      %v3343 = vpop.f32.mrf.mxu0
      %v3344 = vadd.f32 %v3279, %v3343
      %v3345 = vpop.f32.mrf.mxu0
      %3346 = vmatprep.mubr.bf16.mxu0 0
      %3347 = vmatmul.mubr.bf16.gmra.mxu0 %v3223
      %v3348 = vpop.f32.mrf.mxu0
      %v3349 = vadd.f32 %v3284, %v3348
      %v3350 = vpop.f32.mrf.mxu0
      %v3351 = vpop.f32.mrf.mxu0
      %v3352 = vadd.f32 %v3287, %v3351
      %v3353 = vpop.f32.mrf.mxu0
      %3354 = vdwg.mxu0
      %v3355 = vsub.f32 0.0, %v3325
      %v3356 = vsub.f32 0.0, %v3328
      %v3357 = vsub.f32 0.0, %v3333
      %v3358 = vsub.f32 0.0, %v3336
      %v3359 = vsub.f32 0.0, %v3341
      %v3360 = vsub.f32 0.0, %v3344
      %v3361 = vsub.f32 0.0, %v3349
      %v3362 = vsub.f32 0.0, %v3352
      %v3363 = vmul.f32 %v3355, 1.442695
      %v3364 = vpow.pop %v3363
      %v3365 = vmul.f32 %v3356, 1.442695
      %v3366 = vpow.pop %v3365
      %v3367 = vmul.f32 %v3357, 1.442695
      %v3368 = vpow.pop %v3367
      %v3369 = vmul.f32 %v3358, 1.442695
      %v3370 = vpow.pop %v3369
      %v3371 = vmul.f32 %v3359, 1.442695
      %v3372 = vpow.pop %v3371
      %v3373 = vmul.f32 %v3360, 1.442695
      %v3374 = vpow.pop %v3373
      %v3375 = vmul.f32 %v3361, 1.442695
      %v3376 = vpow.pop %v3375
      %v3377 = vmul.f32 %v3362, 1.442695
      %v3378 = vpow.pop %v3377
      %v3379 = vadd.f32 %v3364, 1.0
      %v3380 = vadd.f32 %v3366, 1.0
      %v3381 = vadd.f32 %v3368, 1.0
      %v3382 = vadd.f32 %v3370, 1.0
      %v3383 = vadd.f32 %v3372, 1.0
      %v3384 = vadd.f32 %v3374, 1.0
      %v3385 = vadd.f32 %v3376, 1.0
      %v3386 = vadd.f32 %v3378, 1.0
      %v3387 = vrcp.pop %v3379
      %v3388 = vmul.f32 1.0, %v3387
      %v3389 = vrcp.pop %v3380
      %v3390 = vmul.f32 1.0, %v3389
      %v3391 = vrcp.pop %v3381
      %v3392 = vmul.f32 1.0, %v3391
      %v3393 = vrcp.pop %v3382
      %v3394 = vmul.f32 1.0, %v3393
      %v3395 = vrcp.pop %v3383
      %v3396 = vmul.f32 1.0, %v3395
      %v3397 = vrcp.pop %v3384
      %v3398 = vmul.f32 1.0, %v3397
      %v3399 = vrcp.pop %v3385
      %v3400 = vmul.f32 1.0, %v3399
      %v3401 = vrcp.pop %v3386
      %v3402 = vmul.f32 1.0, %v3401
      %vm3403 = vcmask 31744
      %3404 = vst.msk [vmem:[%s224] sm:$0xff] %vm3403, %v3388
      %3405 = vst.msk [vmem:[%s224 + $0x8] sm:$0xff] %vm3403, %v3390
      %3406 = vst.msk [vmem:[%s224 + $0x10] sm:$0xff] %vm3403, %v3392
      %3407 = vst.msk [vmem:[%s224 + $0x18] sm:$0xff] %vm3403, %v3394
      %3408 = vst.msk [vmem:[%s224 + $0x20] sm:$0xff] %vm3403, %v3396
      %3409 = vst.msk [vmem:[%s224 + $0x28] sm:$0xff] %vm3403, %v3398
      %3410 = vst.msk [vmem:[%s224 + $0x30] sm:$0xff] %vm3403, %v3400
      %3411 = vst.msk [vmem:[%s224 + $0x38] sm:$0xff] %vm3403, %v3402
      %p3412 = scmp.lt.s32.totalorder %s16, 1
      %s3413 = scalar_select %p3412, %s16, 1
      %s3414 = smul.addr %s3413, 8
      %s3415 = smul.addr %s3414, 8
      %s3416 = scalar_lea.vmem %s5, %s3415
      // Predicated region
      $region41: #{decoder_forward.7} parent=39 // pred_check
        %p3417 = pneg %p144
      $region42: #{decoder_forward.7} parent=39 // pred_check_branch
        %3419 = sbr.rel (%p3417) target = $region44
      $region43: #{decoder_forward.7} parent=39 // pred_region
        _
      $region44: #{decoder_forward.7} parent=39 // pred_fallthru
        _
    $region40: #{decoder_forward.7} parent=5 // pred_fallthru
      _
    %p3420 = scmp.le.s32.totalorder 2, %s11
    // Predicated region
    $region45: #{decoder_forward.7} parent=5 // pred_check
      %p3421 = pneg %p3420
    $region46: #{decoder_forward.7} parent=5 // pred_check_branch
      %3423 = sbr.rel (%p3421) target = $region48
    $region47: #{decoder_forward.7} parent=5 // pred_region
      %s3424 = ssub.s32 %s11, 2
      // Predicated region
      $region49: #{decoder_forward.7} parent=47 // pred_check
        %p3425 = pneg %p150
      $region50: #{decoder_forward.7} parent=47 // pred_check_branch
        %3427 = sbr.rel (%p3425) target = $region52
      $region51: #{decoder_forward.7} parent=47 // pred_region
        %p3428 = scmp.lt.s32.totalorder %s17, 1
        %s3429 = scalar_select %p3428, %s17, 1
        %s3430 = smul.addr %s3429, 8
        %s3431 = smul.addr %s3430, 8
        %s3432 = scalar_lea.vmem %s5, %s3431
      $region52: #{decoder_forward.7} parent=47 // pred_fallthru
        _
    $region48: #{decoder_forward.7} parent=5 // pred_fallthru
      _
  $region6: #{decoder_forward.7} parent=0 // loop_footer
    %s15 = sadd.s32 1, %s11
  $region7: #{decoder_forward.7} parent=0 // loop_footer_branch
    %10 = sbr.rel target = $region3
  $region8: #{decoder_forward.7} parent=0 // loop_exit
    _

</llo_original>
